<compile_context>
chip_gen: v7x
topology: tpu7x:2x2x1
jax: 0.10.0
libtpu: 0.0.40
codegen_flags: <defaults>
</compile_context>

<pallas_src>
import functools

import jax
import jax.numpy as jnp
from jax import lax
from jax.experimental import pallas as pl
from jax.experimental.pallas import tpu as pltpu

LANE = 128
SUBLANE = 8
NEG_INF = -1e30


def _round_up(x, m):
    return (x + m - 1) // m * m


def _vmem():
    return pl.BlockSpec(memory_space=pltpu.MemorySpace.VMEM)


# --------------------------- fused forward kernel ---------------------------
def asr_fused_kernel(x_ref, lens_ref, lin1_w_ref, lin1_b_ref,
                     wih_ref, bih_ref, whh_f_ref, whh_b_ref,
                     dec_w_ref, dec_b_ref,
                     out_ref,
                     xp_scr, o_scr):
    N = x_ref.shape[0]            # N = T * Bp, time-major rows (row = t*Bp + b)
    Bp = lens_ref.shape[0]        # batch padded to a sublane multiple
    T = N // Bp
    Hp = whh_f_ref.shape[0]       # per-direction hidden, padded to 128 lanes
    G = 4 * Hp                    # gate width per direction (128-lane aligned)

    # ---- stage 1: lin1 + ReLU and ONE hoisted input projection for BOTH dirs ----
    h1 = jnp.maximum(
        jnp.dot(x_ref[...], lin1_w_ref[...], preferred_element_type=jnp.float32)
        + lin1_b_ref[...], 0.0)
    xp_scr[...] = (jnp.dot(h1, wih_ref[...], preferred_element_type=jnp.float32)
                   + bih_ref[...])          # (N, 8*Hp): [fwd gates | bwd gates]

    # ---- stage 2: fused fwd/bwd recurrence, h/c as vreg-resident loop carries ---
    whh_f = whh_f_ref[...]        # load recurrent weights once (no per-step vld)
    whh_b = whh_b_ref[...]
    lens = lens_ref[...]          # (Bp, 1) int32

    def lstm_gates(pre, c):
        # PyTorch gate order i, f, g, o; Hp-wide slices are 128-lane aligned.
        i = jax.nn.sigmoid(pre[:, 0 * Hp:1 * Hp])
        f = jax.nn.sigmoid(pre[:, 1 * Hp:2 * Hp])
        g = jnp.tanh(pre[:, 2 * Hp:3 * Hp])
        o = jax.nn.sigmoid(pre[:, 3 * Hp:4 * Hp])
        c_new = f * c + i * g
        h_new = o * jnp.tanh(c_new)
        return h_new, c_new

    def body(s, carry):
        hf, cf, hb, cb = carry
        tf = s
        tb = T - 1 - s
        rf = pl.multiple_of(tf * Bp, Bp)
        rb = pl.multiple_of(tb * Bp, Bp)
        pre_f = xp_scr[pl.ds(rf, Bp), pl.ds(0, G)] + jnp.dot(
            hf, whh_f, preferred_element_type=jnp.float32)
        pre_b = xp_scr[pl.ds(rb, Bp), pl.ds(G, G)] + jnp.dot(
            hb, whh_b, preferred_element_type=jnp.float32)
        hf_new, cf_new = lstm_gates(pre_f, cf)
        hb_new, cb_new = lstm_gates(pre_b, cb)
        mf = tf < lens            # (Bp, 1) bool, built from lengths in-kernel
        mb = tb < lens
        # single lane-dense store per direction per step (pad_packed => zeros);
        # fwd half lanes [0,Hp), bwd half lanes [Hp,2*Hp) of the same scratch.
        o_scr[pl.ds(rf, Bp), pl.ds(0, Hp)] = jnp.where(mf, hf_new, 0.0)
        o_scr[pl.ds(rb, Bp), pl.ds(Hp, Hp)] = jnp.where(mb, hb_new, 0.0)
        hf = jnp.where(mf, hf_new, hf)
        cf = jnp.where(mf, cf_new, cf)
        hb = jnp.where(mb, hb_new, hb)
        cb = jnp.where(mb, cb_new, cb)
        return hf, cf, hb, cb

    z = jnp.zeros((Bp, Hp), jnp.float32)
    # Fully unroll short sequences so the LLO scheduler sees the whole loop.
    lax.fori_loop(0, T, body, (z, z, z, z), unroll=(T <= 32))

    # ---- stage 3: decoder (single matmul, no concat) + log_softmax --------------
    logits = (jnp.dot(o_scr[...], dec_w_ref[...], preferred_element_type=jnp.float32)
              + dec_b_ref[...])     # padded alphabet columns carry bias -1e30
    m = jnp.max(logits, axis=-1, keepdims=True)
    shifted = logits - m
    lse = jnp.log(jnp.sum(jnp.exp(shifted), axis=-1, keepdims=True))
    out_ref[...] = shifted - lse


# ------------------------------- wrapper -------------------------------------
def asr_forward(params, x_ids, x_lens, *, alphabet_size):
    B, T = x_ids.shape
    A = alphabet_size
    Bp = _round_up(max(B, 1), SUBLANE)

    # Pad batch so per-timestep row blocks are sublane-aligned; padded rows get
    # token 0 (padding_idx) and length 0 (fully masked) and are sliced off below.
    x_ids_p = jnp.zeros((Bp, T), x_ids.dtype).at[:B].set(x_ids)
    lens_p = jnp.zeros((Bp,), jnp.int32).at[:B].set(x_lens.astype(jnp.int32))

    # TODO(synk): embedding gather stays in XLA glue; a Pallas DMA-gather kernel is
    # only worthwhile at much larger vocab/batch sizes.
    emb = params["embedding"][x_ids_p.T]          # (T, Bp, E) time-major
    E = emb.shape[-1]
    N = T * Bp
    x2 = emb.reshape(N, E)                        # row = t*Bp + b

    Hp = params["whh_f"].shape[0]
    Apad = params["dec_b"].shape[-1]

    # TODO(synk): for production ASR sizes (T~1e3, H>=512) add a T-chunked grid /
    # emit_pipeline for the xp/o scratches and bf16 weights to respect v7x's
    # 64 MiB VMEM.
    out = pl.pallas_call(
        asr_fused_kernel,
        out_shape=jax.ShapeDtypeStruct((N, Apad), jnp.float32),
        in_specs=[_vmem()] * 10,
        out_specs=_vmem(),
        scratch_shapes=[
            pltpu.VMEM((N, 8 * Hp), jnp.float32),   # hoisted fwd|bwd input proj
            pltpu.VMEM((N, 2 * Hp), jnp.float32),   # fwd|bwd hidden outputs
        ],
    )(x2, lens_p.reshape(Bp, 1),
      params["lin1_w"], params["lin1_b"],
      params["wih_fb"], params["b_fb"],
      params["whh_f"], params["whh_b"],
      params["dec_w"], params["dec_b"])

    # (T, Bp, Apad) -> (B, T, A): single cheap view/transpose + slice of padding.
    return out.reshape(T, Bp, Apad).transpose(1, 0, 2)[:B, :, :A]


# ------------------------------ parameters -----------------------------------
def init_params(key, embedding_dim, hidden_dim, vocab_size=257, alphabet_size=28):
    E = embedding_dim
    Hh = hidden_dim // 2                    # logical per-direction hidden
    Hp = _round_up(Hh, LANE)                # lane-padded per-direction hidden
    A = alphabet_size
    Apad = _round_up(A, LANE)

    ks = jax.random.split(key, 16)
    u = lambda k, shp: jax.random.uniform(k, shp, jnp.float32, -0.1, 0.1)

    def pad_gate_cols(w):                   # (K, 4*Hh) -> (K, 4*Hp), lane-aligned gates
        K = w.shape[0]
        out = jnp.zeros((K, 4 * Hp), jnp.float32)
        for g in range(4):
            out = out.at[:, g * Hp:g * Hp + Hh].set(w[:, g * Hh:(g + 1) * Hh])
        return out

    emb = u(ks[0], (vocab_size, E)).at[0].set(0.0)            # padding_idx = 0

    wih_f = pad_gate_cols(u(ks[1], (E, 4 * Hh)))
    wih_b = pad_gate_cols(u(ks[2], (E, 4 * Hh)))
    b_f = pad_gate_cols(u(ks[3], (1, 4 * Hh)) + u(ks[4], (1, 4 * Hh)))   # b_ih + b_hh
    b_b = pad_gate_cols(u(ks[5], (1, 4 * Hh)) + u(ks[6], (1, 4 * Hh)))

    # One-time host-side concat: single (E, 8*Hp) input-projection weight
    # so the in-kernel hoisted projection is one MXU pass for both directions.
    wih_fb = jnp.concatenate([wih_f, wih_b], axis=1)          # (E, 8*Hp)
    b_fb = jnp.concatenate([b_f, b_b], axis=1)                # (1, 8*Hp)

    whh_f = jnp.zeros((Hp, 4 * Hp), jnp.float32).at[:Hh].set(
        pad_gate_cols(u(ks[7], (Hh, 4 * Hh))))
    whh_b = jnp.zeros((Hp, 4 * Hp), jnp.float32).at[:Hh].set(
        pad_gate_cols(u(ks[8], (Hh, 4 * Hh))))

    # decoder weight as one (2*Hp, Apad) matrix: rows [0,Hp) act on the fwd
    # hidden half, rows [Hp,2*Hp) on the bwd half; zero rows for padded hidden
    # lanes, zero cols + bias -1e30 for padded alphabet lanes.
    dec_w = jnp.zeros((2 * Hp, Apad), jnp.float32)
    dec_w = dec_w.at[:Hh, :A].set(u(ks[9], (Hh, A)))
    dec_w = dec_w.at[Hp:Hp + Hh, :A].set(u(ks[10], (Hh, A)))
    dec_b = jnp.full((1, Apad), NEG_INF, jnp.float32).at[:, :A].set(u(ks[11], (1, A)))

    return {
        "embedding": emb,
        "lin1_w": u(ks[12], (E, E)),
        "lin1_b": u(ks[13], (1, E)),
        "wih_fb": wih_fb, "b_fb": b_fb,
        "whh_f": whh_f, "whh_b": whh_b,
        "dec_w": dec_w, "dec_b": dec_b,
    }


if __name__ == "__main__":
    embedding_dim = 32
    hidden_dim = 32          # per-direction hidden = 16 (lane-padded to 128 in-kernel)
    vocab_size = 257
    alphabet_size = 28
    B, T = 2, 8

    key = jax.random.PRNGKey(0)
    kp, kx = jax.random.split(key)
    params = init_params(kp, embedding_dim, hidden_dim, vocab_size, alphabet_size)

    x_lens = jnp.array([8, 5], dtype=jnp.int32)              # max len == T
    x_ids = jax.random.randint(kx, (B, T), 1, vocab_size, dtype=jnp.int32)
    pad_mask = jnp.arange(T)[None, :] < x_lens[:, None]
    x_ids = jnp.where(pad_mask, x_ids, 0)                    # padding token id = 0

    fwd = jax.jit(functools.partial(asr_forward, alphabet_size=alphabet_size))
    log_probs = fwd(params, x_ids, x_lens)
    jax.block_until_ready(log_probs)

    assert log_probs.shape == (B, T, alphabet_size)
    assert bool(jnp.all(jnp.isfinite(log_probs)))
    print("KERNEL_OK")
</pallas_src>

<mosaic_0001>
module attributes {stable_mosaic.version = 11 : i64} {
  func.func @asr_fused_kernel(%arg0: memref<64x32xf32, #tpu.memory_space<vmem>>, %arg1: memref<8x1xi32, #tpu.memory_space<vmem>>, %arg2: memref<32x32xf32, #tpu.memory_space<vmem>>, %arg3: memref<1x32xf32, #tpu.memory_space<vmem>>, %arg4: memref<32x1024xf32, #tpu.memory_space<vmem>>, %arg5: memref<1x1024xf32, #tpu.memory_space<vmem>>, %arg6: memref<128x512xf32, #tpu.memory_space<vmem>>, %arg7: memref<128x512xf32, #tpu.memory_space<vmem>>, %arg8: memref<256x128xf32, #tpu.memory_space<vmem>>, %arg9: memref<1x128xf32, #tpu.memory_space<vmem>>, %arg10: memref<64x128xf32, #tpu.memory_space<vmem>>, %arg11: memref<64x1024xf32, #tpu.memory_space<vmem>>, %arg12: memref<64x256xf32, #tpu.memory_space<vmem>>) attributes {dimension_semantics = [], scalar_prefetch = 0 : i64, scratch_operands = 2 : i64, tpu.core_type = #tpu.core_type<tc>} {
    %c0 = arith.constant 0 : index
    %c0_0 = arith.constant 0 : index
    %0 = vector.load %arg0[%c0, %c0_0] : memref<64x32xf32, #tpu.memory_space<vmem>>, vector<64x32xf32>
    %c0_1 = arith.constant 0 : index
    %c0_2 = arith.constant 0 : index
    %1 = vector.load %arg2[%c0_1, %c0_2] : memref<32x32xf32, #tpu.memory_space<vmem>>, vector<32x32xf32>
    %cst = arith.constant dense<0.000000e+00> : vector<64x32xf32>
    %2 = tpu.matmul %0, %1, %cst {dimension_numbers = #tpu.dot_dimension_numbers<[1], [0], [0], [1], [0, 0, 1, 1], [], []>} : vector<64x32xf32>, vector<32x32xf32>, vector<64x32xf32> -> vector<64x32xf32>
    %c0_3 = arith.constant 0 : index
    %c0_4 = arith.constant 0 : index
    %3 = vector.load %arg3[%c0_3, %c0_4] : memref<1x32xf32, #tpu.memory_space<vmem>>, vector<1x32xf32>
    %4 = vector.broadcast %3 : vector<1x32xf32> to vector<64x32xf32>
    %5 = arith.addf %2, %4 : vector<64x32xf32>
    %cst_5 = arith.constant 0.000000e+00 : f32
    %6 = vector.broadcast %cst_5 : f32 to vector<64x32xf32>
    %7 = arith.maximumf %5, %6 : vector<64x32xf32>
    %c0_6 = arith.constant 0 : index
    %c0_7 = arith.constant 0 : index
    %8 = vector.load %arg4[%c0_6, %c0_7] : memref<32x1024xf32, #tpu.memory_space<vmem>>, vector<32x1024xf32>
    %cst_8 = arith.constant dense<0.000000e+00> : vector<64x1024xf32>
    %9 = tpu.matmul %7, %8, %cst_8 {dimension_numbers = #tpu.dot_dimension_numbers<[1], [0], [0], [1], [0, 0, 1, 1], [], []>} : vector<64x32xf32>, vector<32x1024xf32>, vector<64x1024xf32> -> vector<64x1024xf32>
    %c0_9 = arith.constant 0 : index
    %c0_10 = arith.constant 0 : index
    %10 = vector.load %arg5[%c0_9, %c0_10] : memref<1x1024xf32, #tpu.memory_space<vmem>>, vector<1x1024xf32>
    %11 = vector.broadcast %10 : vector<1x1024xf32> to vector<64x1024xf32>
    %12 = arith.addf %9, %11 : vector<64x1024xf32>
    %c0_11 = arith.constant 0 : index
    %c0_12 = arith.constant 0 : index
    %13 = vector.load %arg11[%c0_11, %c0_12] : memref<64x1024xf32, #tpu.memory_space<vmem>>, vector<64x1024xf32>
    tpu.vector_store %arg11[%c0_11, %c0_12], %12 {strides = array<i32>} : memref<64x1024xf32, #tpu.memory_space<vmem>>, vector<64x1024xf32>,
    %c0_13 = arith.constant 0 : index
    %c0_14 = arith.constant 0 : index
    %14 = vector.load %arg6[%c0_13, %c0_14] : memref<128x512xf32, #tpu.memory_space<vmem>>, vector<128x512xf32>
    %c0_15 = arith.constant 0 : index
    %c0_16 = arith.constant 0 : index
    %15 = vector.load %arg7[%c0_15, %c0_16] : memref<128x512xf32, #tpu.memory_space<vmem>>, vector<128x512xf32>
    %c0_17 = arith.constant 0 : index
    %c0_18 = arith.constant 0 : index
    %16 = vector.load %arg1[%c0_17, %c0_18] : memref<8x1xi32, #tpu.memory_space<vmem>>, vector<8x1xi32>
    %cst_19 = arith.constant 0.000000e+00 : f32
    %17 = vector.broadcast %cst_19 : f32 to vector<8x128xf32>
    %c0_i32 = arith.constant 0 : i32
    %c7_i32 = arith.constant 7 : i32
    %18 = arith.subi %c7_i32, %c0_i32 : i32
    %c8_i32 = arith.constant 8 : i32
    %19 = arith.muli %c0_i32, %c8_i32 : i32
    %20 = tpu.assume_multiple %19, 8 : i32
    %c8_i32_20 = arith.constant 8 : i32
    %21 = arith.muli %18, %c8_i32_20 : i32
    %22 = tpu.assume_multiple %21, 8 : i32
    %23 = arith.index_cast %20 : i32 to index
    %c0_21 = arith.constant 0 : index
    %24 = vector.load %arg11[%23, %c0_21] : memref<64x1024xf32, #tpu.memory_space<vmem>>, vector<8x512xf32>
    %cst_22 = arith.constant dense<0.000000e+00> : vector<8x512xf32>
    %25 = tpu.matmul %17, %14, %cst_22 {dimension_numbers = #tpu.dot_dimension_numbers<[1], [0], [0], [1], [0, 0, 1, 1], [], []>} : vector<8x128xf32>, vector<128x512xf32>, vector<8x512xf32> -> vector<8x512xf32>
    %26 = arith.addf %24, %25 : vector<8x512xf32>
    %27 = arith.index_cast %22 : i32 to index
    %c512 = arith.constant 512 : index
    %28 = vector.load %arg11[%27, %c512] : memref<64x1024xf32, #tpu.memory_space<vmem>>, vector<8x512xf32>
    %cst_23 = arith.constant dense<0.000000e+00> : vector<8x512xf32>
    %29 = tpu.matmul %17, %15, %cst_23 {dimension_numbers = #tpu.dot_dimension_numbers<[1], [0], [0], [1], [0, 0, 1, 1], [], []>} : vector<8x128xf32>, vector<128x512xf32>, vector<8x512xf32> -> vector<8x512xf32>
    %30 = arith.addf %28, %29 : vector<8x512xf32>
    %31 = vector.extract_strided_slice %26 {offsets = [0, 0], sizes = [8, 128], strides = [1, 1]} : vector<8x512xf32> to vector<8x128xf32>
    %32 = arith.negf %31 : vector<8x128xf32>
    %33 = math.exp %32 : vector<8x128xf32>
    %cst_24 = arith.constant 1.000000e+00 : f32
    %34 = vector.broadcast %cst_24 : f32 to vector<8x128xf32>
    %35 = arith.addf %34, %33 : vector<8x128xf32>
    %36 = arith.divf %34, %35 : vector<8x128xf32>
    %37 = vector.extract_strided_slice %26 {offsets = [0, 128], sizes = [8, 128], strides = [1, 1]} : vector<8x512xf32> to vector<8x128xf32>
    %38 = arith.negf %37 : vector<8x128xf32>
    %39 = math.exp %38 : vector<8x128xf32>
    %cst_25 = arith.constant 1.000000e+00 : f32
    %40 = vector.broadcast %cst_25 : f32 to vector<8x128xf32>
    %41 = arith.addf %40, %39 : vector<8x128xf32>
    %42 = arith.divf %40, %41 : vector<8x128xf32>
    %43 = vector.extract_strided_slice %26 {offsets = [0, 256], sizes = [8, 128], strides = [1, 1]} : vector<8x512xf32> to vector<8x128xf32>
    %44 = math.tanh %43 : vector<8x128xf32>
    %45 = vector.extract_strided_slice %26 {offsets = [0, 384], sizes = [8, 128], strides = [1, 1]} : vector<8x512xf32> to vector<8x128xf32>
    %46 = arith.negf %45 : vector<8x128xf32>
    %47 = math.exp %46 : vector<8x128xf32>
    %cst_26 = arith.constant 1.000000e+00 : f32
    %48 = vector.broadcast %cst_26 : f32 to vector<8x128xf32>
    %49 = arith.addf %48, %47 : vector<8x128xf32>
    %50 = arith.divf %48, %49 : vector<8x128xf32>
    %51 = arith.mulf %42, %17 : vector<8x128xf32>
    %52 = arith.mulf %36, %44 : vector<8x128xf32>
    %53 = arith.addf %51, %52 : vector<8x128xf32>
    %54 = math.tanh %53 : vector<8x128xf32>
    %55 = arith.mulf %50, %54 : vector<8x128xf32>
    %56 = vector.extract_strided_slice %30 {offsets = [0, 0], sizes = [8, 128], strides = [1, 1]} : vector<8x512xf32> to vector<8x128xf32>
    %57 = arith.negf %56 : vector<8x128xf32>
    %58 = math.exp %57 : vector<8x128xf32>
    %cst_27 = arith.constant 1.000000e+00 : f32
    %59 = vector.broadcast %cst_27 : f32 to vector<8x128xf32>
    %60 = arith.addf %59, %58 : vector<8x128xf32>
    %61 = arith.divf %59, %60 : vector<8x128xf32>
    %62 = vector.extract_strided_slice %30 {offsets = [0, 128], sizes = [8, 128], strides = [1, 1]} : vector<8x512xf32> to vector<8x128xf32>
    %63 = arith.negf %62 : vector<8x128xf32>
    %64 = math.exp %63 : vector<8x128xf32>
    %cst_28 = arith.constant 1.000000e+00 : f32
    %65 = vector.broadcast %cst_28 : f32 to vector<8x128xf32>
    %66 = arith.addf %65, %64 : vector<8x128xf32>
    %67 = arith.divf %65, %66 : vector<8x128xf32>
    %68 = vector.extract_strided_slice %30 {offsets = [0, 256], sizes = [8, 128], strides = [1, 1]} : vector<8x512xf32> to vector<8x128xf32>
    %69 = math.tanh %68 : vector<8x128xf32>
    %70 = vector.extract_strided_slice %30 {offsets = [0, 384], sizes = [8, 128], strides = [1, 1]} : vector<8x512xf32> to vector<8x128xf32>
    %71 = arith.negf %70 : vector<8x128xf32>
    %72 = math.exp %71 : vector<8x128xf32>
    %cst_29 = arith.constant 1.000000e+00 : f32
    %73 = vector.broadcast %cst_29 : f32 to vector<8x128xf32>
    %74 = arith.addf %73, %72 : vector<8x128xf32>
    %75 = arith.divf %73, %74 : vector<8x128xf32>
    %76 = arith.mulf %67, %17 : vector<8x128xf32>
    %77 = arith.mulf %61, %69 : vector<8x128xf32>
    %78 = arith.addf %76, %77 : vector<8x128xf32>
    %79 = math.tanh %78 : vector<8x128xf32>
    %80 = arith.mulf %75, %79 : vector<8x128xf32>
    %81 = vector.broadcast %c0_i32 : i32 to vector<8x1xi32>
    %82 = arith.cmpi slt, %81, %16 : vector<8x1xi32>
    %83 = vector.broadcast %18 : i32 to vector<8x1xi32>
    %84 = arith.cmpi slt, %83, %16 : vector<8x1xi32>
    %cst_30 = arith.constant 0.000000e+00 : f32
    %85 = vector.shape_cast %82 : vector<8x1xi1> to vector<8x1xi1>
    %86 = vector.broadcast %85 : vector<8x1xi1> to vector<8x128xi1>
    %87 = vector.broadcast %cst_30 : f32 to vector<8x128xf32>
    %88 = arith.select %86, %55, %87 : vector<8x128xi1>, vector<8x128xf32>
    %89 = arith.index_cast %20 : i32 to index
    %c0_31 = arith.constant 0 : index
    %90 = vector.load %arg12[%89, %c0_31] : memref<64x256xf32, #tpu.memory_space<vmem>>, vector<8x128xf32>
    tpu.vector_store %arg12[%89, %c0_31], %88 {strides = array<i32>} : memref<64x256xf32, #tpu.memory_space<vmem>>, vector<8x128xf32>,
    %cst_32 = arith.constant 0.000000e+00 : f32
    %91 = vector.shape_cast %84 : vector<8x1xi1> to vector<8x1xi1>
    %92 = vector.broadcast %91 : vector<8x1xi1> to vector<8x128xi1>
    %93 = vector.broadcast %cst_32 : f32 to vector<8x128xf32>
    %94 = arith.select %92, %80, %93 : vector<8x128xi1>, vector<8x128xf32>
    %95 = arith.index_cast %22 : i32 to index
    %c128 = arith.constant 128 : index
    %96 = vector.load %arg12[%95, %c128] : memref<64x256xf32, #tpu.memory_space<vmem>>, vector<8x128xf32>
    tpu.vector_store %arg12[%95, %c128], %94 {strides = array<i32>} : memref<64x256xf32, #tpu.memory_space<vmem>>, vector<8x128xf32>,
    %97 = vector.shape_cast %82 : vector<8x1xi1> to vector<8x1xi1>
    %98 = vector.broadcast %97 : vector<8x1xi1> to vector<8x128xi1>
    %99 = arith.select %98, %55, %17 : vector<8x128xi1>, vector<8x128xf32>
    %100 = vector.shape_cast %82 : vector<8x1xi1> to vector<8x1xi1>
    %101 = vector.broadcast %100 : vector<8x1xi1> to vector<8x128xi1>
    %102 = arith.select %101, %53, %17 : vector<8x128xi1>, vector<8x128xf32>
    %103 = vector.shape_cast %84 : vector<8x1xi1> to vector<8x1xi1>
    %104 = vector.broadcast %103 : vector<8x1xi1> to vector<8x128xi1>
    %105 = arith.select %104, %80, %17 : vector<8x128xi1>, vector<8x128xf32>
    %106 = vector.shape_cast %84 : vector<8x1xi1> to vector<8x1xi1>
    %107 = vector.broadcast %106 : vector<8x1xi1> to vector<8x128xi1>
    %108 = arith.select %107, %78, %17 : vector<8x128xi1>, vector<8x128xf32>
    %c1_i32 = arith.constant 1 : i32
    %c7_i32_33 = arith.constant 7 : i32
    %109 = arith.subi %c7_i32_33, %c1_i32 : i32
    %c8_i32_34 = arith.constant 8 : i32
    %110 = arith.muli %c1_i32, %c8_i32_34 : i32
    %111 = tpu.assume_multiple %110, 8 : i32
    %c8_i32_35 = arith.constant 8 : i32
    %112 = arith.muli %109, %c8_i32_35 : i32
    %113 = tpu.assume_multiple %112, 8 : i32
    %114 = arith.index_cast %111 : i32 to index
    %c0_36 = arith.constant 0 : index
    %115 = vector.load %arg11[%114, %c0_36] : memref<64x1024xf32, #tpu.memory_space<vmem>>, vector<8x512xf32>
    %cst_37 = arith.constant dense<0.000000e+00> : vector<8x512xf32>
    %116 = tpu.matmul %99, %14, %cst_37 {dimension_numbers = #tpu.dot_dimension_numbers<[1], [0], [0], [1], [0, 0, 1, 1], [], []>} : vector<8x128xf32>, vector<128x512xf32>, vector<8x512xf32> -> vector<8x512xf32>
    %117 = arith.addf %115, %116 : vector<8x512xf32>
    %118 = arith.index_cast %113 : i32 to index
    %c512_38 = arith.constant 512 : index
    %119 = vector.load %arg11[%118, %c512_38] : memref<64x1024xf32, #tpu.memory_space<vmem>>, vector<8x512xf32>
    %cst_39 = arith.constant dense<0.000000e+00> : vector<8x512xf32>
    %120 = tpu.matmul %105, %15, %cst_39 {dimension_numbers = #tpu.dot_dimension_numbers<[1], [0], [0], [1], [0, 0, 1, 1], [], []>} : vector<8x128xf32>, vector<128x512xf32>, vector<8x512xf32> -> vector<8x512xf32>
    %121 = arith.addf %119, %120 : vector<8x512xf32>
    %122 = vector.extract_strided_slice %117 {offsets = [0, 0], sizes = [8, 128], strides = [1, 1]} : vector<8x512xf32> to vector<8x128xf32>
    %123 = arith.negf %122 : vector<8x128xf32>
    %124 = math.exp %123 : vector<8x128xf32>
    %cst_40 = arith.constant 1.000000e+00 : f32
    %125 = vector.broadcast %cst_40 : f32 to vector<8x128xf32>
    %126 = arith.addf %125, %124 : vector<8x128xf32>
    %127 = arith.divf %125, %126 : vector<8x128xf32>
    %128 = vector.extract_strided_slice %117 {offsets = [0, 128], sizes = [8, 128], strides = [1, 1]} : vector<8x512xf32> to vector<8x128xf32>
    %129 = arith.negf %128 : vector<8x128xf32>
    %130 = math.exp %129 : vector<8x128xf32>
    %cst_41 = arith.constant 1.000000e+00 : f32
    %131 = vector.broadcast %cst_41 : f32 to vector<8x128xf32>
    %132 = arith.addf %131, %130 : vector<8x128xf32>
    %133 = arith.divf %131, %132 : vector<8x128xf32>
    %134 = vector.extract_strided_slice %117 {offsets = [0, 256], sizes = [8, 128], strides = [1, 1]} : vector<8x512xf32> to vector<8x128xf32>
    %135 = math.tanh %134 : vector<8x128xf32>
    %136 = vector.extract_strided_slice %117 {offsets = [0, 384], sizes = [8, 128], strides = [1, 1]} : vector<8x512xf32> to vector<8x128xf32>
    %137 = arith.negf %136 : vector<8x128xf32>
    %138 = math.exp %137 : vector<8x128xf32>
    %cst_42 = arith.constant 1.000000e+00 : f32
    %139 = vector.broadcast %cst_42 : f32 to vector<8x128xf32>
    %140 = arith.addf %139, %138 : vector<8x128xf32>
    %141 = arith.divf %139, %140 : vector<8x128xf32>
    %142 = arith.mulf %133, %102 : vector<8x128xf32>
    %143 = arith.mulf %127, %135 : vector<8x128xf32>
    %144 = arith.addf %142, %143 : vector<8x128xf32>
    %145 = math.tanh %144 : vector<8x128xf32>
    %146 = arith.mulf %141, %145 : vector<8x128xf32>
    %147 = vector.extract_strided_slice %121 {offsets = [0, 0], sizes = [8, 128], strides = [1, 1]} : vector<8x512xf32> to vector<8x128xf32>
    %148 = arith.negf %147 : vector<8x128xf32>
    %149 = math.exp %148 : vector<8x128xf32>
    %cst_43 = arith.constant 1.000000e+00 : f32
    %150 = vector.broadcast %cst_43 : f32 to vector<8x128xf32>
    %151 = arith.addf %150, %149 : vector<8x128xf32>
    %152 = arith.divf %150, %151 : vector<8x128xf32>
    %153 = vector.extract_strided_slice %121 {offsets = [0, 128], sizes = [8, 128], strides = [1, 1]} : vector<8x512xf32> to vector<8x128xf32>
    %154 = arith.negf %153 : vector<8x128xf32>
    %155 = math.exp %154 : vector<8x128xf32>
    %cst_44 = arith.constant 1.000000e+00 : f32
    %156 = vector.broadcast %cst_44 : f32 to vector<8x128xf32>
    %157 = arith.addf %156, %155 : vector<8x128xf32>
    %158 = arith.divf %156, %157 : vector<8x128xf32>
    %159 = vector.extract_strided_slice %121 {offsets = [0, 256], sizes = [8, 128], strides = [1, 1]} : vector<8x512xf32> to vector<8x128xf32>
    %160 = math.tanh %159 : vector<8x128xf32>
    %161 = vector.extract_strided_slice %121 {offsets = [0, 384], sizes = [8, 128], strides = [1, 1]} : vector<8x512xf32> to vector<8x128xf32>
    %162 = arith.negf %161 : vector<8x128xf32>
    %163 = math.exp %162 : vector<8x128xf32>
    %cst_45 = arith.constant 1.000000e+00 : f32
    %164 = vector.broadcast %cst_45 : f32 to vector<8x128xf32>
    %165 = arith.addf %164, %163 : vector<8x128xf32>
    %166 = arith.divf %164, %165 : vector<8x128xf32>
    %167 = arith.mulf %158, %108 : vector<8x128xf32>
    %168 = arith.mulf %152, %160 : vector<8x128xf32>
    %169 = arith.addf %167, %168 : vector<8x128xf32>
    %170 = math.tanh %169 : vector<8x128xf32>
    %171 = arith.mulf %166, %170 : vector<8x128xf32>
    %172 = vector.broadcast %c1_i32 : i32 to vector<8x1xi32>
    %173 = arith.cmpi slt, %172, %16 : vector<8x1xi32>
    %174 = vector.broadcast %109 : i32 to vector<8x1xi32>
    %175 = arith.cmpi slt, %174, %16 : vector<8x1xi32>
    %cst_46 = arith.constant 0.000000e+00 : f32
    %176 = vector.shape_cast %173 : vector<8x1xi1> to vector<8x1xi1>
    %177 = vector.broadcast %176 : vector<8x1xi1> to vector<8x128xi1>
    %178 = vector.broadcast %cst_46 : f32 to vector<8x128xf32>
    %179 = arith.select %177, %146, %178 : vector<8x128xi1>, vector<8x128xf32>
    %180 = arith.index_cast %111 : i32 to index
    %c0_47 = arith.constant 0 : index
    %181 = vector.load %arg12[%180, %c0_47] : memref<64x256xf32, #tpu.memory_space<vmem>>, vector<8x128xf32>
    tpu.vector_store %arg12[%180, %c0_47], %179 {strides = array<i32>} : memref<64x256xf32, #tpu.memory_space<vmem>>, vector<8x128xf32>,
    %cst_48 = arith.constant 0.000000e+00 : f32
    %182 = vector.shape_cast %175 : vector<8x1xi1> to vector<8x1xi1>
    %183 = vector.broadcast %182 : vector<8x1xi1> to vector<8x128xi1>
    %184 = vector.broadcast %cst_48 : f32 to vector<8x128xf32>
    %185 = arith.select %183, %171, %184 : vector<8x128xi1>, vector<8x128xf32>
    %186 = arith.index_cast %113 : i32 to index
    %c128_49 = arith.constant 128 : index
    %187 = vector.load %arg12[%186, %c128_49] : memref<64x256xf32, #tpu.memory_space<vmem>>, vector<8x128xf32>
    tpu.vector_store %arg12[%186, %c128_49], %185 {strides = array<i32>} : memref<64x256xf32, #tpu.memory_space<vmem>>, vector<8x128xf32>,
    %188 = vector.shape_cast %173 : vector<8x1xi1> to vector<8x1xi1>
    %189 = vector.broadcast %188 : vector<8x1xi1> to vector<8x128xi1>
    %190 = arith.select %189, %146, %99 : vector<8x128xi1>, vector<8x128xf32>
    %191 = vector.shape_cast %173 : vector<8x1xi1> to vector<8x1xi1>
    %192 = vector.broadcast %191 : vector<8x1xi1> to vector<8x128xi1>
    %193 = arith.select %192, %144, %102 : vector<8x128xi1>, vector<8x128xf32>
    %194 = vector.shape_cast %175 : vector<8x1xi1> to vector<8x1xi1>
    %195 = vector.broadcast %194 : vector<8x1xi1> to vector<8x128xi1>
    %196 = arith.select %195, %171, %105 : vector<8x128xi1>, vector<8x128xf32>
    %197 = vector.shape_cast %175 : vector<8x1xi1> to vector<8x1xi1>
    %198 = vector.broadcast %197 : vector<8x1xi1> to vector<8x128xi1>
    %199 = arith.select %198, %169, %108 : vector<8x128xi1>, vector<8x128xf32>
    %c2_i32 = arith.constant 2 : i32
    %c7_i32_50 = arith.constant 7 : i32
    %200 = arith.subi %c7_i32_50, %c2_i32 : i32
    %c8_i32_51 = arith.constant 8 : i32
    %201 = arith.muli %c2_i32, %c8_i32_51 : i32
    %202 = tpu.assume_multiple %201, 8 : i32
    %c8_i32_52 = arith.constant 8 : i32
    %203 = arith.muli %200, %c8_i32_52 : i32
    %204 = tpu.assume_multiple %203, 8 : i32
    %205 = arith.index_cast %202 : i32 to index
    %c0_53 = arith.constant 0 : index
    %206 = vector.load %arg11[%205, %c0_53] : memref<64x1024xf32, #tpu.memory_space<vmem>>, vector<8x512xf32>
    %cst_54 = arith.constant dense<0.000000e+00> : vector<8x512xf32>
    %207 = tpu.matmul %190, %14, %cst_54 {dimension_numbers = #tpu.dot_dimension_numbers<[1], [0], [0], [1], [0, 0, 1, 1], [], []>} : vector<8x128xf32>, vector<128x512xf32>, vector<8x512xf32> -> vector<8x512xf32>
    %208 = arith.addf %206, %207 : vector<8x512xf32>
    %209 = arith.index_cast %204 : i32 to index
    %c512_55 = arith.constant 512 : index
    %210 = vector.load %arg11[%209, %c512_55] : memref<64x1024xf32, #tpu.memory_space<vmem>>, vector<8x512xf32>
    %cst_56 = arith.constant dense<0.000000e+00> : vector<8x512xf32>
    %211 = tpu.matmul %196, %15, %cst_56 {dimension_numbers = #tpu.dot_dimension_numbers<[1], [0], [0], [1], [0, 0, 1, 1], [], []>} : vector<8x128xf32>, vector<128x512xf32>, vector<8x512xf32> -> vector<8x512xf32>
    %212 = arith.addf %210, %211 : vector<8x512xf32>
    %213 = vector.extract_strided_slice %208 {offsets = [0, 0], sizes = [8, 128], strides = [1, 1]} : vector<8x512xf32> to vector<8x128xf32>
    %214 = arith.negf %213 : vector<8x128xf32>
    %215 = math.exp %214 : vector<8x128xf32>
    %cst_57 = arith.constant 1.000000e+00 : f32
    %216 = vector.broadcast %cst_57 : f32 to vector<8x128xf32>
    %217 = arith.addf %216, %215 : vector<8x128xf32>
    %218 = arith.divf %216, %217 : vector<8x128xf32>
    %219 = vector.extract_strided_slice %208 {offsets = [0, 128], sizes = [8, 128], strides = [1, 1]} : vector<8x512xf32> to vector<8x128xf32>
    %220 = arith.negf %219 : vector<8x128xf32>
    %221 = math.exp %220 : vector<8x128xf32>
    %cst_58 = arith.constant 1.000000e+00 : f32
    %222 = vector.broadcast %cst_58 : f32 to vector<8x128xf32>
    %223 = arith.addf %222, %221 : vector<8x128xf32>
    %224 = arith.divf %222, %223 : vector<8x128xf32>
    %225 = vector.extract_strided_slice %208 {offsets = [0, 256], sizes = [8, 128], strides = [1, 1]} : vector<8x512xf32> to vector<8x128xf32>
    %226 = math.tanh %225 : vector<8x128xf32>
    %227 = vector.extract_strided_slice %208 {offsets = [0, 384], sizes = [8, 128], strides = [1, 1]} : vector<8x512xf32> to vector<8x128xf32>
    %228 = arith.negf %227 : vector<8x128xf32>
    %229 = math.exp %228 : vector<8x128xf32>
    %cst_59 = arith.constant 1.000000e+00 : f32
    %230 = vector.broadcast %cst_59 : f32 to vector<8x128xf32>
    %231 = arith.addf %230, %229 : vector<8x128xf32>
    %232 = arith.divf %230, %231 : vector<8x128xf32>
    %233 = arith.mulf %224, %193 : vector<8x128xf32>
    %234 = arith.mulf %218, %226 : vector<8x128xf32>
    %235 = arith.addf %233, %234 : vector<8x128xf32>
    %236 = math.tanh %235 : vector<8x128xf32>
    %237 = arith.mulf %232, %236 : vector<8x128xf32>
    %238 = vector.extract_strided_slice %212 {offsets = [0, 0], sizes = [8, 128], strides = [1, 1]} : vector<8x512xf32> to vector<8x128xf32>
    %239 = arith.negf %238 : vector<8x128xf32>
    %240 = math.exp %239 : vector<8x128xf32>
    %cst_60 = arith.constant 1.000000e+00 : f32
    %241 = vector.broadcast %cst_60 : f32 to vector<8x128xf32>
    %242 = arith.addf %241, %240 : vector<8x128xf32>
    %243 = arith.divf %241, %242 : vector<8x128xf32>
    %244 = vector.extract_strided_slice %212 {offsets = [0, 128], sizes = [8, 128], strides = [1, 1]} : vector<8x512xf32> to vector<8x128xf32>
    %245 = arith.negf %244 : vector<8x128xf32>
    %246 = math.exp %245 : vector<8x128xf32>
    %cst_61 = arith.constant 1.000000e+00 : f32
    %247 = vector.broadcast %cst_61 : f32 to vector<8x128xf32>
    %248 = arith.addf %247, %246 : vector<8x128xf32>
    %249 = arith.divf %247, %248 : vector<8x128xf32>
    %250 = vector.extract_strided_slice %212 {offsets = [0, 256], sizes = [8, 128], strides = [1, 1]} : vector<8x512xf32> to vector<8x128xf32>
    %251 = math.tanh %250 : vector<8x128xf32>
    %252 = vector.extract_strided_slice %212 {offsets = [0, 384], sizes = [8, 128], strides = [1, 1]} : vector<8x512xf32> to vector<8x128xf32>
    %253 = arith.negf %252 : vector<8x128xf32>
    %254 = math.exp %253 : vector<8x128xf32>
    %cst_62 = arith.constant 1.000000e+00 : f32
    %255 = vector.broadcast %cst_62 : f32 to vector<8x128xf32>
    %256 = arith.addf %255, %254 : vector<8x128xf32>
    %257 = arith.divf %255, %256 : vector<8x128xf32>
    %258 = arith.mulf %249, %199 : vector<8x128xf32>
    %259 = arith.mulf %243, %251 : vector<8x128xf32>
    %260 = arith.addf %258, %259 : vector<8x128xf32>
    %261 = math.tanh %260 : vector<8x128xf32>
    %262 = arith.mulf %257, %261 : vector<8x128xf32>
    %263 = vector.broadcast %c2_i32 : i32 to vector<8x1xi32>
    %264 = arith.cmpi slt, %263, %16 : vector<8x1xi32>
    %265 = vector.broadcast %200 : i32 to vector<8x1xi32>
    %266 = arith.cmpi slt, %265, %16 : vector<8x1xi32>
    %cst_63 = arith.constant 0.000000e+00 : f32
    %267 = vector.shape_cast %264 : vector<8x1xi1> to vector<8x1xi1>
    %268 = vector.broadcast %267 : vector<8x1xi1> to vector<8x128xi1>
    %269 = vector.broadcast %cst_63 : f32 to vector<8x128xf32>
    %270 = arith.select %268, %237, %269 : vector<8x128xi1>, vector<8x128xf32>
    %271 = arith.index_cast %202 : i32 to index
    %c0_64 = arith.constant 0 : index
    %272 = vector.load %arg12[%271, %c0_64] : memref<64x256xf32, #tpu.memory_space<vmem>>, vector<8x128xf32>
    tpu.vector_store %arg12[%271, %c0_64], %270 {strides = array<i32>} : memref<64x256xf32, #tpu.memory_space<vmem>>, vector<8x128xf32>,
    %cst_65 = arith.constant 0.000000e+00 : f32
    %273 = vector.shape_cast %266 : vector<8x1xi1> to vector<8x1xi1>
    %274 = vector.broadcast %273 : vector<8x1xi1> to vector<8x128xi1>
    %275 = vector.broadcast %cst_65 : f32 to vector<8x128xf32>
    %276 = arith.select %274, %262, %275 : vector<8x128xi1>, vector<8x128xf32>
    %277 = arith.index_cast %204 : i32 to index
    %c128_66 = arith.constant 128 : index
    %278 = vector.load %arg12[%277, %c128_66] : memref<64x256xf32, #tpu.memory_space<vmem>>, vector<8x128xf32>
    tpu.vector_store %arg12[%277, %c128_66], %276 {strides = array<i32>} : memref<64x256xf32, #tpu.memory_space<vmem>>, vector<8x128xf32>,
    %279 = vector.shape_cast %264 : vector<8x1xi1> to vector<8x1xi1>
    %280 = vector.broadcast %279 : vector<8x1xi1> to vector<8x128xi1>
    %281 = arith.select %280, %237, %190 : vector<8x128xi1>, vector<8x128xf32>
    %282 = vector.shape_cast %264 : vector<8x1xi1> to vector<8x1xi1>
    %283 = vector.broadcast %282 : vector<8x1xi1> to vector<8x128xi1>
    %284 = arith.select %283, %235, %193 : vector<8x128xi1>, vector<8x128xf32>
    %285 = vector.shape_cast %266 : vector<8x1xi1> to vector<8x1xi1>
    %286 = vector.broadcast %285 : vector<8x1xi1> to vector<8x128xi1>
    %287 = arith.select %286, %262, %196 : vector<8x128xi1>, vector<8x128xf32>
    %288 = vector.shape_cast %266 : vector<8x1xi1> to vector<8x1xi1>
    %289 = vector.broadcast %288 : vector<8x1xi1> to vector<8x128xi1>
    %290 = arith.select %289, %260, %199 : vector<8x128xi1>, vector<8x128xf32>
    %c3_i32 = arith.constant 3 : i32
    %c7_i32_67 = arith.constant 7 : i32
    %291 = arith.subi %c7_i32_67, %c3_i32 : i32
    %c8_i32_68 = arith.constant 8 : i32
    %292 = arith.muli %c3_i32, %c8_i32_68 : i32
    %293 = tpu.assume_multiple %292, 8 : i32
    %c8_i32_69 = arith.constant 8 : i32
    %294 = arith.muli %291, %c8_i32_69 : i32
    %295 = tpu.assume_multiple %294, 8 : i32
    %296 = arith.index_cast %293 : i32 to index
    %c0_70 = arith.constant 0 : index
    %297 = vector.load %arg11[%296, %c0_70] : memref<64x1024xf32, #tpu.memory_space<vmem>>, vector<8x512xf32>
    %cst_71 = arith.constant dense<0.000000e+00> : vector<8x512xf32>
    %298 = tpu.matmul %281, %14, %cst_71 {dimension_numbers = #tpu.dot_dimension_numbers<[1], [0], [0], [1], [0, 0, 1, 1], [], []>} : vector<8x128xf32>, vector<128x512xf32>, vector<8x512xf32> -> vector<8x512xf32>
    %299 = arith.addf %297, %298 : vector<8x512xf32>
    %300 = arith.index_cast %295 : i32 to index
    %c512_72 = arith.constant 512 : index
    %301 = vector.load %arg11[%300, %c512_72] : memref<64x1024xf32, #tpu.memory_space<vmem>>, vector<8x512xf32>
    %cst_73 = arith.constant dense<0.000000e+00> : vector<8x512xf32>
    %302 = tpu.matmul %287, %15, %cst_73 {dimension_numbers = #tpu.dot_dimension_numbers<[1], [0], [0], [1], [0, 0, 1, 1], [], []>} : vector<8x128xf32>, vector<128x512xf32>, vector<8x512xf32> -> vector<8x512xf32>
    %303 = arith.addf %301, %302 : vector<8x512xf32>
    %304 = vector.extract_strided_slice %299 {offsets = [0, 0], sizes = [8, 128], strides = [1, 1]} : vector<8x512xf32> to vector<8x128xf32>
    %305 = arith.negf %304 : vector<8x128xf32>
    %306 = math.exp %305 : vector<8x128xf32>
    %cst_74 = arith.constant 1.000000e+00 : f32
    %307 = vector.broadcast %cst_74 : f32 to vector<8x128xf32>
    %308 = arith.addf %307, %306 : vector<8x128xf32>
    %309 = arith.divf %307, %308 : vector<8x128xf32>
    %310 = vector.extract_strided_slice %299 {offsets = [0, 128], sizes = [8, 128], strides = [1, 1]} : vector<8x512xf32> to vector<8x128xf32>
    %311 = arith.negf %310 : vector<8x128xf32>
    %312 = math.exp %311 : vector<8x128xf32>
    %cst_75 = arith.constant 1.000000e+00 : f32
    %313 = vector.broadcast %cst_75 : f32 to vector<8x128xf32>
    %314 = arith.addf %313, %312 : vector<8x128xf32>
    %315 = arith.divf %313, %314 : vector<8x128xf32>
    %316 = vector.extract_strided_slice %299 {offsets = [0, 256], sizes = [8, 128], strides = [1, 1]} : vector<8x512xf32> to vector<8x128xf32>
    %317 = math.tanh %316 : vector<8x128xf32>
    %318 = vector.extract_strided_slice %299 {offsets = [0, 384], sizes = [8, 128], strides = [1, 1]} : vector<8x512xf32> to vector<8x128xf32>
    %319 = arith.negf %318 : vector<8x128xf32>
    %320 = math.exp %319 : vector<8x128xf32>
    %cst_76 = arith.constant 1.000000e+00 : f32
    %321 = vector.broadcast %cst_76 : f32 to vector<8x128xf32>
    %322 = arith.addf %321, %320 : vector<8x128xf32>
    %323 = arith.divf %321, %322 : vector<8x128xf32>
    %324 = arith.mulf %315, %284 : vector<8x128xf32>
    %325 = arith.mulf %309, %317 : vector<8x128xf32>
    %326 = arith.addf %324, %325 : vector<8x128xf32>
    %327 = math.tanh %326 : vector<8x128xf32>
    %328 = arith.mulf %323, %327 : vector<8x128xf32>
    %329 = vector.extract_strided_slice %303 {offsets = [0, 0], sizes = [8, 128], strides = [1, 1]} : vector<8x512xf32> to vector<8x128xf32>
    %330 = arith.negf %329 : vector<8x128xf32>
    %331 = math.exp %330 : vector<8x128xf32>
    %cst_77 = arith.constant 1.000000e+00 : f32
    %332 = vector.broadcast %cst_77 : f32 to vector<8x128xf32>
    %333 = arith.addf %332, %331 : vector<8x128xf32>
    %334 = arith.divf %332, %333 : vector<8x128xf32>
    %335 = vector.extract_strided_slice %303 {offsets = [0, 128], sizes = [8, 128], strides = [1, 1]} : vector<8x512xf32> to vector<8x128xf32>
    %336 = arith.negf %335 : vector<8x128xf32>
    %337 = math.exp %336 : vector<8x128xf32>
    %cst_78 = arith.constant 1.000000e+00 : f32
    %338 = vector.broadcast %cst_78 : f32 to vector<8x128xf32>
    %339 = arith.addf %338, %337 : vector<8x128xf32>
    %340 = arith.divf %338, %339 : vector<8x128xf32>
    %341 = vector.extract_strided_slice %303 {offsets = [0, 256], sizes = [8, 128], strides = [1, 1]} : vector<8x512xf32> to vector<8x128xf32>
    %342 = math.tanh %341 : vector<8x128xf32>
    %343 = vector.extract_strided_slice %303 {offsets = [0, 384], sizes = [8, 128], strides = [1, 1]} : vector<8x512xf32> to vector<8x128xf32>
    %344 = arith.negf %343 : vector<8x128xf32>
    %345 = math.exp %344 : vector<8x128xf32>
    %cst_79 = arith.constant 1.000000e+00 : f32
    %346 = vector.broadcast %cst_79 : f32 to vector<8x128xf32>
    %347 = arith.addf %346, %345 : vector<8x128xf32>
    %348 = arith.divf %346, %347 : vector<8x128xf32>
    %349 = arith.mulf %340, %290 : vector<8x128xf32>
    %350 = arith.mulf %334, %342 : vector<8x128xf32>
    %351 = arith.addf %349, %350 : vector<8x128xf32>
    %352 = math.tanh %351 : vector<8x128xf32>
    %353 = arith.mulf %348, %352 : vector<8x128xf32>
    %354 = vector.broadcast %c3_i32 : i32 to vector<8x1xi32>
    %355 = arith.cmpi slt, %354, %16 : vector<8x1xi32>
    %356 = vector.broadcast %291 : i32 to vector<8x1xi32>
    %357 = arith.cmpi slt, %356, %16 : vector<8x1xi32>
    %cst_80 = arith.constant 0.000000e+00 : f32
    %358 = vector.shape_cast %355 : vector<8x1xi1> to vector<8x1xi1>
    %359 = vector.broadcast %358 : vector<8x1xi1> to vector<8x128xi1>
    %360 = vector.broadcast %cst_80 : f32 to vector<8x128xf32>
    %361 = arith.select %359, %328, %360 : vector<8x128xi1>, vector<8x128xf32>
    %362 = arith.index_cast %293 : i32 to index
    %c0_81 = arith.constant 0 : index
    %363 = vector.load %arg12[%362, %c0_81] : memref<64x256xf32, #tpu.memory_space<vmem>>, vector<8x128xf32>
    tpu.vector_store %arg12[%362, %c0_81], %361 {strides = array<i32>} : memref<64x256xf32, #tpu.memory_space<vmem>>, vector<8x128xf32>,
    %cst_82 = arith.constant 0.000000e+00 : f32
    %364 = vector.shape_cast %357 : vector<8x1xi1> to vector<8x1xi1>
    %365 = vector.broadcast %364 : vector<8x1xi1> to vector<8x128xi1>
    %366 = vector.broadcast %cst_82 : f32 to vector<8x128xf32>
    %367 = arith.select %365, %353, %366 : vector<8x128xi1>, vector<8x128xf32>
    %368 = arith.index_cast %295 : i32 to index
    %c128_83 = arith.constant 128 : index
    %369 = vector.load %arg12[%368, %c128_83] : memref<64x256xf32, #tpu.memory_space<vmem>>, vector<8x128xf32>
    tpu.vector_store %arg12[%368, %c128_83], %367 {strides = array<i32>} : memref<64x256xf32, #tpu.memory_space<vmem>>, vector<8x128xf32>,
    %370 = vector.shape_cast %355 : vector<8x1xi1> to vector<8x1xi1>
    %371 = vector.broadcast %370 : vector<8x1xi1> to vector<8x128xi1>
    %372 = arith.select %371, %328, %281 : vector<8x128xi1>, vector<8x128xf32>
    %373 = vector.shape_cast %355 : vector<8x1xi1> to vector<8x1xi1>
    %374 = vector.broadcast %373 : vector<8x1xi1> to vector<8x128xi1>
    %375 = arith.select %374, %326, %284 : vector<8x128xi1>, vector<8x128xf32>
    %376 = vector.shape_cast %357 : vector<8x1xi1> to vector<8x1xi1>
    %377 = vector.broadcast %376 : vector<8x1xi1> to vector<8x128xi1>
    %378 = arith.select %377, %353, %287 : vector<8x128xi1>, vector<8x128xf32>
    %379 = vector.shape_cast %357 : vector<8x1xi1> to vector<8x1xi1>
    %380 = vector.broadcast %379 : vector<8x1xi1> to vector<8x128xi1>
    %381 = arith.select %380, %351, %290 : vector<8x128xi1>, vector<8x128xf32>
    %c4_i32 = arith.constant 4 : i32
    %c7_i32_84 = arith.constant 7 : i32
    %382 = arith.subi %c7_i32_84, %c4_i32 : i32
    %c8_i32_85 = arith.constant 8 : i32
    %383 = arith.muli %c4_i32, %c8_i32_85 : i32
    %384 = tpu.assume_multiple %383, 8 : i32
    %c8_i32_86 = arith.constant 8 : i32
    %385 = arith.muli %382, %c8_i32_86 : i32
    %386 = tpu.assume_multiple %385, 8 : i32
    %387 = arith.index_cast %384 : i32 to index
    %c0_87 = arith.constant 0 : index
    %388 = vector.load %arg11[%387, %c0_87] : memref<64x1024xf32, #tpu.memory_space<vmem>>, vector<8x512xf32>
    %cst_88 = arith.constant dense<0.000000e+00> : vector<8x512xf32>
    %389 = tpu.matmul %372, %14, %cst_88 {dimension_numbers = #tpu.dot_dimension_numbers<[1], [0], [0], [1], [0, 0, 1, 1], [], []>} : vector<8x128xf32>, vector<128x512xf32>, vector<8x512xf32> -> vector<8x512xf32>
    %390 = arith.addf %388, %389 : vector<8x512xf32>
    %391 = arith.index_cast %386 : i32 to index
    %c512_89 = arith.constant 512 : index
    %392 = vector.load %arg11[%391, %c512_89] : memref<64x1024xf32, #tpu.memory_space<vmem>>, vector<8x512xf32>
    %cst_90 = arith.constant dense<0.000000e+00> : vector<8x512xf32>
    %393 = tpu.matmul %378, %15, %cst_90 {dimension_numbers = #tpu.dot_dimension_numbers<[1], [0], [0], [1], [0, 0, 1, 1], [], []>} : vector<8x128xf32>, vector<128x512xf32>, vector<8x512xf32> -> vector<8x512xf32>
    %394 = arith.addf %392, %393 : vector<8x512xf32>
    %395 = vector.extract_strided_slice %390 {offsets = [0, 0], sizes = [8, 128], strides = [1, 1]} : vector<8x512xf32> to vector<8x128xf32>
    %396 = arith.negf %395 : vector<8x128xf32>
    %397 = math.exp %396 : vector<8x128xf32>
    %cst_91 = arith.constant 1.000000e+00 : f32
    %398 = vector.broadcast %cst_91 : f32 to vector<8x128xf32>
    %399 = arith.addf %398, %397 : vector<8x128xf32>
    %400 = arith.divf %398, %399 : vector<8x128xf32>
    %401 = vector.extract_strided_slice %390 {offsets = [0, 128], sizes = [8, 128], strides = [1, 1]} : vector<8x512xf32> to vector<8x128xf32>
    %402 = arith.negf %401 : vector<8x128xf32>
    %403 = math.exp %402 : vector<8x128xf32>
    %cst_92 = arith.constant 1.000000e+00 : f32
    %404 = vector.broadcast %cst_92 : f32 to vector<8x128xf32>
    %405 = arith.addf %404, %403 : vector<8x128xf32>
    %406 = arith.divf %404, %405 : vector<8x128xf32>
    %407 = vector.extract_strided_slice %390 {offsets = [0, 256], sizes = [8, 128], strides = [1, 1]} : vector<8x512xf32> to vector<8x128xf32>
    %408 = math.tanh %407 : vector<8x128xf32>
    %409 = vector.extract_strided_slice %390 {offsets = [0, 384], sizes = [8, 128], strides = [1, 1]} : vector<8x512xf32> to vector<8x128xf32>
    %410 = arith.negf %409 : vector<8x128xf32>
    %411 = math.exp %410 : vector<8x128xf32>
    %cst_93 = arith.constant 1.000000e+00 : f32
    %412 = vector.broadcast %cst_93 : f32 to vector<8x128xf32>
    %413 = arith.addf %412, %411 : vector<8x128xf32>
    %414 = arith.divf %412, %413 : vector<8x128xf32>
    %415 = arith.mulf %406, %375 : vector<8x128xf32>
    %416 = arith.mulf %400, %408 : vector<8x128xf32>
    %417 = arith.addf %415, %416 : vector<8x128xf32>
    %418 = math.tanh %417 : vector<8x128xf32>
    %419 = arith.mulf %414, %418 : vector<8x128xf32>
    %420 = vector.extract_strided_slice %394 {offsets = [0, 0], sizes = [8, 128], strides = [1, 1]} : vector<8x512xf32> to vector<8x128xf32>
    %421 = arith.negf %420 : vector<8x128xf32>
    %422 = math.exp %421 : vector<8x128xf32>
    %cst_94 = arith.constant 1.000000e+00 : f32
    %423 = vector.broadcast %cst_94 : f32 to vector<8x128xf32>
    %424 = arith.addf %423, %422 : vector<8x128xf32>
    %425 = arith.divf %423, %424 : vector<8x128xf32>
    %426 = vector.extract_strided_slice %394 {offsets = [0, 128], sizes = [8, 128], strides = [1, 1]} : vector<8x512xf32> to vector<8x128xf32>
    %427 = arith.negf %426 : vector<8x128xf32>
    %428 = math.exp %427 : vector<8x128xf32>
    %cst_95 = arith.constant 1.000000e+00 : f32
    %429 = vector.broadcast %cst_95 : f32 to vector<8x128xf32>
    %430 = arith.addf %429, %428 : vector<8x128xf32>
    %431 = arith.divf %429, %430 : vector<8x128xf32>
    %432 = vector.extract_strided_slice %394 {offsets = [0, 256], sizes = [8, 128], strides = [1, 1]} : vector<8x512xf32> to vector<8x128xf32>
    %433 = math.tanh %432 : vector<8x128xf32>
    %434 = vector.extract_strided_slice %394 {offsets = [0, 384], sizes = [8, 128], strides = [1, 1]} : vector<8x512xf32> to vector<8x128xf32>
    %435 = arith.negf %434 : vector<8x128xf32>
    %436 = math.exp %435 : vector<8x128xf32>
    %cst_96 = arith.constant 1.000000e+00 : f32
    %437 = vector.broadcast %cst_96 : f32 to vector<8x128xf32>
    %438 = arith.addf %437, %436 : vector<8x128xf32>
    %439 = arith.divf %437, %438 : vector<8x128xf32>
    %440 = arith.mulf %431, %381 : vector<8x128xf32>
    %441 = arith.mulf %425, %433 : vector<8x128xf32>
    %442 = arith.addf %440, %441 : vector<8x128xf32>
    %443 = math.tanh %442 : vector<8x128xf32>
    %444 = arith.mulf %439, %443 : vector<8x128xf32>
    %445 = vector.broadcast %c4_i32 : i32 to vector<8x1xi32>
    %446 = arith.cmpi slt, %445, %16 : vector<8x1xi32>
    %447 = vector.broadcast %382 : i32 to vector<8x1xi32>
    %448 = arith.cmpi slt, %447, %16 : vector<8x1xi32>
    %cst_97 = arith.constant 0.000000e+00 : f32
    %449 = vector.shape_cast %446 : vector<8x1xi1> to vector<8x1xi1>
    %450 = vector.broadcast %449 : vector<8x1xi1> to vector<8x128xi1>
    %451 = vector.broadcast %cst_97 : f32 to vector<8x128xf32>
    %452 = arith.select %450, %419, %451 : vector<8x128xi1>, vector<8x128xf32>
    %453 = arith.index_cast %384 : i32 to index
    %c0_98 = arith.constant 0 : index
    %454 = vector.load %arg12[%453, %c0_98] : memref<64x256xf32, #tpu.memory_space<vmem>>, vector<8x128xf32>
    tpu.vector_store %arg12[%453, %c0_98], %452 {strides = array<i32>} : memref<64x256xf32, #tpu.memory_space<vmem>>, vector<8x128xf32>,
    %cst_99 = arith.constant 0.000000e+00 : f32
    %455 = vector.shape_cast %448 : vector<8x1xi1> to vector<8x1xi1>
    %456 = vector.broadcast %455 : vector<8x1xi1> to vector<8x128xi1>
    %457 = vector.broadcast %cst_99 : f32 to vector<8x128xf32>
    %458 = arith.select %456, %444, %457 : vector<8x128xi1>, vector<8x128xf32>
    %459 = arith.index_cast %386 : i32 to index
    %c128_100 = arith.constant 128 : index
    %460 = vector.load %arg12[%459, %c128_100] : memref<64x256xf32, #tpu.memory_space<vmem>>, vector<8x128xf32>
    tpu.vector_store %arg12[%459, %c128_100], %458 {strides = array<i32>} : memref<64x256xf32, #tpu.memory_space<vmem>>, vector<8x128xf32>,
    %461 = vector.shape_cast %446 : vector<8x1xi1> to vector<8x1xi1>
    %462 = vector.broadcast %461 : vector<8x1xi1> to vector<8x128xi1>
    %463 = arith.select %462, %419, %372 : vector<8x128xi1>, vector<8x128xf32>
    %464 = vector.shape_cast %446 : vector<8x1xi1> to vector<8x1xi1>
    %465 = vector.broadcast %464 : vector<8x1xi1> to vector<8x128xi1>
    %466 = arith.select %465, %417, %375 : vector<8x128xi1>, vector<8x128xf32>
    %467 = vector.shape_cast %448 : vector<8x1xi1> to vector<8x1xi1>
    %468 = vector.broadcast %467 : vector<8x1xi1> to vector<8x128xi1>
    %469 = arith.select %468, %444, %378 : vector<8x128xi1>, vector<8x128xf32>
    %470 = vector.shape_cast %448 : vector<8x1xi1> to vector<8x1xi1>
    %471 = vector.broadcast %470 : vector<8x1xi1> to vector<8x128xi1>
    %472 = arith.select %471, %442, %381 : vector<8x128xi1>, vector<8x128xf32>
    %c5_i32 = arith.constant 5 : i32
    %c7_i32_101 = arith.constant 7 : i32
    %473 = arith.subi %c7_i32_101, %c5_i32 : i32
    %c8_i32_102 = arith.constant 8 : i32
    %474 = arith.muli %c5_i32, %c8_i32_102 : i32
    %475 = tpu.assume_multiple %474, 8 : i32
    %c8_i32_103 = arith.constant 8 : i32
    %476 = arith.muli %473, %c8_i32_103 : i32
    %477 = tpu.assume_multiple %476, 8 : i32
    %478 = arith.index_cast %475 : i32 to index
    %c0_104 = arith.constant 0 : index
    %479 = vector.load %arg11[%478, %c0_104] : memref<64x1024xf32, #tpu.memory_space<vmem>>, vector<8x512xf32>
    %cst_105 = arith.constant dense<0.000000e+00> : vector<8x512xf32>
    %480 = tpu.matmul %463, %14, %cst_105 {dimension_numbers = #tpu.dot_dimension_numbers<[1], [0], [0], [1], [0, 0, 1, 1], [], []>} : vector<8x128xf32>, vector<128x512xf32>, vector<8x512xf32> -> vector<8x512xf32>
    %481 = arith.addf %479, %480 : vector<8x512xf32>
    %482 = arith.index_cast %477 : i32 to index
    %c512_106 = arith.constant 512 : index
    %483 = vector.load %arg11[%482, %c512_106] : memref<64x1024xf32, #tpu.memory_space<vmem>>, vector<8x512xf32>
    %cst_107 = arith.constant dense<0.000000e+00> : vector<8x512xf32>
    %484 = tpu.matmul %469, %15, %cst_107 {dimension_numbers = #tpu.dot_dimension_numbers<[1], [0], [0], [1], [0, 0, 1, 1], [], []>} : vector<8x128xf32>, vector<128x512xf32>, vector<8x512xf32> -> vector<8x512xf32>
    %485 = arith.addf %483, %484 : vector<8x512xf32>
    %486 = vector.extract_strided_slice %481 {offsets = [0, 0], sizes = [8, 128], strides = [1, 1]} : vector<8x512xf32> to vector<8x128xf32>
    %487 = arith.negf %486 : vector<8x128xf32>
    %488 = math.exp %487 : vector<8x128xf32>
    %cst_108 = arith.constant 1.000000e+00 : f32
    %489 = vector.broadcast %cst_108 : f32 to vector<8x128xf32>
    %490 = arith.addf %489, %488 : vector<8x128xf32>
    %491 = arith.divf %489, %490 : vector<8x128xf32>
    %492 = vector.extract_strided_slice %481 {offsets = [0, 128], sizes = [8, 128], strides = [1, 1]} : vector<8x512xf32> to vector<8x128xf32>
    %493 = arith.negf %492 : vector<8x128xf32>
    %494 = math.exp %493 : vector<8x128xf32>
    %cst_109 = arith.constant 1.000000e+00 : f32
    %495 = vector.broadcast %cst_109 : f32 to vector<8x128xf32>
    %496 = arith.addf %495, %494 : vector<8x128xf32>
    %497 = arith.divf %495, %496 : vector<8x128xf32>
    %498 = vector.extract_strided_slice %481 {offsets = [0, 256], sizes = [8, 128], strides = [1, 1]} : vector<8x512xf32> to vector<8x128xf32>
    %499 = math.tanh %498 : vector<8x128xf32>
    %500 = vector.extract_strided_slice %481 {offsets = [0, 384], sizes = [8, 128], strides = [1, 1]} : vector<8x512xf32> to vector<8x128xf32>
    %501 = arith.negf %500 : vector<8x128xf32>
    %502 = math.exp %501 : vector<8x128xf32>
    %cst_110 = arith.constant 1.000000e+00 : f32
    %503 = vector.broadcast %cst_110 : f32 to vector<8x128xf32>
    %504 = arith.addf %503, %502 : vector<8x128xf32>
    %505 = arith.divf %503, %504 : vector<8x128xf32>
    %506 = arith.mulf %497, %466 : vector<8x128xf32>
    %507 = arith.mulf %491, %499 : vector<8x128xf32>
    %508 = arith.addf %506, %507 : vector<8x128xf32>
    %509 = math.tanh %508 : vector<8x128xf32>
    %510 = arith.mulf %505, %509 : vector<8x128xf32>
    %511 = vector.extract_strided_slice %485 {offsets = [0, 0], sizes = [8, 128], strides = [1, 1]} : vector<8x512xf32> to vector<8x128xf32>
    %512 = arith.negf %511 : vector<8x128xf32>
    %513 = math.exp %512 : vector<8x128xf32>
    %cst_111 = arith.constant 1.000000e+00 : f32
    %514 = vector.broadcast %cst_111 : f32 to vector<8x128xf32>
    %515 = arith.addf %514, %513 : vector<8x128xf32>
    %516 = arith.divf %514, %515 : vector<8x128xf32>
    %517 = vector.extract_strided_slice %485 {offsets = [0, 128], sizes = [8, 128], strides = [1, 1]} : vector<8x512xf32> to vector<8x128xf32>
    %518 = arith.negf %517 : vector<8x128xf32>
    %519 = math.exp %518 : vector<8x128xf32>
    %cst_112 = arith.constant 1.000000e+00 : f32
    %520 = vector.broadcast %cst_112 : f32 to vector<8x128xf32>
    %521 = arith.addf %520, %519 : vector<8x128xf32>
    %522 = arith.divf %520, %521 : vector<8x128xf32>
    %523 = vector.extract_strided_slice %485 {offsets = [0, 256], sizes = [8, 128], strides = [1, 1]} : vector<8x512xf32> to vector<8x128xf32>
    %524 = math.tanh %523 : vector<8x128xf32>
    %525 = vector.extract_strided_slice %485 {offsets = [0, 384], sizes = [8, 128], strides = [1, 1]} : vector<8x512xf32> to vector<8x128xf32>
    %526 = arith.negf %525 : vector<8x128xf32>
    %527 = math.exp %526 : vector<8x128xf32>
    %cst_113 = arith.constant 1.000000e+00 : f32
    %528 = vector.broadcast %cst_113 : f32 to vector<8x128xf32>
    %529 = arith.addf %528, %527 : vector<8x128xf32>
    %530 = arith.divf %528, %529 : vector<8x128xf32>
    %531 = arith.mulf %522, %472 : vector<8x128xf32>
    %532 = arith.mulf %516, %524 : vector<8x128xf32>
    %533 = arith.addf %531, %532 : vector<8x128xf32>
    %534 = math.tanh %533 : vector<8x128xf32>
    %535 = arith.mulf %530, %534 : vector<8x128xf32>
    %536 = vector.broadcast %c5_i32 : i32 to vector<8x1xi32>
    %537 = arith.cmpi slt, %536, %16 : vector<8x1xi32>
    %538 = vector.broadcast %473 : i32 to vector<8x1xi32>
    %539 = arith.cmpi slt, %538, %16 : vector<8x1xi32>
    %cst_114 = arith.constant 0.000000e+00 : f32
    %540 = vector.shape_cast %537 : vector<8x1xi1> to vector<8x1xi1>
    %541 = vector.broadcast %540 : vector<8x1xi1> to vector<8x128xi1>
    %542 = vector.broadcast %cst_114 : f32 to vector<8x128xf32>
    %543 = arith.select %541, %510, %542 : vector<8x128xi1>, vector<8x128xf32>
    %544 = arith.index_cast %475 : i32 to index
    %c0_115 = arith.constant 0 : index
    %545 = vector.load %arg12[%544, %c0_115] : memref<64x256xf32, #tpu.memory_space<vmem>>, vector<8x128xf32>
    tpu.vector_store %arg12[%544, %c0_115], %543 {strides = array<i32>} : memref<64x256xf32, #tpu.memory_space<vmem>>, vector<8x128xf32>,
    %cst_116 = arith.constant 0.000000e+00 : f32
    %546 = vector.shape_cast %539 : vector<8x1xi1> to vector<8x1xi1>
    %547 = vector.broadcast %546 : vector<8x1xi1> to vector<8x128xi1>
    %548 = vector.broadcast %cst_116 : f32 to vector<8x128xf32>
    %549 = arith.select %547, %535, %548 : vector<8x128xi1>, vector<8x128xf32>
    %550 = arith.index_cast %477 : i32 to index
    %c128_117 = arith.constant 128 : index
    %551 = vector.load %arg12[%550, %c128_117] : memref<64x256xf32, #tpu.memory_space<vmem>>, vector<8x128xf32>
    tpu.vector_store %arg12[%550, %c128_117], %549 {strides = array<i32>} : memref<64x256xf32, #tpu.memory_space<vmem>>, vector<8x128xf32>,
    %552 = vector.shape_cast %537 : vector<8x1xi1> to vector<8x1xi1>
    %553 = vector.broadcast %552 : vector<8x1xi1> to vector<8x128xi1>
    %554 = arith.select %553, %510, %463 : vector<8x128xi1>, vector<8x128xf32>
    %555 = vector.shape_cast %537 : vector<8x1xi1> to vector<8x1xi1>
    %556 = vector.broadcast %555 : vector<8x1xi1> to vector<8x128xi1>
    %557 = arith.select %556, %508, %466 : vector<8x128xi1>, vector<8x128xf32>
    %558 = vector.shape_cast %539 : vector<8x1xi1> to vector<8x1xi1>
    %559 = vector.broadcast %558 : vector<8x1xi1> to vector<8x128xi1>
    %560 = arith.select %559, %535, %469 : vector<8x128xi1>, vector<8x128xf32>
    %561 = vector.shape_cast %539 : vector<8x1xi1> to vector<8x1xi1>
    %562 = vector.broadcast %561 : vector<8x1xi1> to vector<8x128xi1>
    %563 = arith.select %562, %533, %472 : vector<8x128xi1>, vector<8x128xf32>
    %c6_i32 = arith.constant 6 : i32
    %c7_i32_118 = arith.constant 7 : i32
    %564 = arith.subi %c7_i32_118, %c6_i32 : i32
    %c8_i32_119 = arith.constant 8 : i32
    %565 = arith.muli %c6_i32, %c8_i32_119 : i32
    %566 = tpu.assume_multiple %565, 8 : i32
    %c8_i32_120 = arith.constant 8 : i32
    %567 = arith.muli %564, %c8_i32_120 : i32
    %568 = tpu.assume_multiple %567, 8 : i32
    %569 = arith.index_cast %566 : i32 to index
    %c0_121 = arith.constant 0 : index
    %570 = vector.load %arg11[%569, %c0_121] : memref<64x1024xf32, #tpu.memory_space<vmem>>, vector<8x512xf32>
    %cst_122 = arith.constant dense<0.000000e+00> : vector<8x512xf32>
    %571 = tpu.matmul %554, %14, %cst_122 {dimension_numbers = #tpu.dot_dimension_numbers<[1], [0], [0], [1], [0, 0, 1, 1], [], []>} : vector<8x128xf32>, vector<128x512xf32>, vector<8x512xf32> -> vector<8x512xf32>
    %572 = arith.addf %570, %571 : vector<8x512xf32>
    %573 = arith.index_cast %568 : i32 to index
    %c512_123 = arith.constant 512 : index
    %574 = vector.load %arg11[%573, %c512_123] : memref<64x1024xf32, #tpu.memory_space<vmem>>, vector<8x512xf32>
    %cst_124 = arith.constant dense<0.000000e+00> : vector<8x512xf32>
    %575 = tpu.matmul %560, %15, %cst_124 {dimension_numbers = #tpu.dot_dimension_numbers<[1], [0], [0], [1], [0, 0, 1, 1], [], []>} : vector<8x128xf32>, vector<128x512xf32>, vector<8x512xf32> -> vector<8x512xf32>
    %576 = arith.addf %574, %575 : vector<8x512xf32>
    %577 = vector.extract_strided_slice %572 {offsets = [0, 0], sizes = [8, 128], strides = [1, 1]} : vector<8x512xf32> to vector<8x128xf32>
    %578 = arith.negf %577 : vector<8x128xf32>
    %579 = math.exp %578 : vector<8x128xf32>
    %cst_125 = arith.constant 1.000000e+00 : f32
    %580 = vector.broadcast %cst_125 : f32 to vector<8x128xf32>
    %581 = arith.addf %580, %579 : vector<8x128xf32>
    %582 = arith.divf %580, %581 : vector<8x128xf32>
    %583 = vector.extract_strided_slice %572 {offsets = [0, 128], sizes = [8, 128], strides = [1, 1]} : vector<8x512xf32> to vector<8x128xf32>
    %584 = arith.negf %583 : vector<8x128xf32>
    %585 = math.exp %584 : vector<8x128xf32>
    %cst_126 = arith.constant 1.000000e+00 : f32
    %586 = vector.broadcast %cst_126 : f32 to vector<8x128xf32>
    %587 = arith.addf %586, %585 : vector<8x128xf32>
    %588 = arith.divf %586, %587 : vector<8x128xf32>
    %589 = vector.extract_strided_slice %572 {offsets = [0, 256], sizes = [8, 128], strides = [1, 1]} : vector<8x512xf32> to vector<8x128xf32>
    %590 = math.tanh %589 : vector<8x128xf32>
    %591 = vector.extract_strided_slice %572 {offsets = [0, 384], sizes = [8, 128], strides = [1, 1]} : vector<8x512xf32> to vector<8x128xf32>
    %592 = arith.negf %591 : vector<8x128xf32>
    %593 = math.exp %592 : vector<8x128xf32>
    %cst_127 = arith.constant 1.000000e+00 : f32
    %594 = vector.broadcast %cst_127 : f32 to vector<8x128xf32>
    %595 = arith.addf %594, %593 : vector<8x128xf32>
    %596 = arith.divf %594, %595 : vector<8x128xf32>
    %597 = arith.mulf %588, %557 : vector<8x128xf32>
    %598 = arith.mulf %582, %590 : vector<8x128xf32>
    %599 = arith.addf %597, %598 : vector<8x128xf32>
    %600 = math.tanh %599 : vector<8x128xf32>
    %601 = arith.mulf %596, %600 : vector<8x128xf32>
    %602 = vector.extract_strided_slice %576 {offsets = [0, 0], sizes = [8, 128], strides = [1, 1]} : vector<8x512xf32> to vector<8x128xf32>
    %603 = arith.negf %602 : vector<8x128xf32>
    %604 = math.exp %603 : vector<8x128xf32>
    %cst_128 = arith.constant 1.000000e+00 : f32
    %605 = vector.broadcast %cst_128 : f32 to vector<8x128xf32>
    %606 = arith.addf %605, %604 : vector<8x128xf32>
    %607 = arith.divf %605, %606 : vector<8x128xf32>
    %608 = vector.extract_strided_slice %576 {offsets = [0, 128], sizes = [8, 128], strides = [1, 1]} : vector<8x512xf32> to vector<8x128xf32>
    %609 = arith.negf %608 : vector<8x128xf32>
    %610 = math.exp %609 : vector<8x128xf32>
    %cst_129 = arith.constant 1.000000e+00 : f32
    %611 = vector.broadcast %cst_129 : f32 to vector<8x128xf32>
    %612 = arith.addf %611, %610 : vector<8x128xf32>
    %613 = arith.divf %611, %612 : vector<8x128xf32>
    %614 = vector.extract_strided_slice %576 {offsets = [0, 256], sizes = [8, 128], strides = [1, 1]} : vector<8x512xf32> to vector<8x128xf32>
    %615 = math.tanh %614 : vector<8x128xf32>
    %616 = vector.extract_strided_slice %576 {offsets = [0, 384], sizes = [8, 128], strides = [1, 1]} : vector<8x512xf32> to vector<8x128xf32>
    %617 = arith.negf %616 : vector<8x128xf32>
    %618 = math.exp %617 : vector<8x128xf32>
    %cst_130 = arith.constant 1.000000e+00 : f32
    %619 = vector.broadcast %cst_130 : f32 to vector<8x128xf32>
    %620 = arith.addf %619, %618 : vector<8x128xf32>
    %621 = arith.divf %619, %620 : vector<8x128xf32>
    %622 = arith.mulf %613, %563 : vector<8x128xf32>
    %623 = arith.mulf %607, %615 : vector<8x128xf32>
    %624 = arith.addf %622, %623 : vector<8x128xf32>
    %625 = math.tanh %624 : vector<8x128xf32>
    %626 = arith.mulf %621, %625 : vector<8x128xf32>
    %627 = vector.broadcast %c6_i32 : i32 to vector<8x1xi32>
    %628 = arith.cmpi slt, %627, %16 : vector<8x1xi32>
    %629 = vector.broadcast %564 : i32 to vector<8x1xi32>
    %630 = arith.cmpi slt, %629, %16 : vector<8x1xi32>
    %cst_131 = arith.constant 0.000000e+00 : f32
    %631 = vector.shape_cast %628 : vector<8x1xi1> to vector<8x1xi1>
    %632 = vector.broadcast %631 : vector<8x1xi1> to vector<8x128xi1>
    %633 = vector.broadcast %cst_131 : f32 to vector<8x128xf32>
    %634 = arith.select %632, %601, %633 : vector<8x128xi1>, vector<8x128xf32>
    %635 = arith.index_cast %566 : i32 to index
    %c0_132 = arith.constant 0 : index
    %636 = vector.load %arg12[%635, %c0_132] : memref<64x256xf32, #tpu.memory_space<vmem>>, vector<8x128xf32>
    tpu.vector_store %arg12[%635, %c0_132], %634 {strides = array<i32>} : memref<64x256xf32, #tpu.memory_space<vmem>>, vector<8x128xf32>,
    %cst_133 = arith.constant 0.000000e+00 : f32
    %637 = vector.shape_cast %630 : vector<8x1xi1> to vector<8x1xi1>
    %638 = vector.broadcast %637 : vector<8x1xi1> to vector<8x128xi1>
    %639 = vector.broadcast %cst_133 : f32 to vector<8x128xf32>
    %640 = arith.select %638, %626, %639 : vector<8x128xi1>, vector<8x128xf32>
    %641 = arith.index_cast %568 : i32 to index
    %c128_134 = arith.constant 128 : index
    %642 = vector.load %arg12[%641, %c128_134] : memref<64x256xf32, #tpu.memory_space<vmem>>, vector<8x128xf32>
    tpu.vector_store %arg12[%641, %c128_134], %640 {strides = array<i32>} : memref<64x256xf32, #tpu.memory_space<vmem>>, vector<8x128xf32>,
    %643 = vector.shape_cast %628 : vector<8x1xi1> to vector<8x1xi1>
    %644 = vector.broadcast %643 : vector<8x1xi1> to vector<8x128xi1>
    %645 = arith.select %644, %601, %554 : vector<8x128xi1>, vector<8x128xf32>
    %646 = vector.shape_cast %628 : vector<8x1xi1> to vector<8x1xi1>
    %647 = vector.broadcast %646 : vector<8x1xi1> to vector<8x128xi1>
    %648 = arith.select %647, %599, %557 : vector<8x128xi1>, vector<8x128xf32>
    %649 = vector.shape_cast %630 : vector<8x1xi1> to vector<8x1xi1>
    %650 = vector.broadcast %649 : vector<8x1xi1> to vector<8x128xi1>
    %651 = arith.select %650, %626, %560 : vector<8x128xi1>, vector<8x128xf32>
    %652 = vector.shape_cast %630 : vector<8x1xi1> to vector<8x1xi1>
    %653 = vector.broadcast %652 : vector<8x1xi1> to vector<8x128xi1>
    %654 = arith.select %653, %624, %563 : vector<8x128xi1>, vector<8x128xf32>
    %c7_i32_135 = arith.constant 7 : i32
    %c7_i32_136 = arith.constant 7 : i32
    %655 = arith.subi %c7_i32_136, %c7_i32_135 : i32
    %c8_i32_137 = arith.constant 8 : i32
    %656 = arith.muli %c7_i32_135, %c8_i32_137 : i32
    %657 = tpu.assume_multiple %656, 8 : i32
    %c8_i32_138 = arith.constant 8 : i32
    %658 = arith.muli %655, %c8_i32_138 : i32
    %659 = tpu.assume_multiple %658, 8 : i32
    %660 = arith.index_cast %657 : i32 to index
    %c0_139 = arith.constant 0 : index
    %661 = vector.load %arg11[%660, %c0_139] : memref<64x1024xf32, #tpu.memory_space<vmem>>, vector<8x512xf32>
    %cst_140 = arith.constant dense<0.000000e+00> : vector<8x512xf32>
    %662 = tpu.matmul %645, %14, %cst_140 {dimension_numbers = #tpu.dot_dimension_numbers<[1], [0], [0], [1], [0, 0, 1, 1], [], []>} : vector<8x128xf32>, vector<128x512xf32>, vector<8x512xf32> -> vector<8x512xf32>
    %663 = arith.addf %661, %662 : vector<8x512xf32>
    %664 = arith.index_cast %659 : i32 to index
    %c512_141 = arith.constant 512 : index
    %665 = vector.load %arg11[%664, %c512_141] : memref<64x1024xf32, #tpu.memory_space<vmem>>, vector<8x512xf32>
    %cst_142 = arith.constant dense<0.000000e+00> : vector<8x512xf32>
    %666 = tpu.matmul %651, %15, %cst_142 {dimension_numbers = #tpu.dot_dimension_numbers<[1], [0], [0], [1], [0, 0, 1, 1], [], []>} : vector<8x128xf32>, vector<128x512xf32>, vector<8x512xf32> -> vector<8x512xf32>
    %667 = arith.addf %665, %666 : vector<8x512xf32>
    %668 = vector.extract_strided_slice %663 {offsets = [0, 0], sizes = [8, 128], strides = [1, 1]} : vector<8x512xf32> to vector<8x128xf32>
    %669 = arith.negf %668 : vector<8x128xf32>
    %670 = math.exp %669 : vector<8x128xf32>
    %cst_143 = arith.constant 1.000000e+00 : f32
    %671 = vector.broadcast %cst_143 : f32 to vector<8x128xf32>
    %672 = arith.addf %671, %670 : vector<8x128xf32>
    %673 = arith.divf %671, %672 : vector<8x128xf32>
    %674 = vector.extract_strided_slice %663 {offsets = [0, 128], sizes = [8, 128], strides = [1, 1]} : vector<8x512xf32> to vector<8x128xf32>
    %675 = arith.negf %674 : vector<8x128xf32>
    %676 = math.exp %675 : vector<8x128xf32>
    %cst_144 = arith.constant 1.000000e+00 : f32
    %677 = vector.broadcast %cst_144 : f32 to vector<8x128xf32>
    %678 = arith.addf %677, %676 : vector<8x128xf32>
    %679 = arith.divf %677, %678 : vector<8x128xf32>
    %680 = vector.extract_strided_slice %663 {offsets = [0, 256], sizes = [8, 128], strides = [1, 1]} : vector<8x512xf32> to vector<8x128xf32>
    %681 = math.tanh %680 : vector<8x128xf32>
    %682 = vector.extract_strided_slice %663 {offsets = [0, 384], sizes = [8, 128], strides = [1, 1]} : vector<8x512xf32> to vector<8x128xf32>
    %683 = arith.negf %682 : vector<8x128xf32>
    %684 = math.exp %683 : vector<8x128xf32>
    %cst_145 = arith.constant 1.000000e+00 : f32
    %685 = vector.broadcast %cst_145 : f32 to vector<8x128xf32>
    %686 = arith.addf %685, %684 : vector<8x128xf32>
    %687 = arith.divf %685, %686 : vector<8x128xf32>
    %688 = arith.mulf %679, %648 : vector<8x128xf32>
    %689 = arith.mulf %673, %681 : vector<8x128xf32>
    %690 = arith.addf %688, %689 : vector<8x128xf32>
    %691 = math.tanh %690 : vector<8x128xf32>
    %692 = arith.mulf %687, %691 : vector<8x128xf32>
    %693 = vector.extract_strided_slice %667 {offsets = [0, 0], sizes = [8, 128], strides = [1, 1]} : vector<8x512xf32> to vector<8x128xf32>
    %694 = arith.negf %693 : vector<8x128xf32>
    %695 = math.exp %694 : vector<8x128xf32>
    %cst_146 = arith.constant 1.000000e+00 : f32
    %696 = vector.broadcast %cst_146 : f32 to vector<8x128xf32>
    %697 = arith.addf %696, %695 : vector<8x128xf32>
    %698 = arith.divf %696, %697 : vector<8x128xf32>
    %699 = vector.extract_strided_slice %667 {offsets = [0, 128], sizes = [8, 128], strides = [1, 1]} : vector<8x512xf32> to vector<8x128xf32>
    %700 = arith.negf %699 : vector<8x128xf32>
    %701 = math.exp %700 : vector<8x128xf32>
    %cst_147 = arith.constant 1.000000e+00 : f32
    %702 = vector.broadcast %cst_147 : f32 to vector<8x128xf32>
    %703 = arith.addf %702, %701 : vector<8x128xf32>
    %704 = arith.divf %702, %703 : vector<8x128xf32>
    %705 = vector.extract_strided_slice %667 {offsets = [0, 256], sizes = [8, 128], strides = [1, 1]} : vector<8x512xf32> to vector<8x128xf32>
    %706 = math.tanh %705 : vector<8x128xf32>
    %707 = vector.extract_strided_slice %667 {offsets = [0, 384], sizes = [8, 128], strides = [1, 1]} : vector<8x512xf32> to vector<8x128xf32>
    %708 = arith.negf %707 : vector<8x128xf32>
    %709 = math.exp %708 : vector<8x128xf32>
    %cst_148 = arith.constant 1.000000e+00 : f32
    %710 = vector.broadcast %cst_148 : f32 to vector<8x128xf32>
    %711 = arith.addf %710, %709 : vector<8x128xf32>
    %712 = arith.divf %710, %711 : vector<8x128xf32>
    %713 = arith.mulf %704, %654 : vector<8x128xf32>
    %714 = arith.mulf %698, %706 : vector<8x128xf32>
    %715 = arith.addf %713, %714 : vector<8x128xf32>
    %716 = math.tanh %715 : vector<8x128xf32>
    %717 = arith.mulf %712, %716 : vector<8x128xf32>
    %718 = vector.broadcast %c7_i32_135 : i32 to vector<8x1xi32>
    %719 = arith.cmpi slt, %718, %16 : vector<8x1xi32>
    %720 = vector.broadcast %655 : i32 to vector<8x1xi32>
    %721 = arith.cmpi slt, %720, %16 : vector<8x1xi32>
    %cst_149 = arith.constant 0.000000e+00 : f32
    %722 = vector.shape_cast %719 : vector<8x1xi1> to vector<8x1xi1>
    %723 = vector.broadcast %722 : vector<8x1xi1> to vector<8x128xi1>
    %724 = vector.broadcast %cst_149 : f32 to vector<8x128xf32>
    %725 = arith.select %723, %692, %724 : vector<8x128xi1>, vector<8x128xf32>
    %726 = arith.index_cast %657 : i32 to index
    %c0_150 = arith.constant 0 : index
    %727 = vector.load %arg12[%726, %c0_150] : memref<64x256xf32, #tpu.memory_space<vmem>>, vector<8x128xf32>
    tpu.vector_store %arg12[%726, %c0_150], %725 {strides = array<i32>} : memref<64x256xf32, #tpu.memory_space<vmem>>, vector<8x128xf32>,
    %cst_151 = arith.constant 0.000000e+00 : f32
    %728 = vector.shape_cast %721 : vector<8x1xi1> to vector<8x1xi1>
    %729 = vector.broadcast %728 : vector<8x1xi1> to vector<8x128xi1>
    %730 = vector.broadcast %cst_151 : f32 to vector<8x128xf32>
    %731 = arith.select %729, %717, %730 : vector<8x128xi1>, vector<8x128xf32>
    %732 = arith.index_cast %659 : i32 to index
    %c128_152 = arith.constant 128 : index
    %733 = vector.load %arg12[%732, %c128_152] : memref<64x256xf32, #tpu.memory_space<vmem>>, vector<8x128xf32>
    tpu.vector_store %arg12[%732, %c128_152], %731 {strides = array<i32>} : memref<64x256xf32, #tpu.memory_space<vmem>>, vector<8x128xf32>,
    %734 = vector.shape_cast %719 : vector<8x1xi1> to vector<8x1xi1>
    %735 = vector.broadcast %734 : vector<8x1xi1> to vector<8x128xi1>
    %736 = arith.select %735, %692, %645 : vector<8x128xi1>, vector<8x128xf32>
    %737 = vector.shape_cast %719 : vector<8x1xi1> to vector<8x1xi1>
    %738 = vector.broadcast %737 : vector<8x1xi1> to vector<8x128xi1>
    %739 = arith.select %738, %690, %648 : vector<8x128xi1>, vector<8x128xf32>
    %740 = vector.shape_cast %721 : vector<8x1xi1> to vector<8x1xi1>
    %741 = vector.broadcast %740 : vector<8x1xi1> to vector<8x128xi1>
    %742 = arith.select %741, %717, %651 : vector<8x128xi1>, vector<8x128xf32>
    %743 = vector.shape_cast %721 : vector<8x1xi1> to vector<8x1xi1>
    %744 = vector.broadcast %743 : vector<8x1xi1> to vector<8x128xi1>
    %745 = arith.select %744, %715, %654 : vector<8x128xi1>, vector<8x128xf32>
    %c8_i32_153 = arith.constant 8 : i32
    %c0_154 = arith.constant 0 : index
    %c0_155 = arith.constant 0 : index
    %746 = vector.load %arg12[%c0_154, %c0_155] : memref<64x256xf32, #tpu.memory_space<vmem>>, vector<64x256xf32>
    %c0_156 = arith.constant 0 : index
    %c0_157 = arith.constant 0 : index
    %747 = vector.load %arg8[%c0_156, %c0_157] : memref<256x128xf32, #tpu.memory_space<vmem>>, vector<256x128xf32>
    %cst_158 = arith.constant dense<0.000000e+00> : vector<64x128xf32>
    %748 = tpu.matmul %746, %747, %cst_158 {dimension_numbers = #tpu.dot_dimension_numbers<[1], [0], [0], [1], [0, 0, 1, 1], [], []>} : vector<64x256xf32>, vector<256x128xf32>, vector<64x128xf32> -> vector<64x128xf32>
    %c0_159 = arith.constant 0 : index
    %c0_160 = arith.constant 0 : index
    %749 = vector.load %arg9[%c0_159, %c0_160] : memref<1x128xf32, #tpu.memory_space<vmem>>, vector<1x128xf32>
    %750 = vector.broadcast %749 : vector<1x128xf32> to vector<64x128xf32>
    %751 = arith.addf %748, %750 : vector<64x128xf32>
    %cst_161 = arith.constant dense<0xFF800000> : vector<64xf32>
    %752 = vector.multi_reduction <maximumf>, %751, %cst_161 [1] : vector<64x128xf32> to vector<64xf32>
    %753 = vector.shape_cast %752 : vector<64xf32> to vector<64x1xf32>
    %754 = vector.broadcast %753 : vector<64x1xf32> to vector<64x128xf32>
    %755 = arith.subf %751, %754 : vector<64x128xf32>
    %756 = math.exp %755 : vector<64x128xf32>
    %cst_162 = arith.constant dense<0.000000e+00> : vector<64xf32>
    %757 = vector.multi_reduction <add>, %756, %cst_162 [1] : vector<64x128xf32> to vector<64xf32>
    %758 = vector.shape_cast %757 : vector<64xf32> to vector<64x1xf32>
    %759 = math.log %758 : vector<64x1xf32>
    %760 = vector.broadcast %759 : vector<64x1xf32> to vector<64x128xf32>
    %761 = arith.subf %755, %760 : vector<64x128xf32>
    %c0_163 = arith.constant 0 : index
    %c0_164 = arith.constant 0 : index
    %762 = vector.load %arg10[%c0_163, %c0_164] : memref<64x128xf32, #tpu.memory_space<vmem>>, vector<64x128xf32>
    tpu.vector_store %arg10[%c0_163, %c0_164], %761 {strides = array<i32>} : memref<64x128xf32, #tpu.memory_space<vmem>>, vector<64x128xf32>,
    return
  }
}

</mosaic_0001>

<llo_original>
// kernel: asr_forward.1
$region0: #{asr_forward.1}
  #allocation0 [shape = 'u32[]', space=smem, size = 0x4, offset = 0x4, fixed_abs, tag = 'smem constant byte address 0x4 - core index']
  #allocation1 [shape = 'u32[144,128]{1,0:T(1,128)}', space=vmem, size = 0x12000, scoped, tag = 'internal scratch']
  #allocation2 [shape = 'f32[64,1024]{1,0:T(8,128)}', space=vmem, size = 0x40000, scoped, tag = 'scratch operand']
  #allocation3 [shape = 'f32[64,256]{1,0:T(8,128)}', space=vmem, size = 0x10000, scoped, tag = 'scratch operand']
  %s0 = inlined_call_operand.vmem [shape: f32[64,32], index: 0, kind: input, shape index: {}]
  %s1 = inlined_call_operand.vmem [shape: s32[8,1], index: 1, kind: input, shape index: {}]
  %s2 = inlined_call_operand.vmem [shape: f32[32,32], index: 2, kind: input, shape index: {}]
  %s3 = inlined_call_operand.vmem [shape: f32[1,32], index: 3, kind: input, shape index: {}]
  %s4 = inlined_call_operand.vmem [shape: f32[32,1024], index: 4, kind: input, shape index: {}]
  %s5 = inlined_call_operand.vmem [shape: f32[1,1024], index: 5, kind: input, shape index: {}]
  %s6 = inlined_call_operand.vmem [shape: f32[128,512], index: 6, kind: input, shape index: {}]
  %s7 = inlined_call_operand.hbm [shape: f32[128,512], index: 7, kind: input, shape index: {}]
  %s8 = inlined_call_operand.hbm [shape: f32[256,128], index: 8, kind: input, shape index: {}]
  %s9 = inlined_call_operand.vmem [shape: f32[1,128], index: 9, kind: input, shape index: {}]
  %s10 = inlined_call_operand.vmem [shape: f32[64,128], index: 10, kind: output, shape index: {}]
  %s11 = sld [smem:[#allocation0]]
  $region58: #{asr_forward.1} parent=0
    _
  %s13 = ssub.s32 1, %s11
  %s14 = scalar_select 0, %s13, %s11
  $region1: #{asr_forward.1} parent=0
    #allocation4 [shape = 'u8[262144]{0}', space=vmem, size = 0x40000, scoped, tag = 'input window, operand 7, single buffered']
    #allocation5 [shape = 's32[1]{0}', space=sflag, size = 0x4, scoped, tag = 'scoped memory for asr_forward.1']
    #allocation6 [shape = 'u8[131072]{0}', space=vmem, size = 0x20000, scoped, tag = 'input window, operand 8, single buffered']
    #allocation7 [shape = 's32[1]{0}', space=sflag, size = 0x4, scoped, tag = 'scoped memory for asr_forward.1']
    %15 = vsyncpa [#allocation5], 0
    %16 = vsyncpa [#allocation7], 0
    // Predicated region
    $region2: #{asr_forward.1} parent=1 // pred_check
      _
    $region3: #{asr_forward.1} parent=1 // pred_check_branch
      %18 = sbr.rel (0) target = $region5
    $region4: #{asr_forward.1} parent=1 // pred_region
      _
    $region5: #{asr_forward.1} parent=1 // pred_fallthru
      _
    // Predicated region
    $region6: #{asr_forward.1} parent=1 // pred_check
      _
    $region7: #{asr_forward.1} parent=1 // pred_check_branch
      %20 = sbr.rel (0) target = $region9
    $region8: #{asr_forward.1} parent=1 // pred_region
      _
    $region9: #{asr_forward.1} parent=1 // pred_fallthru
      _
    // Predicated region
    $region10: #{asr_forward.1} parent=1 // pred_check
      _
    $region11: #{asr_forward.1} parent=1 // pred_check_branch
      %22 = sbr.rel (0) target = $region13
    $region12: #{asr_forward.1} parent=1 // pred_region
      _
    $region13: #{asr_forward.1} parent=1 // pred_fallthru
      _
    // Predicated region
    $region14: #{asr_forward.1} parent=1 // pred_check
      _
    $region15: #{asr_forward.1} parent=1 // pred_check_branch
      %24 = sbr.rel (0) target = $region17
    $region16: #{asr_forward.1} parent=1 // pred_region
      _
    $region17: #{asr_forward.1} parent=1 // pred_fallthru
      _
    // Predicated region
    $region18: #{asr_forward.1} parent=1 // pred_check
      _
    $region19: #{asr_forward.1} parent=1 // pred_check_branch
      %26 = sbr.rel (0) target = $region21
    $region20: #{asr_forward.1} parent=1 // pred_region
      _
    $region21: #{asr_forward.1} parent=1 // pred_fallthru
      _
    // Predicated region
    $region22: #{asr_forward.1} parent=1 // pred_check
      _
    $region23: #{asr_forward.1} parent=1 // pred_check_branch
      %28 = sbr.rel (0) target = $region25
    $region24: #{asr_forward.1} parent=1 // pred_region
      _
    $region25: #{asr_forward.1} parent=1 // pred_fallthru
      _
    // Predicated region
    $region26: #{asr_forward.1} parent=1 // pred_check
      _
    $region27: #{asr_forward.1} parent=1 // pred_check_branch
      %30 = sbr.rel (0) target = $region29
    $region28: #{asr_forward.1} parent=1 // pred_region
      _
    $region29: #{asr_forward.1} parent=1 // pred_fallthru
      _
    // Predicated region
    $region30: #{asr_forward.1} parent=1 // pred_check
      _
    $region31: #{asr_forward.1} parent=1 // pred_check_branch
      %32 = sbr.rel (0) target = $region33
    $region32: #{asr_forward.1} parent=1 // pred_region
      %s34 = ssub.s32 8192, 8192
      %35 = vsyncadd [#allocation5], %s34
      %s36 = sshll.u32 [#allocation4], 4
      %s37 = int_to_ptr.vmem [resolvable:$true] %s36
      %42 = dma.hbm_to_vmem [thread:$0]  %s7, 8192, %s37, [#allocation5], 512, 512, 32
    $region33: #{asr_forward.1} parent=1 // pred_fallthru
      _
    // Predicated region
    $region34: #{asr_forward.1} parent=1 // pred_check
      _
    $region35: #{asr_forward.1} parent=1 // pred_check_branch
      %44 = sbr.rel (0) target = $region37
    $region36: #{asr_forward.1} parent=1 // pred_region
      %s46 = ssub.s32 4096, 4096
      %47 = vsyncadd [#allocation7], %s46
      %s48 = sshll.u32 [#allocation6], 4
      %s49 = int_to_ptr.vmem [resolvable:$true] %s48
      %54 = dma.hbm_to_vmem [thread:$0]  %s8, 4096, %s49, [#allocation7], 128, 128, 8
    $region37: #{asr_forward.1} parent=1 // pred_fallthru
      _
    // Predicated region
    $region38: #{asr_forward.1} parent=1 // pred_check
      _
    $region39: #{asr_forward.1} parent=1 // pred_check_branch
      %56 = sbr.rel (0) target = $region41
    $region40: #{asr_forward.1} parent=1 // pred_region
      _
    $region41: #{asr_forward.1} parent=1 // pred_fallthru
      _
    // Predicated region
    $region42: #{asr_forward.1} parent=1 // pred_check
      _
    $region43: #{asr_forward.1} parent=1 // pred_check_branch
      %58 = sbr.rel (0) target = $region45
    $region44: #{asr_forward.1} parent=1 // pred_region
      %59 = dma.done [#allocation5], 8192
    $region45: #{asr_forward.1} parent=1 // pred_fallthru
      _
    // Predicated region
    $region46: #{asr_forward.1} parent=1 // pred_check
      _
    $region47: #{asr_forward.1} parent=1 // pred_check_branch
      %61 = sbr.rel (0) target = $region49
    $region48: #{asr_forward.1} parent=1 // pred_region
      %62 = dma.done [#allocation7], 4096
    $region49: #{asr_forward.1} parent=1 // pred_fallthru
      _
    %v63 = vld [vmem:[%s0] sm:$0xff]
    %v64 = vld [vmem:[%s0 + $0x8] sm:$0xff]
    %v65 = vld [vmem:[%s0 + $0x10] sm:$0xff]
    %v66 = vld [vmem:[%s0 + $0x18] sm:$0xff]
    %v67 = vld [vmem:[%s0 + $0x20] sm:$0xff]
    %v68 = vld [vmem:[%s0 + $0x28] sm:$0xff]
    %v69 = vld [vmem:[%s0 + $0x30] sm:$0xff]
    %v70 = vld [vmem:[%s0 + $0x38] sm:$0xff]
    %v71 = vld [vmem:[%s2] sm:$0xff]
    %v72 = vld [vmem:[%s2 + $0x8] sm:$0xff]
    %v73 = vld [vmem:[%s2 + $0x10] sm:$0xff]
    %v74 = vld [vmem:[%s2 + $0x18] sm:$0xff]
    %v75 = vld [vmem:[%s3] sm:$0x1]
    %v77 = vlaneseq
    %v78 = vshrl.u32 %v77, 7
    %v79 = vsub.s32 0, %v78
    %v80 = vrot.slane %v75, %v79
    %vm82 = vcmask 261120
    %v84 = vsel %vm82, %v63, 0
    %v87 = vsel %vm82, %v64, 0
    %v90 = vsel %vm82, %v65, 0
    %v93 = vsel %vm82, %v66, 0
    %v96 = vsel %vm82, %v67, 0
    %v99 = vsel %vm82, %v68, 0
    %v102 = vsel %vm82, %v69, 0
    %v105 = vsel %vm82, %v70, 0
    %107 = vmatprep.subr.mxu0 0.0
    %108 = vmatpush1.msra.mxu0 %v71
    %109 = vmatprep.subr.mxu0 0.0
    %110 = vmatpush1.msra.mxu0 %v72
    %111 = vmatprep.subr.mxu0 0.0
    %112 = vmatpush1.msra.mxu0 %v73
    %113 = vmatprep.subr.mxu0 0.0
    %114 = vmatpush1.msra.mxu0 %v74
    %115 = vmatprep.subr.mxu0 0.0
    %116 = vmatpush1.msra.mxu0 0.0
    %117 = vmatprep.subr.mxu0 0.0
    %118 = vmatpush1.msra.mxu0 0.0
    %119 = vmatprep.subr.mxu0 0.0
    %120 = vmatpush1.msra.mxu0 0.0
    %121 = vmatprep.subr.mxu0 0.0
    %122 = vmatpush1.msra.mxu0 0.0
    %123 = vmatprep.subr.mxu0 0.0
    %124 = vmatpush1.msra.mxu0 0.0
    %125 = vmatprep.subr.mxu0 0.0
    %126 = vmatpush1.msra.mxu0 0.0
    %127 = vmatprep.subr.mxu0 0.0
    %128 = vmatpush1.msra.mxu0 0.0
    %129 = vmatprep.subr.mxu0 0.0
    %130 = vmatpush1.msra.mxu0 0.0
    %131 = vmatprep.subr.mxu0 0.0
    %132 = vmatpush1.msra.mxu0 0.0
    %133 = vmatprep.subr.mxu0 0.0
    %134 = vmatpush1.msra.mxu0 0.0
    %135 = vmatprep.subr.mxu0 0.0
    %136 = vmatpush1.msra.mxu0 0.0
    %137 = vmatprep.subr.mxu0 0.0
    %138 = vmatpush1.msra.mxu0 0.0
    %139 = vmatprep.subr.mxu0 0.0
    %140 = vmatpush1.msra.mxu0 0.0
    %141 = vmatprep.subr.mxu0 0.0
    %142 = vmatpush1.msra.mxu0 0.0
    %143 = vmatprep.subr.mxu0 0.0
    %144 = vmatpush1.msra.mxu0 0.0
    %145 = vmatprep.subr.mxu0 0.0
    %146 = vmatpush1.msra.mxu0 0.0
    %147 = vmatprep.subr.mxu0 0.0
    %148 = vmatpush1.msra.mxu0 0.0
    %149 = vmatprep.subr.mxu0 0.0
    %150 = vmatpush1.msra.mxu0 0.0
    %151 = vmatprep.subr.mxu0 0.0
    %152 = vmatpush1.msra.mxu0 0.0
    %153 = vmatprep.subr.mxu0 0.0
    %154 = vmatpush1.msra.mxu0 0.0
    %155 = vmatprep.subr.mxu0 0.0
    %156 = vmatpush1.msra.mxu0 0.0
    %157 = vmatprep.subr.mxu0 0.0
    %158 = vmatpush1.msra.mxu0 0.0
    %159 = vmatprep.subr.mxu0 0.0
    %160 = vmatpush1.msra.mxu0 0.0
    %161 = vmatprep.subr.mxu0 0.0
    %162 = vmatpush1.msra.mxu0 0.0
    %163 = vmatprep.subr.mxu0 0.0
    %164 = vmatpush1.msra.mxu0 0.0
    %165 = vmatprep.subr.mxu0 0.0
    %166 = vmatpush1.msra.mxu0 0.0
    %167 = vmatprep.subr.mxu0 0.0
    %168 = vmatpush1.msra.mxu0 0.0
    %169 = vmatprep.subr.mxu0 0.0
    %170 = vmatpush1.msra.mxu0 0.0
    %171 = vmatprep.mubr.f32.mxu0 0.0
    %172 = vmatmul.mubr.f32.gmra.mrb[0].mxu0 %v84
    %v173 = vpop.f32.mrb[0].mxu0
    %v174 = vadd.f32 %v80, %v173
    %v175 = vpop.f32.mrb[0].mxu0
    %176 = vmatprep.mubr.f32.mxu0 0.0
    %177 = vmatmul.mubr.f32.gmra.mrb[0].mxu0 %v87
    %v178 = vpop.f32.mrb[0].mxu0
    %v179 = vadd.f32 %v80, %v178
    %v180 = vpop.f32.mrb[0].mxu0
    %181 = vmatprep.mubr.f32.mxu0 0.0
    %182 = vmatmul.mubr.f32.gmra.mrb[0].mxu0 %v90
    %v183 = vpop.f32.mrb[0].mxu0
    %v184 = vadd.f32 %v80, %v183
    %v185 = vpop.f32.mrb[0].mxu0
    %186 = vmatprep.mubr.f32.mxu0 0.0
    %187 = vmatmul.mubr.f32.gmra.mrb[0].mxu0 %v93
    %v188 = vpop.f32.mrb[0].mxu0
    %v189 = vadd.f32 %v80, %v188
    %v190 = vpop.f32.mrb[0].mxu0
    %191 = vmatprep.mubr.f32.mxu0 0.0
    %192 = vmatmul.mubr.f32.gmra.mrb[0].mxu0 %v96
    %v193 = vpop.f32.mrb[0].mxu0
    %v194 = vadd.f32 %v80, %v193
    %v195 = vpop.f32.mrb[0].mxu0
    %196 = vmatprep.mubr.f32.mxu0 0.0
    %197 = vmatmul.mubr.f32.gmra.mrb[0].mxu0 %v99
    %v198 = vpop.f32.mrb[0].mxu0
    %v199 = vadd.f32 %v80, %v198
    %v200 = vpop.f32.mrb[0].mxu0
    %201 = vmatprep.mubr.f32.mxu0 0.0
    %202 = vmatmul.mubr.f32.gmra.mrb[0].mxu0 %v102
    %v203 = vpop.f32.mrb[0].mxu0
    %v204 = vadd.f32 %v80, %v203
    %v205 = vpop.f32.mrb[0].mxu0
    %206 = vmatprep.mubr.f32.mxu0 0.0
    %207 = vmatmul.mubr.f32.gmra.mrb[0].mxu0 %v105
    %v208 = vpop.f32.mrb[0].mxu0
    %v209 = vadd.f32 %v80, %v208
    %v210 = vpop.f32.mrb[0].mxu0
    %211 = vdwg.mxu0
    %v212 = vmax.f32 %v174, 0.0
    %v213 = vmax.f32 %v179, 0.0
    %v214 = vmax.f32 %v184, 0.0
    %v215 = vmax.f32 %v189, 0.0
    %v216 = vmax.f32 %v194, 0.0
    %v217 = vmax.f32 %v199, 0.0
    %v218 = vmax.f32 %v204, 0.0
    %v219 = vmax.f32 %v209, 0.0
    %v220 = vld [vmem:[%s4] sm:$0xff]
    %v221 = vld [vmem:[%s4 + $0x8] sm:$0xff]
    %v222 = vld [vmem:[%s4 + $0x10] sm:$0xff]
    %v223 = vld [vmem:[%s4 + $0x18] sm:$0xff]
    %v224 = vld [vmem:[%s4 + $0x20] sm:$0xff]
    %v225 = vld [vmem:[%s4 + $0x28] sm:$0xff]
    %v226 = vld [vmem:[%s4 + $0x30] sm:$0xff]
    %v227 = vld [vmem:[%s4 + $0x38] sm:$0xff]
    %v228 = vld [vmem:[%s4 + $0x40] sm:$0xff]
    %v229 = vld [vmem:[%s4 + $0x48] sm:$0xff]
    %v230 = vld [vmem:[%s4 + $0x50] sm:$0xff]
    %v231 = vld [vmem:[%s4 + $0x58] sm:$0xff]
    %v232 = vld [vmem:[%s4 + $0x60] sm:$0xff]
    %v233 = vld [vmem:[%s4 + $0x68] sm:$0xff]
    %v234 = vld [vmem:[%s4 + $0x70] sm:$0xff]
    %v235 = vld [vmem:[%s4 + $0x78] sm:$0xff]
    %v236 = vld [vmem:[%s4 + $0x80] sm:$0xff]
    %v237 = vld [vmem:[%s4 + $0x88] sm:$0xff]
    %v238 = vld [vmem:[%s4 + $0x90] sm:$0xff]
    %v239 = vld [vmem:[%s4 + $0x98] sm:$0xff]
    %v240 = vld [vmem:[%s4 + $0xa0] sm:$0xff]
    %v241 = vld [vmem:[%s4 + $0xa8] sm:$0xff]
    %v242 = vld [vmem:[%s4 + $0xb0] sm:$0xff]
    %v243 = vld [vmem:[%s4 + $0xb8] sm:$0xff]
    %v244 = vld [vmem:[%s4 + $0xc0] sm:$0xff]
    %v245 = vld [vmem:[%s4 + $0xc8] sm:$0xff]
    %v246 = vld [vmem:[%s4 + $0xd0] sm:$0xff]
    %v247 = vld [vmem:[%s4 + $0xd8] sm:$0xff]
    %v248 = vld [vmem:[%s4 + $0xe0] sm:$0xff]
    %v249 = vld [vmem:[%s4 + $0xe8] sm:$0xff]
    %v250 = vld [vmem:[%s4 + $0xf0] sm:$0xff]
    %v251 = vld [vmem:[%s4 + $0xf8] sm:$0xff]
    %v252 = vld [vmem:[%s5] sm:$0xff]
    %v254 = vlaneseq
    %v255 = vshrl.u32 %v254, 7
    %v256 = vsub.s32 0, %v255
    %v257 = vrot.slane %v252, %v256
    %v258 = vlaneseq
    %v259 = vshrl.u32 %v258, 7
    %v260 = vsub.s32 1, %v259
    %v261 = vrot.slane %v252, %v260
    %v262 = vlaneseq
    %v263 = vshrl.u32 %v262, 7
    %v264 = vsub.s32 2, %v263
    %v265 = vrot.slane %v252, %v264
    %v266 = vlaneseq
    %v267 = vshrl.u32 %v266, 7
    %v268 = vsub.s32 3, %v267
    %v269 = vrot.slane %v252, %v268
    %v270 = vlaneseq
    %v271 = vshrl.u32 %v270, 7
    %v272 = vsub.s32 4, %v271
    %v273 = vrot.slane %v252, %v272
    %v274 = vlaneseq
    %v275 = vshrl.u32 %v274, 7
    %v276 = vsub.s32 5, %v275
    %v277 = vrot.slane %v252, %v276
    %v278 = vlaneseq
    %v279 = vshrl.u32 %v278, 7
    %v280 = vsub.s32 6, %v279
    %v281 = vrot.slane %v252, %v280
    %v282 = vlaneseq
    %v283 = vshrl.u32 %v282, 7
    %v284 = vsub.s32 7, %v283
    %v285 = vrot.slane %v252, %v284
    %v295 = vsel %vm82, %v212, 0
    %v298 = vsel %vm82, %v213, 0
    %v301 = vsel %vm82, %v214, 0
    %v304 = vsel %vm82, %v215, 0
    %v307 = vsel %vm82, %v216, 0
    %v310 = vsel %vm82, %v217, 0
    %v313 = vsel %vm82, %v218, 0
    %v316 = vsel %vm82, %v219, 0
    %318 = vmatprep.subr.mxu0 %v221
    %319 = vmatpush1.msra.mxu0 %v220
    %320 = vmatprep.subr.mxu0 %v229
    %321 = vmatpush1.msra.mxu0 %v228
    %322 = vmatprep.subr.mxu0 %v237
    %323 = vmatpush1.msra.mxu0 %v236
    %324 = vmatprep.subr.mxu0 %v245
    %325 = vmatpush1.msra.mxu0 %v244
    %326 = vmatprep.subr.mxu0 0.0
    %327 = vmatpush1.msra.mxu0 0.0
    %328 = vmatprep.subr.mxu0 0.0
    %329 = vmatpush1.msra.mxu0 0.0
    %330 = vmatprep.subr.mxu0 0.0
    %331 = vmatpush1.msra.mxu0 0.0
    %332 = vmatprep.subr.mxu0 0.0
    %333 = vmatpush1.msra.mxu0 0.0
    %334 = vmatprep.subr.mxu0 0.0
    %335 = vmatpush1.msra.mxu0 0.0
    %336 = vmatprep.subr.mxu0 0.0
    %337 = vmatpush1.msra.mxu0 0.0
    %338 = vmatprep.subr.mxu0 0.0
    %339 = vmatpush1.msra.mxu0 0.0
    %340 = vmatprep.subr.mxu0 0.0
    %341 = vmatpush1.msra.mxu0 0.0
    %342 = vmatprep.subr.mxu0 0.0
    %343 = vmatpush1.msra.mxu0 0.0
    %344 = vmatprep.subr.mxu0 0.0
    %345 = vmatpush1.msra.mxu0 0.0
    %346 = vmatprep.subr.mxu0 0.0
    %347 = vmatpush1.msra.mxu0 0.0
    %348 = vmatprep.subr.mxu0 0.0
    %349 = vmatpush1.msra.mxu0 0.0
    %350 = vmatprep.subr.mxu0 0.0
    %351 = vmatpush1.msra.mxu0 0.0
    %352 = vmatprep.subr.mxu0 0.0
    %353 = vmatpush1.msra.mxu0 0.0
    %354 = vmatprep.subr.mxu0 0.0
    %355 = vmatpush1.msra.mxu0 0.0
    %356 = vmatprep.subr.mxu0 0.0
    %357 = vmatpush1.msra.mxu0 0.0
    %358 = vmatprep.subr.mxu0 0.0
    %359 = vmatpush1.msra.mxu0 0.0
    %360 = vmatprep.subr.mxu0 0.0
    %361 = vmatpush1.msra.mxu0 0.0
    %362 = vmatprep.subr.mxu0 0.0
    %363 = vmatpush1.msra.mxu0 0.0
    %364 = vmatprep.subr.mxu0 0.0
    %365 = vmatpush1.msra.mxu0 0.0
    %366 = vmatprep.subr.mxu0 0.0
    %367 = vmatpush1.msra.mxu0 0.0
    %368 = vmatprep.subr.mxu0 0.0
    %369 = vmatpush1.msra.mxu0 0.0
    %370 = vmatprep.subr.mxu0 0.0
    %371 = vmatpush1.msra.mxu0 0.0
    %372 = vmatprep.subr.mxu0 0.0
    %373 = vmatpush1.msra.mxu0 0.0
    %374 = vmatprep.subr.mxu0 0.0
    %375 = vmatpush1.msra.mxu0 0.0
    %376 = vmatprep.subr.mxu0 0.0
    %377 = vmatpush1.msra.mxu0 0.0
    %378 = vmatprep.subr.mxu0 0.0
    %379 = vmatpush1.msra.mxu0 0.0
    %380 = vmatprep.subr.mxu0 0.0
    %381 = vmatpush1.msra.mxu0 0.0
    %382 = vmatprep.mubr.f32.mxu0 0.0
    %383 = vmatmul.mubr.f32.gmra.mrb[0].mxu0 %v295
    %v384 = vpop.f32.mrb[0].mxu0
    %v385 = vadd.f32 %v257, %v384
    %v386 = vpop.f32.mrb[0].mxu0
    %v387 = vadd.f32 %v261, %v386
    %388 = vmatprep.mubr.f32.mxu0 0.0
    %389 = vmatmul.mubr.f32.gmra.mrb[0].mxu0 %v298
    %v390 = vpop.f32.mrb[0].mxu0
    %v391 = vadd.f32 %v257, %v390
    %v392 = vpop.f32.mrb[0].mxu0
    %v393 = vadd.f32 %v261, %v392
    %394 = vmatprep.mubr.f32.mxu0 0.0
    %395 = vmatmul.mubr.f32.gmra.mrb[0].mxu0 %v301
    %v396 = vpop.f32.mrb[0].mxu0
    %v397 = vadd.f32 %v257, %v396
    %v398 = vpop.f32.mrb[0].mxu0
    %v399 = vadd.f32 %v261, %v398
    %400 = vmatprep.mubr.f32.mxu0 0.0
    %401 = vmatmul.mubr.f32.gmra.mrb[0].mxu0 %v304
    %v402 = vpop.f32.mrb[0].mxu0
    %v403 = vadd.f32 %v257, %v402
    %v404 = vpop.f32.mrb[0].mxu0
    %v405 = vadd.f32 %v261, %v404
    %406 = vmatprep.mubr.f32.mxu0 0.0
    %407 = vmatmul.mubr.f32.gmra.mrb[0].mxu0 %v307
    %v408 = vpop.f32.mrb[0].mxu0
    %v409 = vadd.f32 %v257, %v408
    %v410 = vpop.f32.mrb[0].mxu0
    %v411 = vadd.f32 %v261, %v410
    %412 = vmatprep.mubr.f32.mxu0 0.0
    %413 = vmatmul.mubr.f32.gmra.mrb[0].mxu0 %v310
    %v414 = vpop.f32.mrb[0].mxu0
    %v415 = vadd.f32 %v257, %v414
    %v416 = vpop.f32.mrb[0].mxu0
    %v417 = vadd.f32 %v261, %v416
    %418 = vmatprep.mubr.f32.mxu0 0.0
    %419 = vmatmul.mubr.f32.gmra.mrb[0].mxu0 %v313
    %v420 = vpop.f32.mrb[0].mxu0
    %v421 = vadd.f32 %v257, %v420
    %v422 = vpop.f32.mrb[0].mxu0
    %v423 = vadd.f32 %v261, %v422
    %424 = vmatprep.mubr.f32.mxu0 0.0
    %425 = vmatmul.mubr.f32.gmra.mrb[0].mxu0 %v316
    %v426 = vpop.f32.mrb[0].mxu0
    %v427 = vadd.f32 %v257, %v426
    %v428 = vpop.f32.mrb[0].mxu0
    %v429 = vadd.f32 %v261, %v428
    %430 = vdwg.mxu0
    %431 = vmatprep.subr.mxu0 %v223
    %432 = vmatpush1.msra.mxu0 %v222
    %433 = vmatprep.subr.mxu0 %v231
    %434 = vmatpush1.msra.mxu0 %v230
    %435 = vmatprep.subr.mxu0 %v239
    %436 = vmatpush1.msra.mxu0 %v238
    %437 = vmatprep.subr.mxu0 %v247
    %438 = vmatpush1.msra.mxu0 %v246
    %439 = vmatprep.subr.mxu0 0.0
    %440 = vmatpush1.msra.mxu0 0.0
    %441 = vmatprep.subr.mxu0 0.0
    %442 = vmatpush1.msra.mxu0 0.0
    %443 = vmatprep.subr.mxu0 0.0
    %444 = vmatpush1.msra.mxu0 0.0
    %445 = vmatprep.subr.mxu0 0.0
    %446 = vmatpush1.msra.mxu0 0.0
    %447 = vmatprep.subr.mxu0 0.0
    %448 = vmatpush1.msra.mxu0 0.0
    %449 = vmatprep.subr.mxu0 0.0
    %450 = vmatpush1.msra.mxu0 0.0
    %451 = vmatprep.subr.mxu0 0.0
    %452 = vmatpush1.msra.mxu0 0.0
    %453 = vmatprep.subr.mxu0 0.0
    %454 = vmatpush1.msra.mxu0 0.0
    %455 = vmatprep.subr.mxu0 0.0
    %456 = vmatpush1.msra.mxu0 0.0
    %457 = vmatprep.subr.mxu0 0.0
    %458 = vmatpush1.msra.mxu0 0.0
    %459 = vmatprep.subr.mxu0 0.0
    %460 = vmatpush1.msra.mxu0 0.0
    %461 = vmatprep.subr.mxu0 0.0
    %462 = vmatpush1.msra.mxu0 0.0
    %463 = vmatprep.subr.mxu0 0.0
    %464 = vmatpush1.msra.mxu0 0.0
    %465 = vmatprep.subr.mxu0 0.0
    %466 = vmatpush1.msra.mxu0 0.0
    %467 = vmatprep.subr.mxu0 0.0
    %468 = vmatpush1.msra.mxu0 0.0
    %469 = vmatprep.subr.mxu0 0.0
    %470 = vmatpush1.msra.mxu0 0.0
    %471 = vmatprep.subr.mxu0 0.0
    %472 = vmatpush1.msra.mxu0 0.0
    %473 = vmatprep.subr.mxu0 0.0
    %474 = vmatpush1.msra.mxu0 0.0
    %475 = vmatprep.subr.mxu0 0.0
    %476 = vmatpush1.msra.mxu0 0.0
    %477 = vmatprep.subr.mxu0 0.0
    %478 = vmatpush1.msra.mxu0 0.0
    %479 = vmatprep.subr.mxu0 0.0
    %480 = vmatpush1.msra.mxu0 0.0
    %481 = vmatprep.subr.mxu0 0.0
    %482 = vmatpush1.msra.mxu0 0.0
    %483 = vmatprep.subr.mxu0 0.0
    %484 = vmatpush1.msra.mxu0 0.0
    %485 = vmatprep.subr.mxu0 0.0
    %486 = vmatpush1.msra.mxu0 0.0
    %487 = vmatprep.subr.mxu0 0.0
    %488 = vmatpush1.msra.mxu0 0.0
    %489 = vmatprep.subr.mxu0 0.0
    %490 = vmatpush1.msra.mxu0 0.0
    %491 = vmatprep.subr.mxu0 0.0
    %492 = vmatpush1.msra.mxu0 0.0
    %493 = vmatprep.subr.mxu0 0.0
    %494 = vmatpush1.msra.mxu0 0.0
    %495 = vmatprep.mubr.f32.mxu0 0.0
    %496 = vmatmul.mubr.f32.gmra.mrb[0].mxu0 %v295
    %v497 = vpop.f32.mrb[0].mxu0
    %v498 = vadd.f32 %v265, %v497
    %v499 = vpop.f32.mrb[0].mxu0
    %v500 = vadd.f32 %v269, %v499
    %501 = vmatprep.mubr.f32.mxu0 0.0
    %502 = vmatmul.mubr.f32.gmra.mrb[0].mxu0 %v298
    %v503 = vpop.f32.mrb[0].mxu0
    %v504 = vadd.f32 %v265, %v503
    %v505 = vpop.f32.mrb[0].mxu0
    %v506 = vadd.f32 %v269, %v505
    %507 = vmatprep.mubr.f32.mxu0 0.0
    %508 = vmatmul.mubr.f32.gmra.mrb[0].mxu0 %v301
    %v509 = vpop.f32.mrb[0].mxu0
    %v510 = vadd.f32 %v265, %v509
    %v511 = vpop.f32.mrb[0].mxu0
    %v512 = vadd.f32 %v269, %v511
    %513 = vmatprep.mubr.f32.mxu0 0.0
    %514 = vmatmul.mubr.f32.gmra.mrb[0].mxu0 %v304
    %v515 = vpop.f32.mrb[0].mxu0
    %v516 = vadd.f32 %v265, %v515
    %v517 = vpop.f32.mrb[0].mxu0
    %v518 = vadd.f32 %v269, %v517
    %519 = vmatprep.mubr.f32.mxu0 0.0
    %520 = vmatmul.mubr.f32.gmra.mrb[0].mxu0 %v307
    %v521 = vpop.f32.mrb[0].mxu0
    %v522 = vadd.f32 %v265, %v521
    %v523 = vpop.f32.mrb[0].mxu0
    %v524 = vadd.f32 %v269, %v523
    %525 = vmatprep.mubr.f32.mxu0 0.0
    %526 = vmatmul.mubr.f32.gmra.mrb[0].mxu0 %v310
    %v527 = vpop.f32.mrb[0].mxu0
    %v528 = vadd.f32 %v265, %v527
    %v529 = vpop.f32.mrb[0].mxu0
    %v530 = vadd.f32 %v269, %v529
    %531 = vmatprep.mubr.f32.mxu0 0.0
    %532 = vmatmul.mubr.f32.gmra.mrb[0].mxu0 %v313
    %v533 = vpop.f32.mrb[0].mxu0
    %v534 = vadd.f32 %v265, %v533
    %v535 = vpop.f32.mrb[0].mxu0
    %v536 = vadd.f32 %v269, %v535
    %537 = vmatprep.mubr.f32.mxu0 0.0
    %538 = vmatmul.mubr.f32.gmra.mrb[0].mxu0 %v316
    %v539 = vpop.f32.mrb[0].mxu0
    %v540 = vadd.f32 %v265, %v539
    %v541 = vpop.f32.mrb[0].mxu0
    %v542 = vadd.f32 %v269, %v541
    %543 = vdwg.mxu0
    %544 = vmatprep.subr.mxu0 %v225
    %545 = vmatpush1.msra.mxu0 %v224
    %546 = vmatprep.subr.mxu0 %v233
    %547 = vmatpush1.msra.mxu0 %v232
    %548 = vmatprep.subr.mxu0 %v241
    %549 = vmatpush1.msra.mxu0 %v240
    %550 = vmatprep.subr.mxu0 %v249
    %551 = vmatpush1.msra.mxu0 %v248
    %552 = vmatprep.subr.mxu0 0.0
    %553 = vmatpush1.msra.mxu0 0.0
    %554 = vmatprep.subr.mxu0 0.0
    %555 = vmatpush1.msra.mxu0 0.0
    %556 = vmatprep.subr.mxu0 0.0
    %557 = vmatpush1.msra.mxu0 0.0
    %558 = vmatprep.subr.mxu0 0.0
    %559 = vmatpush1.msra.mxu0 0.0
    %560 = vmatprep.subr.mxu0 0.0
    %561 = vmatpush1.msra.mxu0 0.0
    %562 = vmatprep.subr.mxu0 0.0
    %563 = vmatpush1.msra.mxu0 0.0
    %564 = vmatprep.subr.mxu0 0.0
    %565 = vmatpush1.msra.mxu0 0.0
    %566 = vmatprep.subr.mxu0 0.0
    %567 = vmatpush1.msra.mxu0 0.0
    %568 = vmatprep.subr.mxu0 0.0
    %569 = vmatpush1.msra.mxu0 0.0
    %570 = vmatprep.subr.mxu0 0.0
    %571 = vmatpush1.msra.mxu0 0.0
    %572 = vmatprep.subr.mxu0 0.0
    %573 = vmatpush1.msra.mxu0 0.0
    %574 = vmatprep.subr.mxu0 0.0
    %575 = vmatpush1.msra.mxu0 0.0
    %576 = vmatprep.subr.mxu0 0.0
    %577 = vmatpush1.msra.mxu0 0.0
    %578 = vmatprep.subr.mxu0 0.0
    %579 = vmatpush1.msra.mxu0 0.0
    %580 = vmatprep.subr.mxu0 0.0
    %581 = vmatpush1.msra.mxu0 0.0
    %582 = vmatprep.subr.mxu0 0.0
    %583 = vmatpush1.msra.mxu0 0.0
    %584 = vmatprep.subr.mxu0 0.0
    %585 = vmatpush1.msra.mxu0 0.0
    %586 = vmatprep.subr.mxu0 0.0
    %587 = vmatpush1.msra.mxu0 0.0
    %588 = vmatprep.subr.mxu0 0.0
    %589 = vmatpush1.msra.mxu0 0.0
    %590 = vmatprep.subr.mxu0 0.0
    %591 = vmatpush1.msra.mxu0 0.0
    %592 = vmatprep.subr.mxu0 0.0
    %593 = vmatpush1.msra.mxu0 0.0
    %594 = vmatprep.subr.mxu0 0.0
    %595 = vmatpush1.msra.mxu0 0.0
    %596 = vmatprep.subr.mxu0 0.0
    %597 = vmatpush1.msra.mxu0 0.0
    %598 = vmatprep.subr.mxu0 0.0
    %599 = vmatpush1.msra.mxu0 0.0
    %600 = vmatprep.subr.mxu0 0.0
    %601 = vmatpush1.msra.mxu0 0.0
    %602 = vmatprep.subr.mxu0 0.0
    %603 = vmatpush1.msra.mxu0 0.0
    %604 = vmatprep.subr.mxu0 0.0
    %605 = vmatpush1.msra.mxu0 0.0
    %606 = vmatprep.subr.mxu0 0.0
    %607 = vmatpush1.msra.mxu0 0.0
    %608 = vmatprep.mubr.f32.mxu0 0.0
    %609 = vmatmul.mubr.f32.gmra.mrb[0].mxu0 %v295
    %v610 = vpop.f32.mrb[0].mxu0
    %v611 = vadd.f32 %v273, %v610
    %v612 = vpop.f32.mrb[0].mxu0
    %v613 = vadd.f32 %v277, %v612
    %614 = vmatprep.mubr.f32.mxu0 0.0
    %615 = vmatmul.mubr.f32.gmra.mrb[0].mxu0 %v298
    %v616 = vpop.f32.mrb[0].mxu0
    %v617 = vadd.f32 %v273, %v616
    %v618 = vpop.f32.mrb[0].mxu0
    %v619 = vadd.f32 %v277, %v618
    %620 = vmatprep.mubr.f32.mxu0 0.0
    %621 = vmatmul.mubr.f32.gmra.mrb[0].mxu0 %v301
    %v622 = vpop.f32.mrb[0].mxu0
    %v623 = vadd.f32 %v273, %v622
    %v624 = vpop.f32.mrb[0].mxu0
    %v625 = vadd.f32 %v277, %v624
    %626 = vmatprep.mubr.f32.mxu0 0.0
    %627 = vmatmul.mubr.f32.gmra.mrb[0].mxu0 %v304
    %v628 = vpop.f32.mrb[0].mxu0
    %v629 = vadd.f32 %v273, %v628
    %v630 = vpop.f32.mrb[0].mxu0
    %v631 = vadd.f32 %v277, %v630
    %632 = vmatprep.mubr.f32.mxu0 0.0
    %633 = vmatmul.mubr.f32.gmra.mrb[0].mxu0 %v307
    %v634 = vpop.f32.mrb[0].mxu0
    %v635 = vadd.f32 %v273, %v634
    %v636 = vpop.f32.mrb[0].mxu0
    %v637 = vadd.f32 %v277, %v636
    %638 = vmatprep.mubr.f32.mxu0 0.0
    %639 = vmatmul.mubr.f32.gmra.mrb[0].mxu0 %v310
    %v640 = vpop.f32.mrb[0].mxu0
    %v641 = vadd.f32 %v273, %v640
    %v642 = vpop.f32.mrb[0].mxu0
    %v643 = vadd.f32 %v277, %v642
    %644 = vmatprep.mubr.f32.mxu0 0.0
    %645 = vmatmul.mubr.f32.gmra.mrb[0].mxu0 %v313
    %v646 = vpop.f32.mrb[0].mxu0
    %v647 = vadd.f32 %v273, %v646
    %v648 = vpop.f32.mrb[0].mxu0
    %v649 = vadd.f32 %v277, %v648
    %650 = vmatprep.mubr.f32.mxu0 0.0
    %651 = vmatmul.mubr.f32.gmra.mrb[0].mxu0 %v316
    %v652 = vpop.f32.mrb[0].mxu0
    %v653 = vadd.f32 %v273, %v652
    %v654 = vpop.f32.mrb[0].mxu0
    %v655 = vadd.f32 %v277, %v654
    %656 = vdwg.mxu0
    %657 = vmatprep.subr.mxu0 %v227
    %658 = vmatpush1.msra.mxu0 %v226
    %659 = vmatprep.subr.mxu0 %v235
    %660 = vmatpush1.msra.mxu0 %v234
    %661 = vmatprep.subr.mxu0 %v243
    %662 = vmatpush1.msra.mxu0 %v242
    %663 = vmatprep.subr.mxu0 %v251
    %664 = vmatpush1.msra.mxu0 %v250
    %665 = vmatprep.subr.mxu0 0.0
    %666 = vmatpush1.msra.mxu0 0.0
    %667 = vmatprep.subr.mxu0 0.0
    %668 = vmatpush1.msra.mxu0 0.0
    %669 = vmatprep.subr.mxu0 0.0
    %670 = vmatpush1.msra.mxu0 0.0
    %671 = vmatprep.subr.mxu0 0.0
    %672 = vmatpush1.msra.mxu0 0.0
    %673 = vmatprep.subr.mxu0 0.0
    %674 = vmatpush1.msra.mxu0 0.0
    %675 = vmatprep.subr.mxu0 0.0
    %676 = vmatpush1.msra.mxu0 0.0
    %677 = vmatprep.subr.mxu0 0.0
    %678 = vmatpush1.msra.mxu0 0.0
    %679 = vmatprep.subr.mxu0 0.0
    %680 = vmatpush1.msra.mxu0 0.0
    %681 = vmatprep.subr.mxu0 0.0
    %682 = vmatpush1.msra.mxu0 0.0
    %683 = vmatprep.subr.mxu0 0.0
    %684 = vmatpush1.msra.mxu0 0.0
    %685 = vmatprep.subr.mxu0 0.0
    %686 = vmatpush1.msra.mxu0 0.0
    %687 = vmatprep.subr.mxu0 0.0
    %688 = vmatpush1.msra.mxu0 0.0
    %689 = vmatprep.subr.mxu0 0.0
    %690 = vmatpush1.msra.mxu0 0.0
    %691 = vmatprep.subr.mxu0 0.0
    %692 = vmatpush1.msra.mxu0 0.0
    %693 = vmatprep.subr.mxu0 0.0
    %694 = vmatpush1.msra.mxu0 0.0
    %695 = vmatprep.subr.mxu0 0.0
    %696 = vmatpush1.msra.mxu0 0.0
    %697 = vmatprep.subr.mxu0 0.0
    %698 = vmatpush1.msra.mxu0 0.0
    %699 = vmatprep.subr.mxu0 0.0
    %700 = vmatpush1.msra.mxu0 0.0
    %701 = vmatprep.subr.mxu0 0.0
    %702 = vmatpush1.msra.mxu0 0.0
    %703 = vmatprep.subr.mxu0 0.0
    %704 = vmatpush1.msra.mxu0 0.0
    %705 = vmatprep.subr.mxu0 0.0
    %706 = vmatpush1.msra.mxu0 0.0
    %707 = vmatprep.subr.mxu0 0.0
    %708 = vmatpush1.msra.mxu0 0.0
    %709 = vmatprep.subr.mxu0 0.0
    %710 = vmatpush1.msra.mxu0 0.0
    %711 = vmatprep.subr.mxu0 0.0
    %712 = vmatpush1.msra.mxu0 0.0
    %713 = vmatprep.subr.mxu0 0.0
    %714 = vmatpush1.msra.mxu0 0.0
    %715 = vmatprep.subr.mxu0 0.0
    %716 = vmatpush1.msra.mxu0 0.0
    %717 = vmatprep.subr.mxu0 0.0
    %718 = vmatpush1.msra.mxu0 0.0
    %719 = vmatprep.subr.mxu0 0.0
    %720 = vmatpush1.msra.mxu0 0.0
    %721 = vmatprep.mubr.f32.mxu0 0.0
    %722 = vmatmul.mubr.f32.gmra.mrb[0].mxu0 %v295
    %v723 = vpop.f32.mrb[0].mxu0
    %v724 = vadd.f32 %v281, %v723
    %v725 = vpop.f32.mrb[0].mxu0
    %v726 = vadd.f32 %v285, %v725
    %727 = vmatprep.mubr.f32.mxu0 0.0
    %728 = vmatmul.mubr.f32.gmra.mrb[0].mxu0 %v298
    %v729 = vpop.f32.mrb[0].mxu0
    %v730 = vadd.f32 %v281, %v729
    %v731 = vpop.f32.mrb[0].mxu0
    %v732 = vadd.f32 %v285, %v731
    %733 = vmatprep.mubr.f32.mxu0 0.0
    %734 = vmatmul.mubr.f32.gmra.mrb[0].mxu0 %v301
    %v735 = vpop.f32.mrb[0].mxu0
    %v736 = vadd.f32 %v281, %v735
    %v737 = vpop.f32.mrb[0].mxu0
    %v738 = vadd.f32 %v285, %v737
    %739 = vmatprep.mubr.f32.mxu0 0.0
    %740 = vmatmul.mubr.f32.gmra.mrb[0].mxu0 %v304
    %v741 = vpop.f32.mrb[0].mxu0
    %v742 = vadd.f32 %v281, %v741
    %v743 = vpop.f32.mrb[0].mxu0
    %v744 = vadd.f32 %v285, %v743
    %745 = vmatprep.mubr.f32.mxu0 0.0
    %746 = vmatmul.mubr.f32.gmra.mrb[0].mxu0 %v307
    %v747 = vpop.f32.mrb[0].mxu0
    %v748 = vadd.f32 %v281, %v747
    %v749 = vpop.f32.mrb[0].mxu0
    %v750 = vadd.f32 %v285, %v749
    %751 = vmatprep.mubr.f32.mxu0 0.0
    %752 = vmatmul.mubr.f32.gmra.mrb[0].mxu0 %v310
    %v753 = vpop.f32.mrb[0].mxu0
    %v754 = vadd.f32 %v281, %v753
    %v755 = vpop.f32.mrb[0].mxu0
    %v756 = vadd.f32 %v285, %v755
    %757 = vmatprep.mubr.f32.mxu0 0.0
    %758 = vmatmul.mubr.f32.gmra.mrb[0].mxu0 %v313
    %v759 = vpop.f32.mrb[0].mxu0
    %v760 = vadd.f32 %v281, %v759
    %v761 = vpop.f32.mrb[0].mxu0
    %v762 = vadd.f32 %v285, %v761
    %763 = vmatprep.mubr.f32.mxu0 0.0
    %764 = vmatmul.mubr.f32.gmra.mrb[0].mxu0 %v316
    %v765 = vpop.f32.mrb[0].mxu0
    %v766 = vadd.f32 %v281, %v765
    %v767 = vpop.f32.mrb[0].mxu0
    %v768 = vadd.f32 %v285, %v767
    %769 = vdwg.mxu0
    %770 = vst [vmem:[#allocation2] sm:$0xff] %v385
    %771 = vst [vmem:[#allocation2 + $0x8] sm:$0xff] %v387
    %772 = vst [vmem:[#allocation2 + $0x10] sm:$0xff] %v498
    %773 = vst [vmem:[#allocation2 + $0x18] sm:$0xff] %v500
    %774 = vst [vmem:[#allocation2 + $0x20] sm:$0xff] %v611
    %775 = vst [vmem:[#allocation2 + $0x28] sm:$0xff] %v613
    %776 = vst [vmem:[#allocation2 + $0x30] sm:$0xff] %v724
    %777 = vst [vmem:[#allocation2 + $0x38] sm:$0xff] %v726
    %778 = vst [vmem:[#allocation2 + $0x40] sm:$0xff] %v391
    %779 = vst [vmem:[#allocation2 + $0x48] sm:$0xff] %v393
    %780 = vst [vmem:[#allocation2 + $0x50] sm:$0xff] %v504
    %781 = vst [vmem:[#allocation2 + $0x58] sm:$0xff] %v506
    %782 = vst [vmem:[#allocation2 + $0x60] sm:$0xff] %v617
    %783 = vst [vmem:[#allocation2 + $0x68] sm:$0xff] %v619
    %784 = vst [vmem:[#allocation2 + $0x70] sm:$0xff] %v730
    %785 = vst [vmem:[#allocation2 + $0x78] sm:$0xff] %v732
    %786 = vst [vmem:[#allocation2 + $0x80] sm:$0xff] %v397
    %787 = vst [vmem:[#allocation2 + $0x88] sm:$0xff] %v399
    %788 = vst [vmem:[#allocation2 + $0x90] sm:$0xff] %v510
    %789 = vst [vmem:[#allocation2 + $0x98] sm:$0xff] %v512
    %790 = vst [vmem:[#allocation2 + $0xa0] sm:$0xff] %v623
    %791 = vst [vmem:[#allocation2 + $0xa8] sm:$0xff] %v625
    %792 = vst [vmem:[#allocation2 + $0xb0] sm:$0xff] %v736
    %793 = vst [vmem:[#allocation2 + $0xb8] sm:$0xff] %v738
    %794 = vst [vmem:[#allocation2 + $0xc0] sm:$0xff] %v403
    %795 = vst [vmem:[#allocation2 + $0xc8] sm:$0xff] %v405
    %796 = vst [vmem:[#allocation2 + $0xd0] sm:$0xff] %v516
    %797 = vst [vmem:[#allocation2 + $0xd8] sm:$0xff] %v518
    %798 = vst [vmem:[#allocation2 + $0xe0] sm:$0xff] %v629
    %799 = vst [vmem:[#allocation2 + $0xe8] sm:$0xff] %v631
    %800 = vst [vmem:[#allocation2 + $0xf0] sm:$0xff] %v742
    %801 = vst [vmem:[#allocation2 + $0xf8] sm:$0xff] %v744
    %802 = vst [vmem:[#allocation2 + $0x100] sm:$0xff] %v409
    %803 = vst [vmem:[#allocation2 + $0x108] sm:$0xff] %v411
    %804 = vst [vmem:[#allocation2 + $0x110] sm:$0xff] %v522
    %805 = vst [vmem:[#allocation2 + $0x118] sm:$0xff] %v524
    %806 = vst [vmem:[#allocation2 + $0x120] sm:$0xff] %v635
    %807 = vst [vmem:[#allocation2 + $0x128] sm:$0xff] %v637
    %808 = vst [vmem:[#allocation2 + $0x130] sm:$0xff] %v748
    %809 = vst [vmem:[#allocation2 + $0x138] sm:$0xff] %v750
    %810 = vst [vmem:[#allocation2 + $0x140] sm:$0xff] %v415
    %811 = vst [vmem:[#allocation2 + $0x148] sm:$0xff] %v417
    %812 = vst [vmem:[#allocation2 + $0x150] sm:$0xff] %v528
    %813 = vst [vmem:[#allocation2 + $0x158] sm:$0xff] %v530
    %814 = vst [vmem:[#allocation2 + $0x160] sm:$0xff] %v641
    %815 = vst [vmem:[#allocation2 + $0x168] sm:$0xff] %v643
    %816 = vst [vmem:[#allocation2 + $0x170] sm:$0xff] %v754
    %817 = vst [vmem:[#allocation2 + $0x178] sm:$0xff] %v756
    %818 = vst [vmem:[#allocation2 + $0x180] sm:$0xff] %v421
    %819 = vst [vmem:[#allocation2 + $0x188] sm:$0xff] %v423
    %820 = vst [vmem:[#allocation2 + $0x190] sm:$0xff] %v534
    %821 = vst [vmem:[#allocation2 + $0x198] sm:$0xff] %v536
    %822 = vst [vmem:[#allocation2 + $0x1a0] sm:$0xff] %v647
    %823 = vst [vmem:[#allocation2 + $0x1a8] sm:$0xff] %v649
    %824 = vst [vmem:[#allocation2 + $0x1b0] sm:$0xff] %v760
    %825 = vst [vmem:[#allocation2 + $0x1b8] sm:$0xff] %v762
    %826 = vst [vmem:[#allocation2 + $0x1c0] sm:$0xff] %v427
    %827 = vst [vmem:[#allocation2 + $0x1c8] sm:$0xff] %v429
    %828 = vst [vmem:[#allocation2 + $0x1d0] sm:$0xff] %v540
    %829 = vst [vmem:[#allocation2 + $0x1d8] sm:$0xff] %v542
    %830 = vst [vmem:[#allocation2 + $0x1e0] sm:$0xff] %v653
    %831 = vst [vmem:[#allocation2 + $0x1e8] sm:$0xff] %v655
    %832 = vst [vmem:[#allocation2 + $0x1f0] sm:$0xff] %v766
    %833 = vst [vmem:[#allocation2 + $0x1f8] sm:$0xff] %v768
    %v834 = vld [vmem:[%s6] sm:$0xff]
    %v835 = vld [vmem:[%s6 + $0x8] sm:$0xff]
    %v836 = vld [vmem:[%s6 + $0x10] sm:$0xff]
    %v837 = vld [vmem:[%s6 + $0x18] sm:$0xff]
    %v838 = vld [vmem:[%s6 + $0x20] sm:$0xff]
    %v839 = vld [vmem:[%s6 + $0x28] sm:$0xff]
    %v840 = vld [vmem:[%s6 + $0x30] sm:$0xff]
    %v841 = vld [vmem:[%s6 + $0x38] sm:$0xff]
    %v842 = vld [vmem:[%s6 + $0x40] sm:$0xff]
    %v843 = vld [vmem:[%s6 + $0x48] sm:$0xff]
    %v844 = vld [vmem:[%s6 + $0x50] sm:$0xff]
    %v845 = vld [vmem:[%s6 + $0x58] sm:$0xff]
    %v846 = vld [vmem:[%s6 + $0x60] sm:$0xff]
    %v847 = vld [vmem:[%s6 + $0x68] sm:$0xff]
    %v848 = vld [vmem:[%s6 + $0x70] sm:$0xff]
    %v849 = vld [vmem:[%s6 + $0x78] sm:$0xff]
    %v850 = vld [vmem:[%s6 + $0x80] sm:$0xff]
    %v851 = vld [vmem:[%s6 + $0x88] sm:$0xff]
    %v852 = vld [vmem:[%s6 + $0x90] sm:$0xff]
    %v853 = vld [vmem:[%s6 + $0x98] sm:$0xff]
    %v854 = vld [vmem:[%s6 + $0xa0] sm:$0xff]
    %v855 = vld [vmem:[%s6 + $0xa8] sm:$0xff]
    %v856 = vld [vmem:[%s6 + $0xb0] sm:$0xff]
    %v857 = vld [vmem:[%s6 + $0xb8] sm:$0xff]
    %v858 = vld [vmem:[%s6 + $0xc0] sm:$0xff]
    %v859 = vld [vmem:[%s6 + $0xc8] sm:$0xff]
    %v860 = vld [vmem:[%s6 + $0xd0] sm:$0xff]
    %v861 = vld [vmem:[%s6 + $0xd8] sm:$0xff]
    %v862 = vld [vmem:[%s6 + $0xe0] sm:$0xff]
    %v863 = vld [vmem:[%s6 + $0xe8] sm:$0xff]
    %v864 = vld [vmem:[%s6 + $0xf0] sm:$0xff]
    %v865 = vld [vmem:[%s6 + $0xf8] sm:$0xff]
    %v866 = vld [vmem:[%s6 + $0x100] sm:$0xff]
    %v867 = vld [vmem:[%s6 + $0x108] sm:$0xff]
    %v868 = vld [vmem:[%s6 + $0x110] sm:$0xff]
    %v869 = vld [vmem:[%s6 + $0x118] sm:$0xff]
    %v870 = vld [vmem:[%s6 + $0x120] sm:$0xff]
    %v871 = vld [vmem:[%s6 + $0x128] sm:$0xff]
    %v872 = vld [vmem:[%s6 + $0x130] sm:$0xff]
    %v873 = vld [vmem:[%s6 + $0x138] sm:$0xff]
    %v874 = vld [vmem:[%s6 + $0x140] sm:$0xff]
    %v875 = vld [vmem:[%s6 + $0x148] sm:$0xff]
    %v876 = vld [vmem:[%s6 + $0x150] sm:$0xff]
    %v877 = vld [vmem:[%s6 + $0x158] sm:$0xff]
    %v878 = vld [vmem:[%s6 + $0x160] sm:$0xff]
    %v879 = vld [vmem:[%s6 + $0x168] sm:$0xff]
    %v880 = vld [vmem:[%s6 + $0x170] sm:$0xff]
    %v881 = vld [vmem:[%s6 + $0x178] sm:$0xff]
    %v882 = vld [vmem:[%s6 + $0x180] sm:$0xff]
    %v883 = vld [vmem:[%s6 + $0x188] sm:$0xff]
    %v884 = vld [vmem:[%s6 + $0x190] sm:$0xff]
    %v885 = vld [vmem:[%s6 + $0x198] sm:$0xff]
    %v886 = vld [vmem:[%s6 + $0x1a0] sm:$0xff]
    %v887 = vld [vmem:[%s6 + $0x1a8] sm:$0xff]
    %v888 = vld [vmem:[%s6 + $0x1b0] sm:$0xff]
    %v889 = vld [vmem:[%s6 + $0x1b8] sm:$0xff]
    %v890 = vld [vmem:[%s6 + $0x1c0] sm:$0xff]
    %v891 = vld [vmem:[%s6 + $0x1c8] sm:$0xff]
    %v892 = vld [vmem:[%s6 + $0x1d0] sm:$0xff]
    %v893 = vld [vmem:[%s6 + $0x1d8] sm:$0xff]
    %v894 = vld [vmem:[%s6 + $0x1e0] sm:$0xff]
    %v895 = vld [vmem:[%s6 + $0x1e8] sm:$0xff]
    %v896 = vld [vmem:[%s6 + $0x1f0] sm:$0xff]
    %v897 = vld [vmem:[%s6 + $0x1f8] sm:$0xff]
    %v898 = vld [vmem:[#allocation4] sm:$0xff]
    %v899 = vld [vmem:[#allocation4 + $0x8] sm:$0xff]
    %v900 = vld [vmem:[#allocation4 + $0x10] sm:$0xff]
    %v901 = vld [vmem:[#allocation4 + $0x18] sm:$0xff]
    %v902 = vld [vmem:[#allocation4 + $0x20] sm:$0xff]
    %v903 = vld [vmem:[#allocation4 + $0x28] sm:$0xff]
    %v904 = vld [vmem:[#allocation4 + $0x30] sm:$0xff]
    %v905 = vld [vmem:[#allocation4 + $0x38] sm:$0xff]
    %v906 = vld [vmem:[#allocation4 + $0x40] sm:$0xff]
    %v907 = vld [vmem:[#allocation4 + $0x48] sm:$0xff]
    %v908 = vld [vmem:[#allocation4 + $0x50] sm:$0xff]
    %v909 = vld [vmem:[#allocation4 + $0x58] sm:$0xff]
    %v910 = vld [vmem:[#allocation4 + $0x60] sm:$0xff]
    %v911 = vld [vmem:[#allocation4 + $0x68] sm:$0xff]
    %v912 = vld [vmem:[#allocation4 + $0x70] sm:$0xff]
    %v913 = vld [vmem:[#allocation4 + $0x78] sm:$0xff]
    %v914 = vld [vmem:[#allocation4 + $0x80] sm:$0xff]
    %v915 = vld [vmem:[#allocation4 + $0x88] sm:$0xff]
    %v916 = vld [vmem:[#allocation4 + $0x90] sm:$0xff]
    %v917 = vld [vmem:[#allocation4 + $0x98] sm:$0xff]
    %v918 = vld [vmem:[#allocation4 + $0xa0] sm:$0xff]
    %v919 = vld [vmem:[#allocation4 + $0xa8] sm:$0xff]
    %v920 = vld [vmem:[#allocation4 + $0xb0] sm:$0xff]
    %v921 = vld [vmem:[#allocation4 + $0xb8] sm:$0xff]
    %v922 = vld [vmem:[#allocation4 + $0xc0] sm:$0xff]
    %v923 = vld [vmem:[#allocation4 + $0xc8] sm:$0xff]
    %v924 = vld [vmem:[#allocation4 + $0xd0] sm:$0xff]
    %v925 = vld [vmem:[#allocation4 + $0xd8] sm:$0xff]
    %v926 = vld [vmem:[#allocation4 + $0xe0] sm:$0xff]
    %v927 = vld [vmem:[#allocation4 + $0xe8] sm:$0xff]
    %v928 = vld [vmem:[#allocation4 + $0xf0] sm:$0xff]
    %v929 = vld [vmem:[#allocation4 + $0xf8] sm:$0xff]
    %v930 = vld [vmem:[#allocation4 + $0x100] sm:$0xff]
    %v931 = vld [vmem:[#allocation4 + $0x108] sm:$0xff]
    %v932 = vld [vmem:[#allocation4 + $0x110] sm:$0xff]
    %v933 = vld [vmem:[#allocation4 + $0x118] sm:$0xff]
    %v934 = vld [vmem:[#allocation4 + $0x120] sm:$0xff]
    %v935 = vld [vmem:[#allocation4 + $0x128] sm:$0xff]
    %v936 = vld [vmem:[#allocation4 + $0x130] sm:$0xff]
    %v937 = vld [vmem:[#allocation4 + $0x138] sm:$0xff]
    %v938 = vld [vmem:[#allocation4 + $0x140] sm:$0xff]
    %v939 = vld [vmem:[#allocation4 + $0x148] sm:$0xff]
    %v940 = vld [vmem:[#allocation4 + $0x150] sm:$0xff]
    %v941 = vld [vmem:[#allocation4 + $0x158] sm:$0xff]
    %v942 = vld [vmem:[#allocation4 + $0x160] sm:$0xff]
    %v943 = vld [vmem:[#allocation4 + $0x168] sm:$0xff]
    %v944 = vld [vmem:[#allocation4 + $0x170] sm:$0xff]
    %v945 = vld [vmem:[#allocation4 + $0x178] sm:$0xff]
    %v946 = vld [vmem:[#allocation4 + $0x180] sm:$0xff]
    %v947 = vld [vmem:[#allocation4 + $0x188] sm:$0xff]
    %v948 = vld [vmem:[#allocation4 + $0x190] sm:$0xff]
    %v949 = vld [vmem:[#allocation4 + $0x198] sm:$0xff]
    %v950 = vld [vmem:[#allocation4 + $0x1a0] sm:$0xff]
    %v951 = vld [vmem:[#allocation4 + $0x1a8] sm:$0xff]
    %v952 = vld [vmem:[#allocation4 + $0x1b0] sm:$0xff]
    %v953 = vld [vmem:[#allocation4 + $0x1b8] sm:$0xff]
    %v954 = vld [vmem:[#allocation4 + $0x1c0] sm:$0xff]
    %v955 = vld [vmem:[#allocation4 + $0x1c8] sm:$0xff]
    %v956 = vld [vmem:[#allocation4 + $0x1d0] sm:$0xff]
    %v957 = vld [vmem:[#allocation4 + $0x1d8] sm:$0xff]
    %v958 = vld [vmem:[#allocation4 + $0x1e0] sm:$0xff]
    %v959 = vld [vmem:[#allocation4 + $0x1e8] sm:$0xff]
    %v960 = vld [vmem:[#allocation4 + $0x1f0] sm:$0xff]
    %v961 = vld [vmem:[#allocation4 + $0x1f8] sm:$0xff]
    %v962 = vld [vmem:[%s1] sm:$0xff]
    %s963 = smul.u32 0, 8
    %s964 = smul.addr %s963, 8
    %s965 = scalar_lea.vmem [#allocation2], %s964
    %v966 = vld [vmem:[%s965] sm:$0xff]
    %v967 = vld [vmem:[%s965 + $0x8] sm:$0xff]
    %v968 = vld [vmem:[%s965 + $0x10] sm:$0xff]
    %v969 = vld [vmem:[%s965 + $0x18] sm:$0xff]
    %970 = vmatprep.subr.mxu0 %v835
    %971 = vmatpush1.msra.mxu0 %v834
    %972 = vmatprep.subr.mxu0 %v839
    %973 = vmatpush1.msra.mxu0 %v838
    %974 = vmatprep.subr.mxu0 %v843
    %975 = vmatpush1.msra.mxu0 %v842
    %976 = vmatprep.subr.mxu0 %v847
    %977 = vmatpush1.msra.mxu0 %v846
    %978 = vmatprep.subr.mxu0 %v851
    %979 = vmatpush1.msra.mxu0 %v850
    %980 = vmatprep.subr.mxu0 %v855
    %981 = vmatpush1.msra.mxu0 %v854
    %982 = vmatprep.subr.mxu0 %v859
    %983 = vmatpush1.msra.mxu0 %v858
    %984 = vmatprep.subr.mxu0 %v863
    %985 = vmatpush1.msra.mxu0 %v862
    %986 = vmatprep.subr.mxu0 %v867
    %987 = vmatpush1.msra.mxu0 %v866
    %988 = vmatprep.subr.mxu0 %v871
    %989 = vmatpush1.msra.mxu0 %v870
    %990 = vmatprep.subr.mxu0 %v875
    %991 = vmatpush1.msra.mxu0 %v874
    %992 = vmatprep.subr.mxu0 %v879
    %993 = vmatpush1.msra.mxu0 %v878
    %994 = vmatprep.subr.mxu0 %v883
    %995 = vmatpush1.msra.mxu0 %v882
    %996 = vmatprep.subr.mxu0 %v887
    %997 = vmatpush1.msra.mxu0 %v886
    %998 = vmatprep.subr.mxu0 %v891
    %999 = vmatpush1.msra.mxu0 %v890
    %1000 = vmatprep.subr.mxu0 %v895
    %1001 = vmatpush1.msra.mxu0 %v894
    %1002 = vmatprep.subr.mxu0 0.0
    %1003 = vmatpush1.msra.mxu0 0.0
    %1004 = vmatprep.subr.mxu0 0.0
    %1005 = vmatpush1.msra.mxu0 0.0
    %1006 = vmatprep.subr.mxu0 0.0
    %1007 = vmatpush1.msra.mxu0 0.0
    %1008 = vmatprep.subr.mxu0 0.0
    %1009 = vmatpush1.msra.mxu0 0.0
    %1010 = vmatprep.subr.mxu0 0.0
    %1011 = vmatpush1.msra.mxu0 0.0
    %1012 = vmatprep.subr.mxu0 0.0
    %1013 = vmatpush1.msra.mxu0 0.0
    %1014 = vmatprep.subr.mxu0 0.0
    %1015 = vmatpush1.msra.mxu0 0.0
    %1016 = vmatprep.subr.mxu0 0.0
    %1017 = vmatpush1.msra.mxu0 0.0
    %1018 = vmatprep.subr.mxu0 0.0
    %1019 = vmatpush1.msra.mxu0 0.0
    %1020 = vmatprep.subr.mxu0 0.0
    %1021 = vmatpush1.msra.mxu0 0.0
    %1022 = vmatprep.subr.mxu0 0.0
    %1023 = vmatpush1.msra.mxu0 0.0
    %1024 = vmatprep.subr.mxu0 0.0
    %1025 = vmatpush1.msra.mxu0 0.0
    %1026 = vmatprep.subr.mxu0 0.0
    %1027 = vmatpush1.msra.mxu0 0.0
    %1028 = vmatprep.subr.mxu0 0.0
    %1029 = vmatpush1.msra.mxu0 0.0
    %1030 = vmatprep.subr.mxu0 0.0
    %1031 = vmatpush1.msra.mxu0 0.0
    %1032 = vmatprep.subr.mxu0 0.0
    %1033 = vmatpush1.msra.mxu0 0.0
    %1034 = vmatprep.mubr.f32.mxu0 0.0
    %1035 = vmatmul.mubr.f32.gmra.mrb[0].mxu0 0.0
    %v1036 = vpop.f32.mrb[0].mxu0
    %v1037 = vadd.f32 0.0, %v1036
    %v1038 = vpop.f32.mrb[0].mxu0
    %v1039 = vadd.f32 0.0, %v1038
    %1040 = vdwg.mxu0
    %1041 = vmatprep.subr.mxu0 %v837
    %1042 = vmatpush1.msra.mxu0 %v836
    %1043 = vmatprep.subr.mxu0 %v841
    %1044 = vmatpush1.msra.mxu0 %v840
    %1045 = vmatprep.subr.mxu0 %v845
    %1046 = vmatpush1.msra.mxu0 %v844
    %1047 = vmatprep.subr.mxu0 %v849
    %1048 = vmatpush1.msra.mxu0 %v848
    %1049 = vmatprep.subr.mxu0 %v853
    %1050 = vmatpush1.msra.mxu0 %v852
    %1051 = vmatprep.subr.mxu0 %v857
    %1052 = vmatpush1.msra.mxu0 %v856
    %1053 = vmatprep.subr.mxu0 %v861
    %1054 = vmatpush1.msra.mxu0 %v860
    %1055 = vmatprep.subr.mxu0 %v865
    %1056 = vmatpush1.msra.mxu0 %v864
    %1057 = vmatprep.subr.mxu0 %v869
    %1058 = vmatpush1.msra.mxu0 %v868
    %1059 = vmatprep.subr.mxu0 %v873
    %1060 = vmatpush1.msra.mxu0 %v872
    %1061 = vmatprep.subr.mxu0 %v877
    %1062 = vmatpush1.msra.mxu0 %v876
    %1063 = vmatprep.subr.mxu0 %v881
    %1064 = vmatpush1.msra.mxu0 %v880
    %1065 = vmatprep.subr.mxu0 %v885
    %1066 = vmatpush1.msra.mxu0 %v884
    %1067 = vmatprep.subr.mxu0 %v889
    %1068 = vmatpush1.msra.mxu0 %v888
    %1069 = vmatprep.subr.mxu0 %v893
    %1070 = vmatpush1.msra.mxu0 %v892
    %1071 = vmatprep.subr.mxu0 %v897
    %1072 = vmatpush1.msra.mxu0 %v896
    %1073 = vmatprep.subr.mxu0 0.0
    %1074 = vmatpush1.msra.mxu0 0.0
    %1075 = vmatprep.subr.mxu0 0.0
    %1076 = vmatpush1.msra.mxu0 0.0
    %1077 = vmatprep.subr.mxu0 0.0
    %1078 = vmatpush1.msra.mxu0 0.0
    %1079 = vmatprep.subr.mxu0 0.0
    %1080 = vmatpush1.msra.mxu0 0.0
    %1081 = vmatprep.subr.mxu0 0.0
    %1082 = vmatpush1.msra.mxu0 0.0
    %1083 = vmatprep.subr.mxu0 0.0
    %1084 = vmatpush1.msra.mxu0 0.0
    %1085 = vmatprep.subr.mxu0 0.0
    %1086 = vmatpush1.msra.mxu0 0.0
    %1087 = vmatprep.subr.mxu0 0.0
    %1088 = vmatpush1.msra.mxu0 0.0
    %1089 = vmatprep.subr.mxu0 0.0
    %1090 = vmatpush1.msra.mxu0 0.0
    %1091 = vmatprep.subr.mxu0 0.0
    %1092 = vmatpush1.msra.mxu0 0.0
    %1093 = vmatprep.subr.mxu0 0.0
    %1094 = vmatpush1.msra.mxu0 0.0
    %1095 = vmatprep.subr.mxu0 0.0
    %1096 = vmatpush1.msra.mxu0 0.0
    %1097 = vmatprep.subr.mxu0 0.0
    %1098 = vmatpush1.msra.mxu0 0.0
    %1099 = vmatprep.subr.mxu0 0.0
    %1100 = vmatpush1.msra.mxu0 0.0
    %1101 = vmatprep.subr.mxu0 0.0
    %1102 = vmatpush1.msra.mxu0 0.0
    %1103 = vmatprep.subr.mxu0 0.0
    %1104 = vmatpush1.msra.mxu0 0.0
    %1105 = vmatprep.mubr.f32.mxu0 0.0
    %1106 = vmatmul.mubr.f32.gmra.mrb[0].mxu0 0.0
    %v1107 = vpop.f32.mrb[0].mxu0
    %v1108 = vadd.f32 0.0, %v1107
    %v1109 = vpop.f32.mrb[0].mxu0
    %v1110 = vadd.f32 0.0, %v1109
    %1111 = vdwg.mxu0
    %v1112 = vadd.f32 %v966, %v1037
    %v1113 = vadd.f32 %v967, %v1039
    %v1114 = vadd.f32 %v968, %v1108
    %v1115 = vadd.f32 %v969, %v1110
    %s1116 = smul.u32 7, 8
    %s1117 = smul.addr %s1116, 8
    %s1118 = scalar_lea.vmem [#allocation2], %s1117
    %v1119 = vld [vmem:[%s1118 + $0x20] sm:$0xff]
    %v1120 = vld [vmem:[%s1118 + $0x28] sm:$0xff]
    %v1121 = vld [vmem:[%s1118 + $0x30] sm:$0xff]
    %v1122 = vld [vmem:[%s1118 + $0x38] sm:$0xff]
    %1123 = vmatprep.subr.mxu0 %v899
    %1124 = vmatpush1.msra.mxu0 %v898
    %1125 = vmatprep.subr.mxu0 %v903
    %1126 = vmatpush1.msra.mxu0 %v902
    %1127 = vmatprep.subr.mxu0 %v907
    %1128 = vmatpush1.msra.mxu0 %v906
    %1129 = vmatprep.subr.mxu0 %v911
    %1130 = vmatpush1.msra.mxu0 %v910
    %1131 = vmatprep.subr.mxu0 %v915
    %1132 = vmatpush1.msra.mxu0 %v914
    %1133 = vmatprep.subr.mxu0 %v919
    %1134 = vmatpush1.msra.mxu0 %v918
    %1135 = vmatprep.subr.mxu0 %v923
    %1136 = vmatpush1.msra.mxu0 %v922
    %1137 = vmatprep.subr.mxu0 %v927
    %1138 = vmatpush1.msra.mxu0 %v926
    %1139 = vmatprep.subr.mxu0 %v931
    %1140 = vmatpush1.msra.mxu0 %v930
    %1141 = vmatprep.subr.mxu0 %v935
    %1142 = vmatpush1.msra.mxu0 %v934
    %1143 = vmatprep.subr.mxu0 %v939
    %1144 = vmatpush1.msra.mxu0 %v938
    %1145 = vmatprep.subr.mxu0 %v943
    %1146 = vmatpush1.msra.mxu0 %v942
    %1147 = vmatprep.subr.mxu0 %v947
    %1148 = vmatpush1.msra.mxu0 %v946
    %1149 = vmatprep.subr.mxu0 %v951
    %1150 = vmatpush1.msra.mxu0 %v950
    %1151 = vmatprep.subr.mxu0 %v955
    %1152 = vmatpush1.msra.mxu0 %v954
    %1153 = vmatprep.subr.mxu0 %v959
    %1154 = vmatpush1.msra.mxu0 %v958
    %1155 = vmatprep.subr.mxu0 0.0
    %1156 = vmatpush1.msra.mxu0 0.0
    %1157 = vmatprep.subr.mxu0 0.0
    %1158 = vmatpush1.msra.mxu0 0.0
    %1159 = vmatprep.subr.mxu0 0.0
    %1160 = vmatpush1.msra.mxu0 0.0
    %1161 = vmatprep.subr.mxu0 0.0
    %1162 = vmatpush1.msra.mxu0 0.0
    %1163 = vmatprep.subr.mxu0 0.0
    %1164 = vmatpush1.msra.mxu0 0.0
    %1165 = vmatprep.subr.mxu0 0.0
    %1166 = vmatpush1.msra.mxu0 0.0
    %1167 = vmatprep.subr.mxu0 0.0
    %1168 = vmatpush1.msra.mxu0 0.0
    %1169 = vmatprep.subr.mxu0 0.0
    %1170 = vmatpush1.msra.mxu0 0.0
    %1171 = vmatprep.subr.mxu0 0.0
    %1172 = vmatpush1.msra.mxu0 0.0
    %1173 = vmatprep.subr.mxu0 0.0
    %1174 = vmatpush1.msra.mxu0 0.0
    %1175 = vmatprep.subr.mxu0 0.0
    %1176 = vmatpush1.msra.mxu0 0.0
    %1177 = vmatprep.subr.mxu0 0.0
    %1178 = vmatpush1.msra.mxu0 0.0
    %1179 = vmatprep.subr.mxu0 0.0
    %1180 = vmatpush1.msra.mxu0 0.0
    %1181 = vmatprep.subr.mxu0 0.0
    %1182 = vmatpush1.msra.mxu0 0.0
    %1183 = vmatprep.subr.mxu0 0.0
    %1184 = vmatpush1.msra.mxu0 0.0
    %1185 = vmatprep.subr.mxu0 0.0
    %1186 = vmatpush1.msra.mxu0 0.0
    %1187 = vmatprep.mubr.f32.mxu0 0.0
    %1188 = vmatmul.mubr.f32.gmra.mrb[0].mxu0 0.0
    %v1189 = vpop.f32.mrb[0].mxu0
    %v1190 = vadd.f32 0.0, %v1189
    %v1191 = vpop.f32.mrb[0].mxu0
    %v1192 = vadd.f32 0.0, %v1191
    %1193 = vdwg.mxu0
    %1194 = vmatprep.subr.mxu0 %v901
    %1195 = vmatpush1.msra.mxu0 %v900
    %1196 = vmatprep.subr.mxu0 %v905
    %1197 = vmatpush1.msra.mxu0 %v904
    %1198 = vmatprep.subr.mxu0 %v909
    %1199 = vmatpush1.msra.mxu0 %v908
    %1200 = vmatprep.subr.mxu0 %v913
    %1201 = vmatpush1.msra.mxu0 %v912
    %1202 = vmatprep.subr.mxu0 %v917
    %1203 = vmatpush1.msra.mxu0 %v916
    %1204 = vmatprep.subr.mxu0 %v921
    %1205 = vmatpush1.msra.mxu0 %v920
    %1206 = vmatprep.subr.mxu0 %v925
    %1207 = vmatpush1.msra.mxu0 %v924
    %1208 = vmatprep.subr.mxu0 %v929
    %1209 = vmatpush1.msra.mxu0 %v928
    %1210 = vmatprep.subr.mxu0 %v933
    %1211 = vmatpush1.msra.mxu0 %v932
    %1212 = vmatprep.subr.mxu0 %v937
    %1213 = vmatpush1.msra.mxu0 %v936
    %1214 = vmatprep.subr.mxu0 %v941
    %1215 = vmatpush1.msra.mxu0 %v940
    %1216 = vmatprep.subr.mxu0 %v945
    %1217 = vmatpush1.msra.mxu0 %v944
    %1218 = vmatprep.subr.mxu0 %v949
    %1219 = vmatpush1.msra.mxu0 %v948
    %1220 = vmatprep.subr.mxu0 %v953
    %1221 = vmatpush1.msra.mxu0 %v952
    %1222 = vmatprep.subr.mxu0 %v957
    %1223 = vmatpush1.msra.mxu0 %v956
    %1224 = vmatprep.subr.mxu0 %v961
    %1225 = vmatpush1.msra.mxu0 %v960
    %1226 = vmatprep.subr.mxu0 0.0
    %1227 = vmatpush1.msra.mxu0 0.0
    %1228 = vmatprep.subr.mxu0 0.0
    %1229 = vmatpush1.msra.mxu0 0.0
    %1230 = vmatprep.subr.mxu0 0.0
    %1231 = vmatpush1.msra.mxu0 0.0
    %1232 = vmatprep.subr.mxu0 0.0
    %1233 = vmatpush1.msra.mxu0 0.0
    %1234 = vmatprep.subr.mxu0 0.0
    %1235 = vmatpush1.msra.mxu0 0.0
    %1236 = vmatprep.subr.mxu0 0.0
    %1237 = vmatpush1.msra.mxu0 0.0
    %1238 = vmatprep.subr.mxu0 0.0
    %1239 = vmatpush1.msra.mxu0 0.0
    %1240 = vmatprep.subr.mxu0 0.0
    %1241 = vmatpush1.msra.mxu0 0.0
    %1242 = vmatprep.subr.mxu0 0.0
    %1243 = vmatpush1.msra.mxu0 0.0
    %1244 = vmatprep.subr.mxu0 0.0
    %1245 = vmatpush1.msra.mxu0 0.0
    %1246 = vmatprep.subr.mxu0 0.0
    %1247 = vmatpush1.msra.mxu0 0.0
    %1248 = vmatprep.subr.mxu0 0.0
    %1249 = vmatpush1.msra.mxu0 0.0
    %1250 = vmatprep.subr.mxu0 0.0
    %1251 = vmatpush1.msra.mxu0 0.0
    %1252 = vmatprep.subr.mxu0 0.0
    %1253 = vmatpush1.msra.mxu0 0.0
    %1254 = vmatprep.subr.mxu0 0.0
    %1255 = vmatpush1.msra.mxu0 0.0
    %1256 = vmatprep.subr.mxu0 0.0
    %1257 = vmatpush1.msra.mxu0 0.0
    %1258 = vmatprep.mubr.f32.mxu0 0.0
    %1259 = vmatmul.mubr.f32.gmra.mrb[0].mxu0 0.0
    %v1260 = vpop.f32.mrb[0].mxu0
    %v1261 = vadd.f32 0.0, %v1260
    %v1262 = vpop.f32.mrb[0].mxu0
    %v1263 = vadd.f32 0.0, %v1262
    %1264 = vdwg.mxu0
    %v1265 = vadd.f32 %v1119, %v1190
    %v1266 = vadd.f32 %v1120, %v1192
    %v1267 = vadd.f32 %v1121, %v1261
    %v1268 = vadd.f32 %v1122, %v1263
    %v1269 = vxor.u32 %v1112, 2147483648
    %v1270 = vmul.f32 %v1269, 1.442695
    %v1271 = vpow.pop %v1270
    %v1272 = vadd.f32 %v1271, 1.0
    %v1273 = vrcp.pop %v1272
    %v1274 = vmul.f32 1.0, %v1273
    %v1275 = vxor.u32 %v1113, 2147483648
    %v1276 = vmul.f32 %v1275, 1.442695
    %v1277 = vpow.pop %v1276
    %v1278 = vadd.f32 %v1277, 1.0
    %v1279 = vrcp.pop %v1278
    %v1280 = vmul.f32 1.0, %v1279
    %v1281 = vtanh.pop %v1114
    %v1282 = vxor.u32 %v1115, 2147483648
    %v1283 = vmul.f32 %v1282, 1.442695
    %v1284 = vpow.pop %v1283
    %v1285 = vadd.f32 %v1284, 1.0
    %v1286 = vrcp.pop %v1285
    %v1287 = vmul.f32 1.0, %v1286
    %v1288 = vmul.f32 %v1280, 0.0
    %v1289 = vmul.f32 %v1274, %v1281
    %v1290 = vadd.f32 %v1288, %v1289
    %v1291 = vtanh.pop %v1290
    %v1292 = vmul.f32 %v1287, %v1291
    %v1293 = vxor.u32 %v1265, 2147483648
    %v1294 = vmul.f32 %v1293, 1.442695
    %v1295 = vpow.pop %v1294
    %v1296 = vadd.f32 %v1295, 1.0
    %v1297 = vrcp.pop %v1296
    %v1298 = vmul.f32 1.0, %v1297
    %v1299 = vxor.u32 %v1266, 2147483648
    %v1300 = vmul.f32 %v1299, 1.442695
    %v1301 = vpow.pop %v1300
    %v1302 = vadd.f32 %v1301, 1.0
    %v1303 = vrcp.pop %v1302
    %v1304 = vmul.f32 1.0, %v1303
    %v1305 = vtanh.pop %v1267
    %v1306 = vxor.u32 %v1268, 2147483648
    %v1307 = vmul.f32 %v1306, 1.442695
    %v1308 = vpow.pop %v1307
    %v1309 = vadd.f32 %v1308, 1.0
    %v1310 = vrcp.pop %v1309
    %v1311 = vmul.f32 1.0, %v1310
    %v1312 = vmul.f32 %v1304, 0.0
    %v1313 = vmul.f32 %v1298, %v1305
    %v1314 = vadd.f32 %v1312, %v1313
    %v1315 = vtanh.pop %v1314
    %v1316 = vmul.f32 %v1311, %v1315
    %vm1317 = vcmp.gt.s32.totalorder %v962, 0
    %vm1318 = vcmp.gt.s32.totalorder %v962, 7
    %v1319 = vsel %vm1317, 1, 0
    %1320 = vset.pattern.permute.xlu0 0
    %1321 = vperm.xlu0 %1320, %v1319
    %v1322 = vpop.permute.xlu0 %1321
    %vm1323 = vcmp.eq.s32.totalorder %v1322, 1
    %v1324 = vsel %vm1323, %v1292, 0.0
    %s1325 = smul.u32 0, 2
    %s1326 = smul.addr %s1325, 8
    %s1327 = scalar_lea.vmem [#allocation3], %s1326
    %1328 = vst [vmem:[%s1327] sm:$0xff] %v1324
    %v1329 = vsel %vm1318, 1, 0
    %1330 = vset.pattern.permute.xlu0 0
    %1331 = vperm.xlu0 %1330, %v1329
    %v1332 = vpop.permute.xlu0 %1331
    %vm1333 = vcmp.eq.s32.totalorder %v1332, 1
    %v1334 = vsel %vm1333, %v1316, 0.0
    %s1335 = smul.u32 7, 2
    %s1336 = smul.addr %s1335, 8
    %s1337 = scalar_lea.vmem [#allocation3], %s1336
    %1338 = vst [vmem:[%s1337 + $0x8] sm:$0xff] %v1334
    %v1339 = vsel %vm1323, %v1290, 0.0
    %v1340 = vsel %vm1333, %v1314, 0.0
    %s1341 = smul.u32 1, 8
    %s1342 = smul.addr %s1341, 8
    %s1343 = scalar_lea.vmem [#allocation2], %s1342
    %v1344 = vld [vmem:[%s1343] sm:$0xff]
    %v1345 = vld [vmem:[%s1343 + $0x8] sm:$0xff]
    %v1346 = vld [vmem:[%s1343 + $0x10] sm:$0xff]
    %v1347 = vld [vmem:[%s1343 + $0x18] sm:$0xff]
    %1348 = vmatprep.subr.mxu0 %v835
    %1349 = vmatpush1.msra.mxu0 %v834
    %1350 = vmatprep.subr.mxu0 %v839
    %1351 = vmatpush1.msra.mxu0 %v838
    %1352 = vmatprep.subr.mxu0 %v843
    %1353 = vmatpush1.msra.mxu0 %v842
    %1354 = vmatprep.subr.mxu0 %v847
    %1355 = vmatpush1.msra.mxu0 %v846
    %1356 = vmatprep.subr.mxu0 %v851
    %1357 = vmatpush1.msra.mxu0 %v850
    %1358 = vmatprep.subr.mxu0 %v855
    %1359 = vmatpush1.msra.mxu0 %v854
    %1360 = vmatprep.subr.mxu0 %v859
    %1361 = vmatpush1.msra.mxu0 %v858
    %1362 = vmatprep.subr.mxu0 %v863
    %1363 = vmatpush1.msra.mxu0 %v862
    %1364 = vmatprep.subr.mxu0 %v867
    %1365 = vmatpush1.msra.mxu0 %v866
    %1366 = vmatprep.subr.mxu0 %v871
    %1367 = vmatpush1.msra.mxu0 %v870
    %1368 = vmatprep.subr.mxu0 %v875
    %1369 = vmatpush1.msra.mxu0 %v874
    %1370 = vmatprep.subr.mxu0 %v879
    %1371 = vmatpush1.msra.mxu0 %v878
    %1372 = vmatprep.subr.mxu0 %v883
    %1373 = vmatpush1.msra.mxu0 %v882
    %1374 = vmatprep.subr.mxu0 %v887
    %1375 = vmatpush1.msra.mxu0 %v886
    %1376 = vmatprep.subr.mxu0 %v891
    %1377 = vmatpush1.msra.mxu0 %v890
    %1378 = vmatprep.subr.mxu0 %v895
    %1379 = vmatpush1.msra.mxu0 %v894
    %1380 = vmatprep.subr.mxu0 0.0
    %1381 = vmatpush1.msra.mxu0 0.0
    %1382 = vmatprep.subr.mxu0 0.0
    %1383 = vmatpush1.msra.mxu0 0.0
    %1384 = vmatprep.subr.mxu0 0.0
    %1385 = vmatpush1.msra.mxu0 0.0
    %1386 = vmatprep.subr.mxu0 0.0
    %1387 = vmatpush1.msra.mxu0 0.0
    %1388 = vmatprep.subr.mxu0 0.0
    %1389 = vmatpush1.msra.mxu0 0.0
    %1390 = vmatprep.subr.mxu0 0.0
    %1391 = vmatpush1.msra.mxu0 0.0
    %1392 = vmatprep.subr.mxu0 0.0
    %1393 = vmatpush1.msra.mxu0 0.0
    %1394 = vmatprep.subr.mxu0 0.0
    %1395 = vmatpush1.msra.mxu0 0.0
    %1396 = vmatprep.subr.mxu0 0.0
    %1397 = vmatpush1.msra.mxu0 0.0
    %1398 = vmatprep.subr.mxu0 0.0
    %1399 = vmatpush1.msra.mxu0 0.0
    %1400 = vmatprep.subr.mxu0 0.0
    %1401 = vmatpush1.msra.mxu0 0.0
    %1402 = vmatprep.subr.mxu0 0.0
    %1403 = vmatpush1.msra.mxu0 0.0
    %1404 = vmatprep.subr.mxu0 0.0
    %1405 = vmatpush1.msra.mxu0 0.0
    %1406 = vmatprep.subr.mxu0 0.0
    %1407 = vmatpush1.msra.mxu0 0.0
    %1408 = vmatprep.subr.mxu0 0.0
    %1409 = vmatpush1.msra.mxu0 0.0
    %1410 = vmatprep.subr.mxu0 0.0
    %1411 = vmatpush1.msra.mxu0 0.0
    %1412 = vmatprep.mubr.f32.mxu0 0.0
    %1413 = vmatmul.mubr.f32.gmra.mrb[0].mxu0 %v1324
    %v1414 = vpop.f32.mrb[0].mxu0
    %v1415 = vadd.f32 0.0, %v1414
    %v1416 = vpop.f32.mrb[0].mxu0
    %v1417 = vadd.f32 0.0, %v1416
    %1418 = vdwg.mxu0
    %1419 = vmatprep.subr.mxu0 %v837
    %1420 = vmatpush1.msra.mxu0 %v836
    %1421 = vmatprep.subr.mxu0 %v841
    %1422 = vmatpush1.msra.mxu0 %v840
    %1423 = vmatprep.subr.mxu0 %v845
    %1424 = vmatpush1.msra.mxu0 %v844
    %1425 = vmatprep.subr.mxu0 %v849
    %1426 = vmatpush1.msra.mxu0 %v848
    %1427 = vmatprep.subr.mxu0 %v853
    %1428 = vmatpush1.msra.mxu0 %v852
    %1429 = vmatprep.subr.mxu0 %v857
    %1430 = vmatpush1.msra.mxu0 %v856
    %1431 = vmatprep.subr.mxu0 %v861
    %1432 = vmatpush1.msra.mxu0 %v860
    %1433 = vmatprep.subr.mxu0 %v865
    %1434 = vmatpush1.msra.mxu0 %v864
    %1435 = vmatprep.subr.mxu0 %v869
    %1436 = vmatpush1.msra.mxu0 %v868
    %1437 = vmatprep.subr.mxu0 %v873
    %1438 = vmatpush1.msra.mxu0 %v872
    %1439 = vmatprep.subr.mxu0 %v877
    %1440 = vmatpush1.msra.mxu0 %v876
    %1441 = vmatprep.subr.mxu0 %v881
    %1442 = vmatpush1.msra.mxu0 %v880
    %1443 = vmatprep.subr.mxu0 %v885
    %1444 = vmatpush1.msra.mxu0 %v884
    %1445 = vmatprep.subr.mxu0 %v889
    %1446 = vmatpush1.msra.mxu0 %v888
    %1447 = vmatprep.subr.mxu0 %v893
    %1448 = vmatpush1.msra.mxu0 %v892
    %1449 = vmatprep.subr.mxu0 %v897
    %1450 = vmatpush1.msra.mxu0 %v896
    %1451 = vmatprep.subr.mxu0 0.0
    %1452 = vmatpush1.msra.mxu0 0.0
    %1453 = vmatprep.subr.mxu0 0.0
    %1454 = vmatpush1.msra.mxu0 0.0
    %1455 = vmatprep.subr.mxu0 0.0
    %1456 = vmatpush1.msra.mxu0 0.0
    %1457 = vmatprep.subr.mxu0 0.0
    %1458 = vmatpush1.msra.mxu0 0.0
    %1459 = vmatprep.subr.mxu0 0.0
    %1460 = vmatpush1.msra.mxu0 0.0
    %1461 = vmatprep.subr.mxu0 0.0
    %1462 = vmatpush1.msra.mxu0 0.0
    %1463 = vmatprep.subr.mxu0 0.0
    %1464 = vmatpush1.msra.mxu0 0.0
    %1465 = vmatprep.subr.mxu0 0.0
    %1466 = vmatpush1.msra.mxu0 0.0
    %1467 = vmatprep.subr.mxu0 0.0
    %1468 = vmatpush1.msra.mxu0 0.0
    %1469 = vmatprep.subr.mxu0 0.0
    %1470 = vmatpush1.msra.mxu0 0.0
    %1471 = vmatprep.subr.mxu0 0.0
    %1472 = vmatpush1.msra.mxu0 0.0
    %1473 = vmatprep.subr.mxu0 0.0
    %1474 = vmatpush1.msra.mxu0 0.0
    %1475 = vmatprep.subr.mxu0 0.0
    %1476 = vmatpush1.msra.mxu0 0.0
    %1477 = vmatprep.subr.mxu0 0.0
    %1478 = vmatpush1.msra.mxu0 0.0
    %1479 = vmatprep.subr.mxu0 0.0
    %1480 = vmatpush1.msra.mxu0 0.0
    %1481 = vmatprep.subr.mxu0 0.0
    %1482 = vmatpush1.msra.mxu0 0.0
    %1483 = vmatprep.mubr.f32.mxu0 0.0
    %1484 = vmatmul.mubr.f32.gmra.mrb[0].mxu0 %v1324
    %v1485 = vpop.f32.mrb[0].mxu0
    %v1486 = vadd.f32 0.0, %v1485
    %v1487 = vpop.f32.mrb[0].mxu0
    %v1488 = vadd.f32 0.0, %v1487
    %1489 = vdwg.mxu0
    %v1490 = vadd.f32 %v1344, %v1415
    %v1491 = vadd.f32 %v1345, %v1417
    %v1492 = vadd.f32 %v1346, %v1486
    %v1493 = vadd.f32 %v1347, %v1488
    %s1494 = smul.u32 6, 8
    %s1495 = smul.addr %s1494, 8
    %s1496 = scalar_lea.vmem [#allocation2], %s1495
    %v1497 = vld [vmem:[%s1496 + $0x20] sm:$0xff]
    %v1498 = vld [vmem:[%s1496 + $0x28] sm:$0xff]
    %v1499 = vld [vmem:[%s1496 + $0x30] sm:$0xff]
    %v1500 = vld [vmem:[%s1496 + $0x38] sm:$0xff]
    %1501 = vmatprep.subr.mxu0 %v899
    %1502 = vmatpush1.msra.mxu0 %v898
    %1503 = vmatprep.subr.mxu0 %v903
    %1504 = vmatpush1.msra.mxu0 %v902
    %1505 = vmatprep.subr.mxu0 %v907
    %1506 = vmatpush1.msra.mxu0 %v906
    %1507 = vmatprep.subr.mxu0 %v911
    %1508 = vmatpush1.msra.mxu0 %v910
    %1509 = vmatprep.subr.mxu0 %v915
    %1510 = vmatpush1.msra.mxu0 %v914
    %1511 = vmatprep.subr.mxu0 %v919
    %1512 = vmatpush1.msra.mxu0 %v918
    %1513 = vmatprep.subr.mxu0 %v923
    %1514 = vmatpush1.msra.mxu0 %v922
    %1515 = vmatprep.subr.mxu0 %v927
    %1516 = vmatpush1.msra.mxu0 %v926
    %1517 = vmatprep.subr.mxu0 %v931
    %1518 = vmatpush1.msra.mxu0 %v930
    %1519 = vmatprep.subr.mxu0 %v935
    %1520 = vmatpush1.msra.mxu0 %v934
    %1521 = vmatprep.subr.mxu0 %v939
    %1522 = vmatpush1.msra.mxu0 %v938
    %1523 = vmatprep.subr.mxu0 %v943
    %1524 = vmatpush1.msra.mxu0 %v942
    %1525 = vmatprep.subr.mxu0 %v947
    %1526 = vmatpush1.msra.mxu0 %v946
    %1527 = vmatprep.subr.mxu0 %v951
    %1528 = vmatpush1.msra.mxu0 %v950
    %1529 = vmatprep.subr.mxu0 %v955
    %1530 = vmatpush1.msra.mxu0 %v954
    %1531 = vmatprep.subr.mxu0 %v959
    %1532 = vmatpush1.msra.mxu0 %v958
    %1533 = vmatprep.subr.mxu0 0.0
    %1534 = vmatpush1.msra.mxu0 0.0
    %1535 = vmatprep.subr.mxu0 0.0
    %1536 = vmatpush1.msra.mxu0 0.0
    %1537 = vmatprep.subr.mxu0 0.0
    %1538 = vmatpush1.msra.mxu0 0.0
    %1539 = vmatprep.subr.mxu0 0.0
    %1540 = vmatpush1.msra.mxu0 0.0
    %1541 = vmatprep.subr.mxu0 0.0
    %1542 = vmatpush1.msra.mxu0 0.0
    %1543 = vmatprep.subr.mxu0 0.0
    %1544 = vmatpush1.msra.mxu0 0.0
    %1545 = vmatprep.subr.mxu0 0.0
    %1546 = vmatpush1.msra.mxu0 0.0
    %1547 = vmatprep.subr.mxu0 0.0
    %1548 = vmatpush1.msra.mxu0 0.0
    %1549 = vmatprep.subr.mxu0 0.0
    %1550 = vmatpush1.msra.mxu0 0.0
    %1551 = vmatprep.subr.mxu0 0.0
    %1552 = vmatpush1.msra.mxu0 0.0
    %1553 = vmatprep.subr.mxu0 0.0
    %1554 = vmatpush1.msra.mxu0 0.0
    %1555 = vmatprep.subr.mxu0 0.0
    %1556 = vmatpush1.msra.mxu0 0.0
    %1557 = vmatprep.subr.mxu0 0.0
    %1558 = vmatpush1.msra.mxu0 0.0
    %1559 = vmatprep.subr.mxu0 0.0
    %1560 = vmatpush1.msra.mxu0 0.0
    %1561 = vmatprep.subr.mxu0 0.0
    %1562 = vmatpush1.msra.mxu0 0.0
    %1563 = vmatprep.subr.mxu0 0.0
    %1564 = vmatpush1.msra.mxu0 0.0
    %1565 = vmatprep.mubr.f32.mxu0 0.0
    %1566 = vmatmul.mubr.f32.gmra.mrb[0].mxu0 %v1334
    %v1567 = vpop.f32.mrb[0].mxu0
    %v1568 = vadd.f32 0.0, %v1567
    %v1569 = vpop.f32.mrb[0].mxu0
    %v1570 = vadd.f32 0.0, %v1569
    %1571 = vdwg.mxu0
    %1572 = vmatprep.subr.mxu0 %v901
    %1573 = vmatpush1.msra.mxu0 %v900
    %1574 = vmatprep.subr.mxu0 %v905
    %1575 = vmatpush1.msra.mxu0 %v904
    %1576 = vmatprep.subr.mxu0 %v909
    %1577 = vmatpush1.msra.mxu0 %v908
    %1578 = vmatprep.subr.mxu0 %v913
    %1579 = vmatpush1.msra.mxu0 %v912
    %1580 = vmatprep.subr.mxu0 %v917
    %1581 = vmatpush1.msra.mxu0 %v916
    %1582 = vmatprep.subr.mxu0 %v921
    %1583 = vmatpush1.msra.mxu0 %v920
    %1584 = vmatprep.subr.mxu0 %v925
    %1585 = vmatpush1.msra.mxu0 %v924
    %1586 = vmatprep.subr.mxu0 %v929
    %1587 = vmatpush1.msra.mxu0 %v928
    %1588 = vmatprep.subr.mxu0 %v933
    %1589 = vmatpush1.msra.mxu0 %v932
    %1590 = vmatprep.subr.mxu0 %v937
    %1591 = vmatpush1.msra.mxu0 %v936
    %1592 = vmatprep.subr.mxu0 %v941
    %1593 = vmatpush1.msra.mxu0 %v940
    %1594 = vmatprep.subr.mxu0 %v945
    %1595 = vmatpush1.msra.mxu0 %v944
    %1596 = vmatprep.subr.mxu0 %v949
    %1597 = vmatpush1.msra.mxu0 %v948
    %1598 = vmatprep.subr.mxu0 %v953
    %1599 = vmatpush1.msra.mxu0 %v952
    %1600 = vmatprep.subr.mxu0 %v957
    %1601 = vmatpush1.msra.mxu0 %v956
    %1602 = vmatprep.subr.mxu0 %v961
    %1603 = vmatpush1.msra.mxu0 %v960
    %1604 = vmatprep.subr.mxu0 0.0
    %1605 = vmatpush1.msra.mxu0 0.0
    %1606 = vmatprep.subr.mxu0 0.0
    %1607 = vmatpush1.msra.mxu0 0.0
    %1608 = vmatprep.subr.mxu0 0.0
    %1609 = vmatpush1.msra.mxu0 0.0
    %1610 = vmatprep.subr.mxu0 0.0
    %1611 = vmatpush1.msra.mxu0 0.0
    %1612 = vmatprep.subr.mxu0 0.0
    %1613 = vmatpush1.msra.mxu0 0.0
    %1614 = vmatprep.subr.mxu0 0.0
    %1615 = vmatpush1.msra.mxu0 0.0
    %1616 = vmatprep.subr.mxu0 0.0
    %1617 = vmatpush1.msra.mxu0 0.0
    %1618 = vmatprep.subr.mxu0 0.0
    %1619 = vmatpush1.msra.mxu0 0.0
    %1620 = vmatprep.subr.mxu0 0.0
    %1621 = vmatpush1.msra.mxu0 0.0
    %1622 = vmatprep.subr.mxu0 0.0
    %1623 = vmatpush1.msra.mxu0 0.0
    %1624 = vmatprep.subr.mxu0 0.0
    %1625 = vmatpush1.msra.mxu0 0.0
    %1626 = vmatprep.subr.mxu0 0.0
    %1627 = vmatpush1.msra.mxu0 0.0
    %1628 = vmatprep.subr.mxu0 0.0
    %1629 = vmatpush1.msra.mxu0 0.0
    %1630 = vmatprep.subr.mxu0 0.0
    %1631 = vmatpush1.msra.mxu0 0.0
    %1632 = vmatprep.subr.mxu0 0.0
    %1633 = vmatpush1.msra.mxu0 0.0
    %1634 = vmatprep.subr.mxu0 0.0
    %1635 = vmatpush1.msra.mxu0 0.0
    %1636 = vmatprep.mubr.f32.mxu0 0.0
    %1637 = vmatmul.mubr.f32.gmra.mrb[0].mxu0 %v1334
    %v1638 = vpop.f32.mrb[0].mxu0
    %v1639 = vadd.f32 0.0, %v1638
    %v1640 = vpop.f32.mrb[0].mxu0
    %v1641 = vadd.f32 0.0, %v1640
    %1642 = vdwg.mxu0
    %v1643 = vadd.f32 %v1497, %v1568
    %v1644 = vadd.f32 %v1498, %v1570
    %v1645 = vadd.f32 %v1499, %v1639
    %v1646 = vadd.f32 %v1500, %v1641
    %v1647 = vxor.u32 %v1490, 2147483648
    %v1648 = vmul.f32 %v1647, 1.442695
    %v1649 = vpow.pop %v1648
    %v1650 = vadd.f32 %v1649, 1.0
    %v1651 = vrcp.pop %v1650
    %v1652 = vmul.f32 1.0, %v1651
    %v1653 = vxor.u32 %v1491, 2147483648
    %v1654 = vmul.f32 %v1653, 1.442695
    %v1655 = vpow.pop %v1654
    %v1656 = vadd.f32 %v1655, 1.0
    %v1657 = vrcp.pop %v1656
    %v1658 = vmul.f32 1.0, %v1657
    %v1659 = vtanh.pop %v1492
    %v1660 = vxor.u32 %v1493, 2147483648
    %v1661 = vmul.f32 %v1660, 1.442695
    %v1662 = vpow.pop %v1661
    %v1663 = vadd.f32 %v1662, 1.0
    %v1664 = vrcp.pop %v1663
    %v1665 = vmul.f32 1.0, %v1664
    %v1666 = vmul.f32 %v1658, %v1339
    %v1667 = vmul.f32 %v1652, %v1659
    %v1668 = vadd.f32 %v1666, %v1667
    %v1669 = vtanh.pop %v1668
    %v1670 = vmul.f32 %v1665, %v1669
    %v1671 = vxor.u32 %v1643, 2147483648
    %v1672 = vmul.f32 %v1671, 1.442695
    %v1673 = vpow.pop %v1672
    %v1674 = vadd.f32 %v1673, 1.0
    %v1675 = vrcp.pop %v1674
    %v1676 = vmul.f32 1.0, %v1675
    %v1677 = vxor.u32 %v1644, 2147483648
    %v1678 = vmul.f32 %v1677, 1.442695
    %v1679 = vpow.pop %v1678
    %v1680 = vadd.f32 %v1679, 1.0
    %v1681 = vrcp.pop %v1680
    %v1682 = vmul.f32 1.0, %v1681
    %v1683 = vtanh.pop %v1645
    %v1684 = vxor.u32 %v1646, 2147483648
    %v1685 = vmul.f32 %v1684, 1.442695
    %v1686 = vpow.pop %v1685
    %v1687 = vadd.f32 %v1686, 1.0
    %v1688 = vrcp.pop %v1687
    %v1689 = vmul.f32 1.0, %v1688
    %v1690 = vmul.f32 %v1682, %v1340
    %v1691 = vmul.f32 %v1676, %v1683
    %v1692 = vadd.f32 %v1690, %v1691
    %v1693 = vtanh.pop %v1692
    %v1694 = vmul.f32 %v1689, %v1693
    %vm1695 = vcmp.gt.s32.totalorder %v962, 1
    %vm1696 = vcmp.gt.s32.totalorder %v962, 6
    %v1697 = vsel %vm1695, 1, 0
    %1698 = vset.pattern.permute.xlu0 0
    %1699 = vperm.xlu0 %1698, %v1697
    %v1700 = vpop.permute.xlu0 %1699
    %vm1701 = vcmp.eq.s32.totalorder %v1700, 1
    %v1702 = vsel %vm1701, %v1670, 0.0
    %s1703 = smul.u32 1, 2
    %s1704 = smul.addr %s1703, 8
    %s1705 = scalar_lea.vmem [#allocation3], %s1704
    %1706 = vst [vmem:[%s1705] sm:$0xff] %v1702
    %v1707 = vsel %vm1696, 1, 0
    %1708 = vset.pattern.permute.xlu0 0
    %1709 = vperm.xlu0 %1708, %v1707
    %v1710 = vpop.permute.xlu0 %1709
    %vm1711 = vcmp.eq.s32.totalorder %v1710, 1
    %v1712 = vsel %vm1711, %v1694, 0.0
    %s1713 = smul.u32 6, 2
    %s1714 = smul.addr %s1713, 8
    %s1715 = scalar_lea.vmem [#allocation3], %s1714
    %1716 = vst [vmem:[%s1715 + $0x8] sm:$0xff] %v1712
    %v1717 = vsel %vm1701, %v1670, %v1324
    %v1718 = vsel %vm1701, %v1668, %v1339
    %v1719 = vsel %vm1711, %v1694, %v1334
    %v1720 = vsel %vm1711, %v1692, %v1340
    %s1721 = smul.u32 2, 8
    %s1722 = smul.addr %s1721, 8
    %s1723 = scalar_lea.vmem [#allocation2], %s1722
    %v1724 = vld [vmem:[%s1723] sm:$0xff]
    %v1725 = vld [vmem:[%s1723 + $0x8] sm:$0xff]
    %v1726 = vld [vmem:[%s1723 + $0x10] sm:$0xff]
    %v1727 = vld [vmem:[%s1723 + $0x18] sm:$0xff]
    %1728 = vmatprep.subr.mxu0 %v835
    %1729 = vmatpush1.msra.mxu0 %v834
    %1730 = vmatprep.subr.mxu0 %v839
    %1731 = vmatpush1.msra.mxu0 %v838
    %1732 = vmatprep.subr.mxu0 %v843
    %1733 = vmatpush1.msra.mxu0 %v842
    %1734 = vmatprep.subr.mxu0 %v847
    %1735 = vmatpush1.msra.mxu0 %v846
    %1736 = vmatprep.subr.mxu0 %v851
    %1737 = vmatpush1.msra.mxu0 %v850
    %1738 = vmatprep.subr.mxu0 %v855
    %1739 = vmatpush1.msra.mxu0 %v854
    %1740 = vmatprep.subr.mxu0 %v859
    %1741 = vmatpush1.msra.mxu0 %v858
    %1742 = vmatprep.subr.mxu0 %v863
    %1743 = vmatpush1.msra.mxu0 %v862
    %1744 = vmatprep.subr.mxu0 %v867
    %1745 = vmatpush1.msra.mxu0 %v866
    %1746 = vmatprep.subr.mxu0 %v871
    %1747 = vmatpush1.msra.mxu0 %v870
    %1748 = vmatprep.subr.mxu0 %v875
    %1749 = vmatpush1.msra.mxu0 %v874
    %1750 = vmatprep.subr.mxu0 %v879
    %1751 = vmatpush1.msra.mxu0 %v878
    %1752 = vmatprep.subr.mxu0 %v883
    %1753 = vmatpush1.msra.mxu0 %v882
    %1754 = vmatprep.subr.mxu0 %v887
    %1755 = vmatpush1.msra.mxu0 %v886
    %1756 = vmatprep.subr.mxu0 %v891
    %1757 = vmatpush1.msra.mxu0 %v890
    %1758 = vmatprep.subr.mxu0 %v895
    %1759 = vmatpush1.msra.mxu0 %v894
    %1760 = vmatprep.subr.mxu0 0.0
    %1761 = vmatpush1.msra.mxu0 0.0
    %1762 = vmatprep.subr.mxu0 0.0
    %1763 = vmatpush1.msra.mxu0 0.0
    %1764 = vmatprep.subr.mxu0 0.0
    %1765 = vmatpush1.msra.mxu0 0.0
    %1766 = vmatprep.subr.mxu0 0.0
    %1767 = vmatpush1.msra.mxu0 0.0
    %1768 = vmatprep.subr.mxu0 0.0
    %1769 = vmatpush1.msra.mxu0 0.0
    %1770 = vmatprep.subr.mxu0 0.0
    %1771 = vmatpush1.msra.mxu0 0.0
    %1772 = vmatprep.subr.mxu0 0.0
    %1773 = vmatpush1.msra.mxu0 0.0
    %1774 = vmatprep.subr.mxu0 0.0
    %1775 = vmatpush1.msra.mxu0 0.0
    %1776 = vmatprep.subr.mxu0 0.0
    %1777 = vmatpush1.msra.mxu0 0.0
    %1778 = vmatprep.subr.mxu0 0.0
    %1779 = vmatpush1.msra.mxu0 0.0
    %1780 = vmatprep.subr.mxu0 0.0
    %1781 = vmatpush1.msra.mxu0 0.0
    %1782 = vmatprep.subr.mxu0 0.0
    %1783 = vmatpush1.msra.mxu0 0.0
    %1784 = vmatprep.subr.mxu0 0.0
    %1785 = vmatpush1.msra.mxu0 0.0
    %1786 = vmatprep.subr.mxu0 0.0
    %1787 = vmatpush1.msra.mxu0 0.0
    %1788 = vmatprep.subr.mxu0 0.0
    %1789 = vmatpush1.msra.mxu0 0.0
    %1790 = vmatprep.subr.mxu0 0.0
    %1791 = vmatpush1.msra.mxu0 0.0
    %1792 = vmatprep.mubr.f32.mxu0 0.0
    %1793 = vmatmul.mubr.f32.gmra.mrb[0].mxu0 %v1717
    %v1794 = vpop.f32.mrb[0].mxu0
    %v1795 = vadd.f32 0.0, %v1794
    %v1796 = vpop.f32.mrb[0].mxu0
    %v1797 = vadd.f32 0.0, %v1796
    %1798 = vdwg.mxu0
    %1799 = vmatprep.subr.mxu0 %v837
    %1800 = vmatpush1.msra.mxu0 %v836
    %1801 = vmatprep.subr.mxu0 %v841
    %1802 = vmatpush1.msra.mxu0 %v840
    %1803 = vmatprep.subr.mxu0 %v845
    %1804 = vmatpush1.msra.mxu0 %v844
    %1805 = vmatprep.subr.mxu0 %v849
    %1806 = vmatpush1.msra.mxu0 %v848
    %1807 = vmatprep.subr.mxu0 %v853
    %1808 = vmatpush1.msra.mxu0 %v852
    %1809 = vmatprep.subr.mxu0 %v857
    %1810 = vmatpush1.msra.mxu0 %v856
    %1811 = vmatprep.subr.mxu0 %v861
    %1812 = vmatpush1.msra.mxu0 %v860
    %1813 = vmatprep.subr.mxu0 %v865
    %1814 = vmatpush1.msra.mxu0 %v864
    %1815 = vmatprep.subr.mxu0 %v869
    %1816 = vmatpush1.msra.mxu0 %v868
    %1817 = vmatprep.subr.mxu0 %v873
    %1818 = vmatpush1.msra.mxu0 %v872
    %1819 = vmatprep.subr.mxu0 %v877
    %1820 = vmatpush1.msra.mxu0 %v876
    %1821 = vmatprep.subr.mxu0 %v881
    %1822 = vmatpush1.msra.mxu0 %v880
    %1823 = vmatprep.subr.mxu0 %v885
    %1824 = vmatpush1.msra.mxu0 %v884
    %1825 = vmatprep.subr.mxu0 %v889
    %1826 = vmatpush1.msra.mxu0 %v888
    %1827 = vmatprep.subr.mxu0 %v893
    %1828 = vmatpush1.msra.mxu0 %v892
    %1829 = vmatprep.subr.mxu0 %v897
    %1830 = vmatpush1.msra.mxu0 %v896
    %1831 = vmatprep.subr.mxu0 0.0
    %1832 = vmatpush1.msra.mxu0 0.0
    %1833 = vmatprep.subr.mxu0 0.0
    %1834 = vmatpush1.msra.mxu0 0.0
    %1835 = vmatprep.subr.mxu0 0.0
    %1836 = vmatpush1.msra.mxu0 0.0
    %1837 = vmatprep.subr.mxu0 0.0
    %1838 = vmatpush1.msra.mxu0 0.0
    %1839 = vmatprep.subr.mxu0 0.0
    %1840 = vmatpush1.msra.mxu0 0.0
    %1841 = vmatprep.subr.mxu0 0.0
    %1842 = vmatpush1.msra.mxu0 0.0
    %1843 = vmatprep.subr.mxu0 0.0
    %1844 = vmatpush1.msra.mxu0 0.0
    %1845 = vmatprep.subr.mxu0 0.0
    %1846 = vmatpush1.msra.mxu0 0.0
    %1847 = vmatprep.subr.mxu0 0.0
    %1848 = vmatpush1.msra.mxu0 0.0
    %1849 = vmatprep.subr.mxu0 0.0
    %1850 = vmatpush1.msra.mxu0 0.0
    %1851 = vmatprep.subr.mxu0 0.0
    %1852 = vmatpush1.msra.mxu0 0.0
    %1853 = vmatprep.subr.mxu0 0.0
    %1854 = vmatpush1.msra.mxu0 0.0
    %1855 = vmatprep.subr.mxu0 0.0
    %1856 = vmatpush1.msra.mxu0 0.0
    %1857 = vmatprep.subr.mxu0 0.0
    %1858 = vmatpush1.msra.mxu0 0.0
    %1859 = vmatprep.subr.mxu0 0.0
    %1860 = vmatpush1.msra.mxu0 0.0
    %1861 = vmatprep.subr.mxu0 0.0
    %1862 = vmatpush1.msra.mxu0 0.0
    %1863 = vmatprep.mubr.f32.mxu0 0.0
    %1864 = vmatmul.mubr.f32.gmra.mrb[0].mxu0 %v1717
    %v1865 = vpop.f32.mrb[0].mxu0
    %v1866 = vadd.f32 0.0, %v1865
    %v1867 = vpop.f32.mrb[0].mxu0
    %v1868 = vadd.f32 0.0, %v1867
    %1869 = vdwg.mxu0
    %v1870 = vadd.f32 %v1724, %v1795
    %v1871 = vadd.f32 %v1725, %v1797
    %v1872 = vadd.f32 %v1726, %v1866
    %v1873 = vadd.f32 %v1727, %v1868
    %s1874 = smul.u32 5, 8
    %s1875 = smul.addr %s1874, 8
    %s1876 = scalar_lea.vmem [#allocation2], %s1875
    %v1877 = vld [vmem:[%s1876 + $0x20] sm:$0xff]
    %v1878 = vld [vmem:[%s1876 + $0x28] sm:$0xff]
    %v1879 = vld [vmem:[%s1876 + $0x30] sm:$0xff]
    %v1880 = vld [vmem:[%s1876 + $0x38] sm:$0xff]
    %1881 = vmatprep.subr.mxu0 %v899
    %1882 = vmatpush1.msra.mxu0 %v898
    %1883 = vmatprep.subr.mxu0 %v903
    %1884 = vmatpush1.msra.mxu0 %v902
    %1885 = vmatprep.subr.mxu0 %v907
    %1886 = vmatpush1.msra.mxu0 %v906
    %1887 = vmatprep.subr.mxu0 %v911
    %1888 = vmatpush1.msra.mxu0 %v910
    %1889 = vmatprep.subr.mxu0 %v915
    %1890 = vmatpush1.msra.mxu0 %v914
    %1891 = vmatprep.subr.mxu0 %v919
    %1892 = vmatpush1.msra.mxu0 %v918
    %1893 = vmatprep.subr.mxu0 %v923
    %1894 = vmatpush1.msra.mxu0 %v922
    %1895 = vmatprep.subr.mxu0 %v927
    %1896 = vmatpush1.msra.mxu0 %v926
    %1897 = vmatprep.subr.mxu0 %v931
    %1898 = vmatpush1.msra.mxu0 %v930
    %1899 = vmatprep.subr.mxu0 %v935
    %1900 = vmatpush1.msra.mxu0 %v934
    %1901 = vmatprep.subr.mxu0 %v939
    %1902 = vmatpush1.msra.mxu0 %v938
    %1903 = vmatprep.subr.mxu0 %v943
    %1904 = vmatpush1.msra.mxu0 %v942
    %1905 = vmatprep.subr.mxu0 %v947
    %1906 = vmatpush1.msra.mxu0 %v946
    %1907 = vmatprep.subr.mxu0 %v951
    %1908 = vmatpush1.msra.mxu0 %v950
    %1909 = vmatprep.subr.mxu0 %v955
    %1910 = vmatpush1.msra.mxu0 %v954
    %1911 = vmatprep.subr.mxu0 %v959
    %1912 = vmatpush1.msra.mxu0 %v958
    %1913 = vmatprep.subr.mxu0 0.0
    %1914 = vmatpush1.msra.mxu0 0.0
    %1915 = vmatprep.subr.mxu0 0.0
    %1916 = vmatpush1.msra.mxu0 0.0
    %1917 = vmatprep.subr.mxu0 0.0
    %1918 = vmatpush1.msra.mxu0 0.0
    %1919 = vmatprep.subr.mxu0 0.0
    %1920 = vmatpush1.msra.mxu0 0.0
    %1921 = vmatprep.subr.mxu0 0.0
    %1922 = vmatpush1.msra.mxu0 0.0
    %1923 = vmatprep.subr.mxu0 0.0
    %1924 = vmatpush1.msra.mxu0 0.0
    %1925 = vmatprep.subr.mxu0 0.0
    %1926 = vmatpush1.msra.mxu0 0.0
    %1927 = vmatprep.subr.mxu0 0.0
    %1928 = vmatpush1.msra.mxu0 0.0
    %1929 = vmatprep.subr.mxu0 0.0
    %1930 = vmatpush1.msra.mxu0 0.0
    %1931 = vmatprep.subr.mxu0 0.0
    %1932 = vmatpush1.msra.mxu0 0.0
    %1933 = vmatprep.subr.mxu0 0.0
    %1934 = vmatpush1.msra.mxu0 0.0
    %1935 = vmatprep.subr.mxu0 0.0
    %1936 = vmatpush1.msra.mxu0 0.0
    %1937 = vmatprep.subr.mxu0 0.0
    %1938 = vmatpush1.msra.mxu0 0.0
    %1939 = vmatprep.subr.mxu0 0.0
    %1940 = vmatpush1.msra.mxu0 0.0
    %1941 = vmatprep.subr.mxu0 0.0
    %1942 = vmatpush1.msra.mxu0 0.0
    %1943 = vmatprep.subr.mxu0 0.0
    %1944 = vmatpush1.msra.mxu0 0.0
    %1945 = vmatprep.mubr.f32.mxu0 0.0
    %1946 = vmatmul.mubr.f32.gmra.mrb[0].mxu0 %v1719
    %v1947 = vpop.f32.mrb[0].mxu0
    %v1948 = vadd.f32 0.0, %v1947
    %v1949 = vpop.f32.mrb[0].mxu0
    %v1950 = vadd.f32 0.0, %v1949
    %1951 = vdwg.mxu0
    %1952 = vmatprep.subr.mxu0 %v901
    %1953 = vmatpush1.msra.mxu0 %v900
    %1954 = vmatprep.subr.mxu0 %v905
    %1955 = vmatpush1.msra.mxu0 %v904
    %1956 = vmatprep.subr.mxu0 %v909
    %1957 = vmatpush1.msra.mxu0 %v908
    %1958 = vmatprep.subr.mxu0 %v913
    %1959 = vmatpush1.msra.mxu0 %v912
    %1960 = vmatprep.subr.mxu0 %v917
    %1961 = vmatpush1.msra.mxu0 %v916
    %1962 = vmatprep.subr.mxu0 %v921
    %1963 = vmatpush1.msra.mxu0 %v920
    %1964 = vmatprep.subr.mxu0 %v925
    %1965 = vmatpush1.msra.mxu0 %v924
    %1966 = vmatprep.subr.mxu0 %v929
    %1967 = vmatpush1.msra.mxu0 %v928
    %1968 = vmatprep.subr.mxu0 %v933
    %1969 = vmatpush1.msra.mxu0 %v932
    %1970 = vmatprep.subr.mxu0 %v937
    %1971 = vmatpush1.msra.mxu0 %v936
    %1972 = vmatprep.subr.mxu0 %v941
    %1973 = vmatpush1.msra.mxu0 %v940
    %1974 = vmatprep.subr.mxu0 %v945
    %1975 = vmatpush1.msra.mxu0 %v944
    %1976 = vmatprep.subr.mxu0 %v949
    %1977 = vmatpush1.msra.mxu0 %v948
    %1978 = vmatprep.subr.mxu0 %v953
    %1979 = vmatpush1.msra.mxu0 %v952
    %1980 = vmatprep.subr.mxu0 %v957
    %1981 = vmatpush1.msra.mxu0 %v956
    %1982 = vmatprep.subr.mxu0 %v961
    %1983 = vmatpush1.msra.mxu0 %v960
    %1984 = vmatprep.subr.mxu0 0.0
    %1985 = vmatpush1.msra.mxu0 0.0
    %1986 = vmatprep.subr.mxu0 0.0
    %1987 = vmatpush1.msra.mxu0 0.0
    %1988 = vmatprep.subr.mxu0 0.0
    %1989 = vmatpush1.msra.mxu0 0.0
    %1990 = vmatprep.subr.mxu0 0.0
    %1991 = vmatpush1.msra.mxu0 0.0
    %1992 = vmatprep.subr.mxu0 0.0
    %1993 = vmatpush1.msra.mxu0 0.0
    %1994 = vmatprep.subr.mxu0 0.0
    %1995 = vmatpush1.msra.mxu0 0.0
    %1996 = vmatprep.subr.mxu0 0.0
    %1997 = vmatpush1.msra.mxu0 0.0
    %1998 = vmatprep.subr.mxu0 0.0
    %1999 = vmatpush1.msra.mxu0 0.0
    %2000 = vmatprep.subr.mxu0 0.0
    %2001 = vmatpush1.msra.mxu0 0.0
    %2002 = vmatprep.subr.mxu0 0.0
    %2003 = vmatpush1.msra.mxu0 0.0
    %2004 = vmatprep.subr.mxu0 0.0
    %2005 = vmatpush1.msra.mxu0 0.0
    %2006 = vmatprep.subr.mxu0 0.0
    %2007 = vmatpush1.msra.mxu0 0.0
    %2008 = vmatprep.subr.mxu0 0.0
    %2009 = vmatpush1.msra.mxu0 0.0
    %2010 = vmatprep.subr.mxu0 0.0
    %2011 = vmatpush1.msra.mxu0 0.0
    %2012 = vmatprep.subr.mxu0 0.0
    %2013 = vmatpush1.msra.mxu0 0.0
    %2014 = vmatprep.subr.mxu0 0.0
    %2015 = vmatpush1.msra.mxu0 0.0
    %2016 = vmatprep.mubr.f32.mxu0 0.0
    %2017 = vmatmul.mubr.f32.gmra.mrb[0].mxu0 %v1719
    %v2018 = vpop.f32.mrb[0].mxu0
    %v2019 = vadd.f32 0.0, %v2018
    %v2020 = vpop.f32.mrb[0].mxu0
    %v2021 = vadd.f32 0.0, %v2020
    %2022 = vdwg.mxu0
    %v2023 = vadd.f32 %v1877, %v1948
    %v2024 = vadd.f32 %v1878, %v1950
    %v2025 = vadd.f32 %v1879, %v2019
    %v2026 = vadd.f32 %v1880, %v2021
    %v2027 = vxor.u32 %v1870, 2147483648
    %v2028 = vmul.f32 %v2027, 1.442695
    %v2029 = vpow.pop %v2028
    %v2030 = vadd.f32 %v2029, 1.0
    %v2031 = vrcp.pop %v2030
    %v2032 = vmul.f32 1.0, %v2031
    %v2033 = vxor.u32 %v1871, 2147483648
    %v2034 = vmul.f32 %v2033, 1.442695
    %v2035 = vpow.pop %v2034
    %v2036 = vadd.f32 %v2035, 1.0
    %v2037 = vrcp.pop %v2036
    %v2038 = vmul.f32 1.0, %v2037
    %v2039 = vtanh.pop %v1872
    %v2040 = vxor.u32 %v1873, 2147483648
    %v2041 = vmul.f32 %v2040, 1.442695
    %v2042 = vpow.pop %v2041
    %v2043 = vadd.f32 %v2042, 1.0
    %v2044 = vrcp.pop %v2043
    %v2045 = vmul.f32 1.0, %v2044
    %v2046 = vmul.f32 %v2038, %v1718
    %v2047 = vmul.f32 %v2032, %v2039
    %v2048 = vadd.f32 %v2046, %v2047
    %v2049 = vtanh.pop %v2048
    %v2050 = vmul.f32 %v2045, %v2049
    %v2051 = vxor.u32 %v2023, 2147483648
    %v2052 = vmul.f32 %v2051, 1.442695
    %v2053 = vpow.pop %v2052
    %v2054 = vadd.f32 %v2053, 1.0
    %v2055 = vrcp.pop %v2054
    %v2056 = vmul.f32 1.0, %v2055
    %v2057 = vxor.u32 %v2024, 2147483648
    %v2058 = vmul.f32 %v2057, 1.442695
    %v2059 = vpow.pop %v2058
    %v2060 = vadd.f32 %v2059, 1.0
    %v2061 = vrcp.pop %v2060
    %v2062 = vmul.f32 1.0, %v2061
    %v2063 = vtanh.pop %v2025
    %v2064 = vxor.u32 %v2026, 2147483648
    %v2065 = vmul.f32 %v2064, 1.442695
    %v2066 = vpow.pop %v2065
    %v2067 = vadd.f32 %v2066, 1.0
    %v2068 = vrcp.pop %v2067
    %v2069 = vmul.f32 1.0, %v2068
    %v2070 = vmul.f32 %v2062, %v1720
    %v2071 = vmul.f32 %v2056, %v2063
    %v2072 = vadd.f32 %v2070, %v2071
    %v2073 = vtanh.pop %v2072
    %v2074 = vmul.f32 %v2069, %v2073
    %vm2075 = vcmp.gt.s32.totalorder %v962, 2
    %vm2076 = vcmp.gt.s32.totalorder %v962, 5
    %v2077 = vsel %vm2075, 1, 0
    %2078 = vset.pattern.permute.xlu0 0
    %2079 = vperm.xlu0 %2078, %v2077
    %v2080 = vpop.permute.xlu0 %2079
    %vm2081 = vcmp.eq.s32.totalorder %v2080, 1
    %v2082 = vsel %vm2081, %v2050, 0.0
    %s2083 = smul.u32 2, 2
    %s2084 = smul.addr %s2083, 8
    %s2085 = scalar_lea.vmem [#allocation3], %s2084
    %2086 = vst [vmem:[%s2085] sm:$0xff] %v2082
    %v2087 = vsel %vm2076, 1, 0
    %2088 = vset.pattern.permute.xlu0 0
    %2089 = vperm.xlu0 %2088, %v2087
    %v2090 = vpop.permute.xlu0 %2089
    %vm2091 = vcmp.eq.s32.totalorder %v2090, 1
    %v2092 = vsel %vm2091, %v2074, 0.0
    %s2093 = smul.u32 5, 2
    %s2094 = smul.addr %s2093, 8
    %s2095 = scalar_lea.vmem [#allocation3], %s2094
    %2096 = vst [vmem:[%s2095 + $0x8] sm:$0xff] %v2092
    %v2097 = vsel %vm2081, %v2050, %v1717
    %v2098 = vsel %vm2081, %v2048, %v1718
    %v2099 = vsel %vm2091, %v2074, %v1719
    %v2100 = vsel %vm2091, %v2072, %v1720
    %s2101 = smul.u32 3, 8
    %s2102 = smul.addr %s2101, 8
    %s2103 = scalar_lea.vmem [#allocation2], %s2102
    %v2104 = vld [vmem:[%s2103] sm:$0xff]
    %v2105 = vld [vmem:[%s2103 + $0x8] sm:$0xff]
    %v2106 = vld [vmem:[%s2103 + $0x10] sm:$0xff]
    %v2107 = vld [vmem:[%s2103 + $0x18] sm:$0xff]
    %2108 = vmatprep.subr.mxu0 %v835
    %2109 = vmatpush1.msra.mxu0 %v834
    %2110 = vmatprep.subr.mxu0 %v839
    %2111 = vmatpush1.msra.mxu0 %v838
    %2112 = vmatprep.subr.mxu0 %v843
    %2113 = vmatpush1.msra.mxu0 %v842
    %2114 = vmatprep.subr.mxu0 %v847
    %2115 = vmatpush1.msra.mxu0 %v846
    %2116 = vmatprep.subr.mxu0 %v851
    %2117 = vmatpush1.msra.mxu0 %v850
    %2118 = vmatprep.subr.mxu0 %v855
    %2119 = vmatpush1.msra.mxu0 %v854
    %2120 = vmatprep.subr.mxu0 %v859
    %2121 = vmatpush1.msra.mxu0 %v858
    %2122 = vmatprep.subr.mxu0 %v863
    %2123 = vmatpush1.msra.mxu0 %v862
    %2124 = vmatprep.subr.mxu0 %v867
    %2125 = vmatpush1.msra.mxu0 %v866
    %2126 = vmatprep.subr.mxu0 %v871
    %2127 = vmatpush1.msra.mxu0 %v870
    %2128 = vmatprep.subr.mxu0 %v875
    %2129 = vmatpush1.msra.mxu0 %v874
    %2130 = vmatprep.subr.mxu0 %v879
    %2131 = vmatpush1.msra.mxu0 %v878
    %2132 = vmatprep.subr.mxu0 %v883
    %2133 = vmatpush1.msra.mxu0 %v882
    %2134 = vmatprep.subr.mxu0 %v887
    %2135 = vmatpush1.msra.mxu0 %v886
    %2136 = vmatprep.subr.mxu0 %v891
    %2137 = vmatpush1.msra.mxu0 %v890
    %2138 = vmatprep.subr.mxu0 %v895
    %2139 = vmatpush1.msra.mxu0 %v894
    %2140 = vmatprep.subr.mxu0 0.0
    %2141 = vmatpush1.msra.mxu0 0.0
    %2142 = vmatprep.subr.mxu0 0.0
    %2143 = vmatpush1.msra.mxu0 0.0
    %2144 = vmatprep.subr.mxu0 0.0
    %2145 = vmatpush1.msra.mxu0 0.0
    %2146 = vmatprep.subr.mxu0 0.0
    %2147 = vmatpush1.msra.mxu0 0.0
    %2148 = vmatprep.subr.mxu0 0.0
    %2149 = vmatpush1.msra.mxu0 0.0
    %2150 = vmatprep.subr.mxu0 0.0
    %2151 = vmatpush1.msra.mxu0 0.0
    %2152 = vmatprep.subr.mxu0 0.0
    %2153 = vmatpush1.msra.mxu0 0.0
    %2154 = vmatprep.subr.mxu0 0.0
    %2155 = vmatpush1.msra.mxu0 0.0
    %2156 = vmatprep.subr.mxu0 0.0
    %2157 = vmatpush1.msra.mxu0 0.0
    %2158 = vmatprep.subr.mxu0 0.0
    %2159 = vmatpush1.msra.mxu0 0.0
    %2160 = vmatprep.subr.mxu0 0.0
    %2161 = vmatpush1.msra.mxu0 0.0
    %2162 = vmatprep.subr.mxu0 0.0
    %2163 = vmatpush1.msra.mxu0 0.0
    %2164 = vmatprep.subr.mxu0 0.0
    %2165 = vmatpush1.msra.mxu0 0.0
    %2166 = vmatprep.subr.mxu0 0.0
    %2167 = vmatpush1.msra.mxu0 0.0
    %2168 = vmatprep.subr.mxu0 0.0
    %2169 = vmatpush1.msra.mxu0 0.0
    %2170 = vmatprep.subr.mxu0 0.0
    %2171 = vmatpush1.msra.mxu0 0.0
    %2172 = vmatprep.mubr.f32.mxu0 0.0
    %2173 = vmatmul.mubr.f32.gmra.mrb[0].mxu0 %v2097
    %v2174 = vpop.f32.mrb[0].mxu0
    %v2175 = vadd.f32 0.0, %v2174
    %v2176 = vpop.f32.mrb[0].mxu0
    %v2177 = vadd.f32 0.0, %v2176
    %2178 = vdwg.mxu0
    %2179 = vmatprep.subr.mxu0 %v837
    %2180 = vmatpush1.msra.mxu0 %v836
    %2181 = vmatprep.subr.mxu0 %v841
    %2182 = vmatpush1.msra.mxu0 %v840
    %2183 = vmatprep.subr.mxu0 %v845
    %2184 = vmatpush1.msra.mxu0 %v844
    %2185 = vmatprep.subr.mxu0 %v849
    %2186 = vmatpush1.msra.mxu0 %v848
    %2187 = vmatprep.subr.mxu0 %v853
    %2188 = vmatpush1.msra.mxu0 %v852
    %2189 = vmatprep.subr.mxu0 %v857
    %2190 = vmatpush1.msra.mxu0 %v856
    %2191 = vmatprep.subr.mxu0 %v861
    %2192 = vmatpush1.msra.mxu0 %v860
    %2193 = vmatprep.subr.mxu0 %v865
    %2194 = vmatpush1.msra.mxu0 %v864
    %2195 = vmatprep.subr.mxu0 %v869
    %2196 = vmatpush1.msra.mxu0 %v868
    %2197 = vmatprep.subr.mxu0 %v873
    %2198 = vmatpush1.msra.mxu0 %v872
    %2199 = vmatprep.subr.mxu0 %v877
    %2200 = vmatpush1.msra.mxu0 %v876
    %2201 = vmatprep.subr.mxu0 %v881
    %2202 = vmatpush1.msra.mxu0 %v880
    %2203 = vmatprep.subr.mxu0 %v885
    %2204 = vmatpush1.msra.mxu0 %v884
    %2205 = vmatprep.subr.mxu0 %v889
    %2206 = vmatpush1.msra.mxu0 %v888
    %2207 = vmatprep.subr.mxu0 %v893
    %2208 = vmatpush1.msra.mxu0 %v892
    %2209 = vmatprep.subr.mxu0 %v897
    %2210 = vmatpush1.msra.mxu0 %v896
    %2211 = vmatprep.subr.mxu0 0.0
    %2212 = vmatpush1.msra.mxu0 0.0
    %2213 = vmatprep.subr.mxu0 0.0
    %2214 = vmatpush1.msra.mxu0 0.0
    %2215 = vmatprep.subr.mxu0 0.0
    %2216 = vmatpush1.msra.mxu0 0.0
    %2217 = vmatprep.subr.mxu0 0.0
    %2218 = vmatpush1.msra.mxu0 0.0
    %2219 = vmatprep.subr.mxu0 0.0
    %2220 = vmatpush1.msra.mxu0 0.0
    %2221 = vmatprep.subr.mxu0 0.0
    %2222 = vmatpush1.msra.mxu0 0.0
    %2223 = vmatprep.subr.mxu0 0.0
    %2224 = vmatpush1.msra.mxu0 0.0
    %2225 = vmatprep.subr.mxu0 0.0
    %2226 = vmatpush1.msra.mxu0 0.0
    %2227 = vmatprep.subr.mxu0 0.0
    %2228 = vmatpush1.msra.mxu0 0.0
    %2229 = vmatprep.subr.mxu0 0.0
    %2230 = vmatpush1.msra.mxu0 0.0
    %2231 = vmatprep.subr.mxu0 0.0
    %2232 = vmatpush1.msra.mxu0 0.0
    %2233 = vmatprep.subr.mxu0 0.0
    %2234 = vmatpush1.msra.mxu0 0.0
    %2235 = vmatprep.subr.mxu0 0.0
    %2236 = vmatpush1.msra.mxu0 0.0
    %2237 = vmatprep.subr.mxu0 0.0
    %2238 = vmatpush1.msra.mxu0 0.0
    %2239 = vmatprep.subr.mxu0 0.0
    %2240 = vmatpush1.msra.mxu0 0.0
    %2241 = vmatprep.subr.mxu0 0.0
    %2242 = vmatpush1.msra.mxu0 0.0
    %2243 = vmatprep.mubr.f32.mxu0 0.0
    %2244 = vmatmul.mubr.f32.gmra.mrb[0].mxu0 %v2097
    %v2245 = vpop.f32.mrb[0].mxu0
    %v2246 = vadd.f32 0.0, %v2245
    %v2247 = vpop.f32.mrb[0].mxu0
    %v2248 = vadd.f32 0.0, %v2247
    %2249 = vdwg.mxu0
    %v2250 = vadd.f32 %v2104, %v2175
    %v2251 = vadd.f32 %v2105, %v2177
    %v2252 = vadd.f32 %v2106, %v2246
    %v2253 = vadd.f32 %v2107, %v2248
    %s2254 = smul.u32 4, 8
    %s2255 = smul.addr %s2254, 8
    %s2256 = scalar_lea.vmem [#allocation2], %s2255
    %v2257 = vld [vmem:[%s2256 + $0x20] sm:$0xff]
    %v2258 = vld [vmem:[%s2256 + $0x28] sm:$0xff]
    %v2259 = vld [vmem:[%s2256 + $0x30] sm:$0xff]
    %v2260 = vld [vmem:[%s2256 + $0x38] sm:$0xff]
    %2261 = vmatprep.subr.mxu0 %v899
    %2262 = vmatpush1.msra.mxu0 %v898
    %2263 = vmatprep.subr.mxu0 %v903
    %2264 = vmatpush1.msra.mxu0 %v902
    %2265 = vmatprep.subr.mxu0 %v907
    %2266 = vmatpush1.msra.mxu0 %v906
    %2267 = vmatprep.subr.mxu0 %v911
    %2268 = vmatpush1.msra.mxu0 %v910
    %2269 = vmatprep.subr.mxu0 %v915
    %2270 = vmatpush1.msra.mxu0 %v914
    %2271 = vmatprep.subr.mxu0 %v919
    %2272 = vmatpush1.msra.mxu0 %v918
    %2273 = vmatprep.subr.mxu0 %v923
    %2274 = vmatpush1.msra.mxu0 %v922
    %2275 = vmatprep.subr.mxu0 %v927
    %2276 = vmatpush1.msra.mxu0 %v926
    %2277 = vmatprep.subr.mxu0 %v931
    %2278 = vmatpush1.msra.mxu0 %v930
    %2279 = vmatprep.subr.mxu0 %v935
    %2280 = vmatpush1.msra.mxu0 %v934
    %2281 = vmatprep.subr.mxu0 %v939
    %2282 = vmatpush1.msra.mxu0 %v938
    %2283 = vmatprep.subr.mxu0 %v943
    %2284 = vmatpush1.msra.mxu0 %v942
    %2285 = vmatprep.subr.mxu0 %v947
    %2286 = vmatpush1.msra.mxu0 %v946
    %2287 = vmatprep.subr.mxu0 %v951
    %2288 = vmatpush1.msra.mxu0 %v950
    %2289 = vmatprep.subr.mxu0 %v955
    %2290 = vmatpush1.msra.mxu0 %v954
    %2291 = vmatprep.subr.mxu0 %v959
    %2292 = vmatpush1.msra.mxu0 %v958
    %2293 = vmatprep.subr.mxu0 0.0
    %2294 = vmatpush1.msra.mxu0 0.0
    %2295 = vmatprep.subr.mxu0 0.0
    %2296 = vmatpush1.msra.mxu0 0.0
    %2297 = vmatprep.subr.mxu0 0.0
    %2298 = vmatpush1.msra.mxu0 0.0
    %2299 = vmatprep.subr.mxu0 0.0
    %2300 = vmatpush1.msra.mxu0 0.0
    %2301 = vmatprep.subr.mxu0 0.0
    %2302 = vmatpush1.msra.mxu0 0.0
    %2303 = vmatprep.subr.mxu0 0.0
    %2304 = vmatpush1.msra.mxu0 0.0
    %2305 = vmatprep.subr.mxu0 0.0
    %2306 = vmatpush1.msra.mxu0 0.0
    %2307 = vmatprep.subr.mxu0 0.0
    %2308 = vmatpush1.msra.mxu0 0.0
    %2309 = vmatprep.subr.mxu0 0.0
    %2310 = vmatpush1.msra.mxu0 0.0
    %2311 = vmatprep.subr.mxu0 0.0
    %2312 = vmatpush1.msra.mxu0 0.0
    %2313 = vmatprep.subr.mxu0 0.0
    %2314 = vmatpush1.msra.mxu0 0.0
    %2315 = vmatprep.subr.mxu0 0.0
    %2316 = vmatpush1.msra.mxu0 0.0
    %2317 = vmatprep.subr.mxu0 0.0
    %2318 = vmatpush1.msra.mxu0 0.0
    %2319 = vmatprep.subr.mxu0 0.0
    %2320 = vmatpush1.msra.mxu0 0.0
    %2321 = vmatprep.subr.mxu0 0.0
    %2322 = vmatpush1.msra.mxu0 0.0
    %2323 = vmatprep.subr.mxu0 0.0
    %2324 = vmatpush1.msra.mxu0 0.0
    %2325 = vmatprep.mubr.f32.mxu0 0.0
    %2326 = vmatmul.mubr.f32.gmra.mrb[0].mxu0 %v2099
    %v2327 = vpop.f32.mrb[0].mxu0
    %v2328 = vadd.f32 0.0, %v2327
    %v2329 = vpop.f32.mrb[0].mxu0
    %v2330 = vadd.f32 0.0, %v2329
    %2331 = vdwg.mxu0
    %2332 = vmatprep.subr.mxu0 %v901
    %2333 = vmatpush1.msra.mxu0 %v900
    %2334 = vmatprep.subr.mxu0 %v905
    %2335 = vmatpush1.msra.mxu0 %v904
    %2336 = vmatprep.subr.mxu0 %v909
    %2337 = vmatpush1.msra.mxu0 %v908
    %2338 = vmatprep.subr.mxu0 %v913
    %2339 = vmatpush1.msra.mxu0 %v912
    %2340 = vmatprep.subr.mxu0 %v917
    %2341 = vmatpush1.msra.mxu0 %v916
    %2342 = vmatprep.subr.mxu0 %v921
    %2343 = vmatpush1.msra.mxu0 %v920
    %2344 = vmatprep.subr.mxu0 %v925
    %2345 = vmatpush1.msra.mxu0 %v924
    %2346 = vmatprep.subr.mxu0 %v929
    %2347 = vmatpush1.msra.mxu0 %v928
    %2348 = vmatprep.subr.mxu0 %v933
    %2349 = vmatpush1.msra.mxu0 %v932
    %2350 = vmatprep.subr.mxu0 %v937
    %2351 = vmatpush1.msra.mxu0 %v936
    %2352 = vmatprep.subr.mxu0 %v941
    %2353 = vmatpush1.msra.mxu0 %v940
    %2354 = vmatprep.subr.mxu0 %v945
    %2355 = vmatpush1.msra.mxu0 %v944
    %2356 = vmatprep.subr.mxu0 %v949
    %2357 = vmatpush1.msra.mxu0 %v948
    %2358 = vmatprep.subr.mxu0 %v953
    %2359 = vmatpush1.msra.mxu0 %v952
    %2360 = vmatprep.subr.mxu0 %v957
    %2361 = vmatpush1.msra.mxu0 %v956
    %2362 = vmatprep.subr.mxu0 %v961
    %2363 = vmatpush1.msra.mxu0 %v960
    %2364 = vmatprep.subr.mxu0 0.0
    %2365 = vmatpush1.msra.mxu0 0.0
    %2366 = vmatprep.subr.mxu0 0.0
    %2367 = vmatpush1.msra.mxu0 0.0
    %2368 = vmatprep.subr.mxu0 0.0
    %2369 = vmatpush1.msra.mxu0 0.0
    %2370 = vmatprep.subr.mxu0 0.0
    %2371 = vmatpush1.msra.mxu0 0.0
    %2372 = vmatprep.subr.mxu0 0.0
    %2373 = vmatpush1.msra.mxu0 0.0
    %2374 = vmatprep.subr.mxu0 0.0
    %2375 = vmatpush1.msra.mxu0 0.0
    %2376 = vmatprep.subr.mxu0 0.0
    %2377 = vmatpush1.msra.mxu0 0.0
    %2378 = vmatprep.subr.mxu0 0.0
    %2379 = vmatpush1.msra.mxu0 0.0
    %2380 = vmatprep.subr.mxu0 0.0
    %2381 = vmatpush1.msra.mxu0 0.0
    %2382 = vmatprep.subr.mxu0 0.0
    %2383 = vmatpush1.msra.mxu0 0.0
    %2384 = vmatprep.subr.mxu0 0.0
    %2385 = vmatpush1.msra.mxu0 0.0
    %2386 = vmatprep.subr.mxu0 0.0
    %2387 = vmatpush1.msra.mxu0 0.0
    %2388 = vmatprep.subr.mxu0 0.0
    %2389 = vmatpush1.msra.mxu0 0.0
    %2390 = vmatprep.subr.mxu0 0.0
    %2391 = vmatpush1.msra.mxu0 0.0
    %2392 = vmatprep.subr.mxu0 0.0
    %2393 = vmatpush1.msra.mxu0 0.0
    %2394 = vmatprep.subr.mxu0 0.0
    %2395 = vmatpush1.msra.mxu0 0.0
    %2396 = vmatprep.mubr.f32.mxu0 0.0
    %2397 = vmatmul.mubr.f32.gmra.mrb[0].mxu0 %v2099
    %v2398 = vpop.f32.mrb[0].mxu0
    %v2399 = vadd.f32 0.0, %v2398
    %v2400 = vpop.f32.mrb[0].mxu0
    %v2401 = vadd.f32 0.0, %v2400
    %2402 = vdwg.mxu0
    %v2403 = vadd.f32 %v2257, %v2328
    %v2404 = vadd.f32 %v2258, %v2330
    %v2405 = vadd.f32 %v2259, %v2399
    %v2406 = vadd.f32 %v2260, %v2401
    %v2407 = vxor.u32 %v2250, 2147483648
    %v2408 = vmul.f32 %v2407, 1.442695
    %v2409 = vpow.pop %v2408
    %v2410 = vadd.f32 %v2409, 1.0
    %v2411 = vrcp.pop %v2410
    %v2412 = vmul.f32 1.0, %v2411
    %v2413 = vxor.u32 %v2251, 2147483648
    %v2414 = vmul.f32 %v2413, 1.442695
    %v2415 = vpow.pop %v2414
    %v2416 = vadd.f32 %v2415, 1.0
    %v2417 = vrcp.pop %v2416
    %v2418 = vmul.f32 1.0, %v2417
    %v2419 = vtanh.pop %v2252
    %v2420 = vxor.u32 %v2253, 2147483648
    %v2421 = vmul.f32 %v2420, 1.442695
    %v2422 = vpow.pop %v2421
    %v2423 = vadd.f32 %v2422, 1.0
    %v2424 = vrcp.pop %v2423
    %v2425 = vmul.f32 1.0, %v2424
    %v2426 = vmul.f32 %v2418, %v2098
    %v2427 = vmul.f32 %v2412, %v2419
    %v2428 = vadd.f32 %v2426, %v2427
    %v2429 = vtanh.pop %v2428
    %v2430 = vmul.f32 %v2425, %v2429
    %v2431 = vxor.u32 %v2403, 2147483648
    %v2432 = vmul.f32 %v2431, 1.442695
    %v2433 = vpow.pop %v2432
    %v2434 = vadd.f32 %v2433, 1.0
    %v2435 = vrcp.pop %v2434
    %v2436 = vmul.f32 1.0, %v2435
    %v2437 = vxor.u32 %v2404, 2147483648
    %v2438 = vmul.f32 %v2437, 1.442695
    %v2439 = vpow.pop %v2438
    %v2440 = vadd.f32 %v2439, 1.0
    %v2441 = vrcp.pop %v2440
    %v2442 = vmul.f32 1.0, %v2441
    %v2443 = vtanh.pop %v2405
    %v2444 = vxor.u32 %v2406, 2147483648
    %v2445 = vmul.f32 %v2444, 1.442695
    %v2446 = vpow.pop %v2445
    %v2447 = vadd.f32 %v2446, 1.0
    %v2448 = vrcp.pop %v2447
    %v2449 = vmul.f32 1.0, %v2448
    %v2450 = vmul.f32 %v2442, %v2100
    %v2451 = vmul.f32 %v2436, %v2443
    %v2452 = vadd.f32 %v2450, %v2451
    %v2453 = vtanh.pop %v2452
    %v2454 = vmul.f32 %v2449, %v2453
    %vm2455 = vcmp.gt.s32.totalorder %v962, 3
    %vm2456 = vcmp.gt.s32.totalorder %v962, 4
    %v2457 = vsel %vm2455, 1, 0
    %2458 = vset.pattern.permute.xlu0 0
    %2459 = vperm.xlu0 %2458, %v2457
    %v2460 = vpop.permute.xlu0 %2459
    %vm2461 = vcmp.eq.s32.totalorder %v2460, 1
    %v2462 = vsel %vm2461, %v2430, 0.0
    %s2463 = smul.u32 3, 2
    %s2464 = smul.addr %s2463, 8
    %s2465 = scalar_lea.vmem [#allocation3], %s2464
    %2466 = vst [vmem:[%s2465] sm:$0xff] %v2462
    %v2467 = vsel %vm2456, 1, 0
    %2468 = vset.pattern.permute.xlu0 0
    %2469 = vperm.xlu0 %2468, %v2467
    %v2470 = vpop.permute.xlu0 %2469
    %vm2471 = vcmp.eq.s32.totalorder %v2470, 1
    %v2472 = vsel %vm2471, %v2454, 0.0
    %s2473 = smul.u32 4, 2
    %s2474 = smul.addr %s2473, 8
    %s2475 = scalar_lea.vmem [#allocation3], %s2474
    %2476 = vst [vmem:[%s2475 + $0x8] sm:$0xff] %v2472
    %v2477 = vsel %vm2461, %v2430, %v2097
    %v2478 = vsel %vm2461, %v2428, %v2098
    %v2479 = vsel %vm2471, %v2454, %v2099
    %v2480 = vsel %vm2471, %v2452, %v2100
    %v2481 = vld [vmem:[%s2256] sm:$0xff]
    %v2482 = vld [vmem:[%s2256 + $0x8] sm:$0xff]
    %v2483 = vld [vmem:[%s2256 + $0x10] sm:$0xff]
    %v2484 = vld [vmem:[%s2256 + $0x18] sm:$0xff]
    %2485 = vmatprep.subr.mxu0 %v835
    %2486 = vmatpush1.msra.mxu0 %v834
    %2487 = vmatprep.subr.mxu0 %v839
    %2488 = vmatpush1.msra.mxu0 %v838
    %2489 = vmatprep.subr.mxu0 %v843
    %2490 = vmatpush1.msra.mxu0 %v842
    %2491 = vmatprep.subr.mxu0 %v847
    %2492 = vmatpush1.msra.mxu0 %v846
    %2493 = vmatprep.subr.mxu0 %v851
    %2494 = vmatpush1.msra.mxu0 %v850
    %2495 = vmatprep.subr.mxu0 %v855
    %2496 = vmatpush1.msra.mxu0 %v854
    %2497 = vmatprep.subr.mxu0 %v859
    %2498 = vmatpush1.msra.mxu0 %v858
    %2499 = vmatprep.subr.mxu0 %v863
    %2500 = vmatpush1.msra.mxu0 %v862
    %2501 = vmatprep.subr.mxu0 %v867
    %2502 = vmatpush1.msra.mxu0 %v866
    %2503 = vmatprep.subr.mxu0 %v871
    %2504 = vmatpush1.msra.mxu0 %v870
    %2505 = vmatprep.subr.mxu0 %v875
    %2506 = vmatpush1.msra.mxu0 %v874
    %2507 = vmatprep.subr.mxu0 %v879
    %2508 = vmatpush1.msra.mxu0 %v878
    %2509 = vmatprep.subr.mxu0 %v883
    %2510 = vmatpush1.msra.mxu0 %v882
    %2511 = vmatprep.subr.mxu0 %v887
    %2512 = vmatpush1.msra.mxu0 %v886
    %2513 = vmatprep.subr.mxu0 %v891
    %2514 = vmatpush1.msra.mxu0 %v890
    %2515 = vmatprep.subr.mxu0 %v895
    %2516 = vmatpush1.msra.mxu0 %v894
    %2517 = vmatprep.subr.mxu0 0.0
    %2518 = vmatpush1.msra.mxu0 0.0
    %2519 = vmatprep.subr.mxu0 0.0
    %2520 = vmatpush1.msra.mxu0 0.0
    %2521 = vmatprep.subr.mxu0 0.0
    %2522 = vmatpush1.msra.mxu0 0.0
    %2523 = vmatprep.subr.mxu0 0.0
    %2524 = vmatpush1.msra.mxu0 0.0
    %2525 = vmatprep.subr.mxu0 0.0
    %2526 = vmatpush1.msra.mxu0 0.0
    %2527 = vmatprep.subr.mxu0 0.0
    %2528 = vmatpush1.msra.mxu0 0.0
    %2529 = vmatprep.subr.mxu0 0.0
    %2530 = vmatpush1.msra.mxu0 0.0
    %2531 = vmatprep.subr.mxu0 0.0
    %2532 = vmatpush1.msra.mxu0 0.0
    %2533 = vmatprep.subr.mxu0 0.0
    %2534 = vmatpush1.msra.mxu0 0.0
    %2535 = vmatprep.subr.mxu0 0.0
    %2536 = vmatpush1.msra.mxu0 0.0
    %2537 = vmatprep.subr.mxu0 0.0
    %2538 = vmatpush1.msra.mxu0 0.0
    %2539 = vmatprep.subr.mxu0 0.0
    %2540 = vmatpush1.msra.mxu0 0.0
    %2541 = vmatprep.subr.mxu0 0.0
    %2542 = vmatpush1.msra.mxu0 0.0
    %2543 = vmatprep.subr.mxu0 0.0
    %2544 = vmatpush1.msra.mxu0 0.0
    %2545 = vmatprep.subr.mxu0 0.0
    %2546 = vmatpush1.msra.mxu0 0.0
    %2547 = vmatprep.subr.mxu0 0.0
    %2548 = vmatpush1.msra.mxu0 0.0
    %2549 = vmatprep.mubr.f32.mxu0 0.0
    %2550 = vmatmul.mubr.f32.gmra.mrb[0].mxu0 %v2477
    %v2551 = vpop.f32.mrb[0].mxu0
    %v2552 = vadd.f32 0.0, %v2551
    %v2553 = vpop.f32.mrb[0].mxu0
    %v2554 = vadd.f32 0.0, %v2553
    %2555 = vdwg.mxu0
    %2556 = vmatprep.subr.mxu0 %v837
    %2557 = vmatpush1.msra.mxu0 %v836
    %2558 = vmatprep.subr.mxu0 %v841
    %2559 = vmatpush1.msra.mxu0 %v840
    %2560 = vmatprep.subr.mxu0 %v845
    %2561 = vmatpush1.msra.mxu0 %v844
    %2562 = vmatprep.subr.mxu0 %v849
    %2563 = vmatpush1.msra.mxu0 %v848
    %2564 = vmatprep.subr.mxu0 %v853
    %2565 = vmatpush1.msra.mxu0 %v852
    %2566 = vmatprep.subr.mxu0 %v857
    %2567 = vmatpush1.msra.mxu0 %v856
    %2568 = vmatprep.subr.mxu0 %v861
    %2569 = vmatpush1.msra.mxu0 %v860
    %2570 = vmatprep.subr.mxu0 %v865
    %2571 = vmatpush1.msra.mxu0 %v864
    %2572 = vmatprep.subr.mxu0 %v869
    %2573 = vmatpush1.msra.mxu0 %v868
    %2574 = vmatprep.subr.mxu0 %v873
    %2575 = vmatpush1.msra.mxu0 %v872
    %2576 = vmatprep.subr.mxu0 %v877
    %2577 = vmatpush1.msra.mxu0 %v876
    %2578 = vmatprep.subr.mxu0 %v881
    %2579 = vmatpush1.msra.mxu0 %v880
    %2580 = vmatprep.subr.mxu0 %v885
    %2581 = vmatpush1.msra.mxu0 %v884
    %2582 = vmatprep.subr.mxu0 %v889
    %2583 = vmatpush1.msra.mxu0 %v888
    %2584 = vmatprep.subr.mxu0 %v893
    %2585 = vmatpush1.msra.mxu0 %v892
    %2586 = vmatprep.subr.mxu0 %v897
    %2587 = vmatpush1.msra.mxu0 %v896
    %2588 = vmatprep.subr.mxu0 0.0
    %2589 = vmatpush1.msra.mxu0 0.0
    %2590 = vmatprep.subr.mxu0 0.0
    %2591 = vmatpush1.msra.mxu0 0.0
    %2592 = vmatprep.subr.mxu0 0.0
    %2593 = vmatpush1.msra.mxu0 0.0
    %2594 = vmatprep.subr.mxu0 0.0
    %2595 = vmatpush1.msra.mxu0 0.0
    %2596 = vmatprep.subr.mxu0 0.0
    %2597 = vmatpush1.msra.mxu0 0.0
    %2598 = vmatprep.subr.mxu0 0.0
    %2599 = vmatpush1.msra.mxu0 0.0
    %2600 = vmatprep.subr.mxu0 0.0
    %2601 = vmatpush1.msra.mxu0 0.0
    %2602 = vmatprep.subr.mxu0 0.0
    %2603 = vmatpush1.msra.mxu0 0.0
    %2604 = vmatprep.subr.mxu0 0.0
    %2605 = vmatpush1.msra.mxu0 0.0
    %2606 = vmatprep.subr.mxu0 0.0
    %2607 = vmatpush1.msra.mxu0 0.0
    %2608 = vmatprep.subr.mxu0 0.0
    %2609 = vmatpush1.msra.mxu0 0.0
    %2610 = vmatprep.subr.mxu0 0.0
    %2611 = vmatpush1.msra.mxu0 0.0
    %2612 = vmatprep.subr.mxu0 0.0
    %2613 = vmatpush1.msra.mxu0 0.0
    %2614 = vmatprep.subr.mxu0 0.0
    %2615 = vmatpush1.msra.mxu0 0.0
    %2616 = vmatprep.subr.mxu0 0.0
    %2617 = vmatpush1.msra.mxu0 0.0
    %2618 = vmatprep.subr.mxu0 0.0
    %2619 = vmatpush1.msra.mxu0 0.0
    %2620 = vmatprep.mubr.f32.mxu0 0.0
    %2621 = vmatmul.mubr.f32.gmra.mrb[0].mxu0 %v2477
    %v2622 = vpop.f32.mrb[0].mxu0
    %v2623 = vadd.f32 0.0, %v2622
    %v2624 = vpop.f32.mrb[0].mxu0
    %v2625 = vadd.f32 0.0, %v2624
    %2626 = vdwg.mxu0
    %v2627 = vadd.f32 %v2481, %v2552
    %v2628 = vadd.f32 %v2482, %v2554
    %v2629 = vadd.f32 %v2483, %v2623
    %v2630 = vadd.f32 %v2484, %v2625
    %v2631 = vld [vmem:[%s2103 + $0x20] sm:$0xff]
    %v2632 = vld [vmem:[%s2103 + $0x28] sm:$0xff]
    %v2633 = vld [vmem:[%s2103 + $0x30] sm:$0xff]
    %v2634 = vld [vmem:[%s2103 + $0x38] sm:$0xff]
    %2635 = vmatprep.subr.mxu0 %v899
    %2636 = vmatpush1.msra.mxu0 %v898
    %2637 = vmatprep.subr.mxu0 %v903
    %2638 = vmatpush1.msra.mxu0 %v902
    %2639 = vmatprep.subr.mxu0 %v907
    %2640 = vmatpush1.msra.mxu0 %v906
    %2641 = vmatprep.subr.mxu0 %v911
    %2642 = vmatpush1.msra.mxu0 %v910
    %2643 = vmatprep.subr.mxu0 %v915
    %2644 = vmatpush1.msra.mxu0 %v914
    %2645 = vmatprep.subr.mxu0 %v919
    %2646 = vmatpush1.msra.mxu0 %v918
    %2647 = vmatprep.subr.mxu0 %v923
    %2648 = vmatpush1.msra.mxu0 %v922
    %2649 = vmatprep.subr.mxu0 %v927
    %2650 = vmatpush1.msra.mxu0 %v926
    %2651 = vmatprep.subr.mxu0 %v931
    %2652 = vmatpush1.msra.mxu0 %v930
    %2653 = vmatprep.subr.mxu0 %v935
    %2654 = vmatpush1.msra.mxu0 %v934
    %2655 = vmatprep.subr.mxu0 %v939
    %2656 = vmatpush1.msra.mxu0 %v938
    %2657 = vmatprep.subr.mxu0 %v943
    %2658 = vmatpush1.msra.mxu0 %v942
    %2659 = vmatprep.subr.mxu0 %v947
    %2660 = vmatpush1.msra.mxu0 %v946
    %2661 = vmatprep.subr.mxu0 %v951
    %2662 = vmatpush1.msra.mxu0 %v950
    %2663 = vmatprep.subr.mxu0 %v955
    %2664 = vmatpush1.msra.mxu0 %v954
    %2665 = vmatprep.subr.mxu0 %v959
    %2666 = vmatpush1.msra.mxu0 %v958
    %2667 = vmatprep.subr.mxu0 0.0
    %2668 = vmatpush1.msra.mxu0 0.0
    %2669 = vmatprep.subr.mxu0 0.0
    %2670 = vmatpush1.msra.mxu0 0.0
    %2671 = vmatprep.subr.mxu0 0.0
    %2672 = vmatpush1.msra.mxu0 0.0
    %2673 = vmatprep.subr.mxu0 0.0
    %2674 = vmatpush1.msra.mxu0 0.0
    %2675 = vmatprep.subr.mxu0 0.0
    %2676 = vmatpush1.msra.mxu0 0.0
    %2677 = vmatprep.subr.mxu0 0.0
    %2678 = vmatpush1.msra.mxu0 0.0
    %2679 = vmatprep.subr.mxu0 0.0
    %2680 = vmatpush1.msra.mxu0 0.0
    %2681 = vmatprep.subr.mxu0 0.0
    %2682 = vmatpush1.msra.mxu0 0.0
    %2683 = vmatprep.subr.mxu0 0.0
    %2684 = vmatpush1.msra.mxu0 0.0
    %2685 = vmatprep.subr.mxu0 0.0
    %2686 = vmatpush1.msra.mxu0 0.0
    %2687 = vmatprep.subr.mxu0 0.0
    %2688 = vmatpush1.msra.mxu0 0.0
    %2689 = vmatprep.subr.mxu0 0.0
    %2690 = vmatpush1.msra.mxu0 0.0
    %2691 = vmatprep.subr.mxu0 0.0
    %2692 = vmatpush1.msra.mxu0 0.0
    %2693 = vmatprep.subr.mxu0 0.0
    %2694 = vmatpush1.msra.mxu0 0.0
    %2695 = vmatprep.subr.mxu0 0.0
    %2696 = vmatpush1.msra.mxu0 0.0
    %2697 = vmatprep.subr.mxu0 0.0
    %2698 = vmatpush1.msra.mxu0 0.0
    %2699 = vmatprep.mubr.f32.mxu0 0.0
    %2700 = vmatmul.mubr.f32.gmra.mrb[0].mxu0 %v2479
    %v2701 = vpop.f32.mrb[0].mxu0
    %v2702 = vadd.f32 0.0, %v2701
    %v2703 = vpop.f32.mrb[0].mxu0
    %v2704 = vadd.f32 0.0, %v2703
    %2705 = vdwg.mxu0
    %2706 = vmatprep.subr.mxu0 %v901
    %2707 = vmatpush1.msra.mxu0 %v900
    %2708 = vmatprep.subr.mxu0 %v905
    %2709 = vmatpush1.msra.mxu0 %v904
    %2710 = vmatprep.subr.mxu0 %v909
    %2711 = vmatpush1.msra.mxu0 %v908
    %2712 = vmatprep.subr.mxu0 %v913
    %2713 = vmatpush1.msra.mxu0 %v912
    %2714 = vmatprep.subr.mxu0 %v917
    %2715 = vmatpush1.msra.mxu0 %v916
    %2716 = vmatprep.subr.mxu0 %v921
    %2717 = vmatpush1.msra.mxu0 %v920
    %2718 = vmatprep.subr.mxu0 %v925
    %2719 = vmatpush1.msra.mxu0 %v924
    %2720 = vmatprep.subr.mxu0 %v929
    %2721 = vmatpush1.msra.mxu0 %v928
    %2722 = vmatprep.subr.mxu0 %v933
    %2723 = vmatpush1.msra.mxu0 %v932
    %2724 = vmatprep.subr.mxu0 %v937
    %2725 = vmatpush1.msra.mxu0 %v936
    %2726 = vmatprep.subr.mxu0 %v941
    %2727 = vmatpush1.msra.mxu0 %v940
    %2728 = vmatprep.subr.mxu0 %v945
    %2729 = vmatpush1.msra.mxu0 %v944
    %2730 = vmatprep.subr.mxu0 %v949
    %2731 = vmatpush1.msra.mxu0 %v948
    %2732 = vmatprep.subr.mxu0 %v953
    %2733 = vmatpush1.msra.mxu0 %v952
    %2734 = vmatprep.subr.mxu0 %v957
    %2735 = vmatpush1.msra.mxu0 %v956
    %2736 = vmatprep.subr.mxu0 %v961
    %2737 = vmatpush1.msra.mxu0 %v960
    %2738 = vmatprep.subr.mxu0 0.0
    %2739 = vmatpush1.msra.mxu0 0.0
    %2740 = vmatprep.subr.mxu0 0.0
    %2741 = vmatpush1.msra.mxu0 0.0
    %2742 = vmatprep.subr.mxu0 0.0
    %2743 = vmatpush1.msra.mxu0 0.0
    %2744 = vmatprep.subr.mxu0 0.0
    %2745 = vmatpush1.msra.mxu0 0.0
    %2746 = vmatprep.subr.mxu0 0.0
    %2747 = vmatpush1.msra.mxu0 0.0
    %2748 = vmatprep.subr.mxu0 0.0
    %2749 = vmatpush1.msra.mxu0 0.0
    %2750 = vmatprep.subr.mxu0 0.0
    %2751 = vmatpush1.msra.mxu0 0.0
    %2752 = vmatprep.subr.mxu0 0.0
    %2753 = vmatpush1.msra.mxu0 0.0
    %2754 = vmatprep.subr.mxu0 0.0
    %2755 = vmatpush1.msra.mxu0 0.0
    %2756 = vmatprep.subr.mxu0 0.0
    %2757 = vmatpush1.msra.mxu0 0.0
    %2758 = vmatprep.subr.mxu0 0.0
    %2759 = vmatpush1.msra.mxu0 0.0
    %2760 = vmatprep.subr.mxu0 0.0
    %2761 = vmatpush1.msra.mxu0 0.0
    %2762 = vmatprep.subr.mxu0 0.0
    %2763 = vmatpush1.msra.mxu0 0.0
    %2764 = vmatprep.subr.mxu0 0.0
    %2765 = vmatpush1.msra.mxu0 0.0
    %2766 = vmatprep.subr.mxu0 0.0
    %2767 = vmatpush1.msra.mxu0 0.0
    %2768 = vmatprep.subr.mxu0 0.0
    %2769 = vmatpush1.msra.mxu0 0.0
    %2770 = vmatprep.mubr.f32.mxu0 0.0
    %2771 = vmatmul.mubr.f32.gmra.mrb[0].mxu0 %v2479
    %v2772 = vpop.f32.mrb[0].mxu0
    %v2773 = vadd.f32 0.0, %v2772
    %v2774 = vpop.f32.mrb[0].mxu0
    %v2775 = vadd.f32 0.0, %v2774
    %2776 = vdwg.mxu0
    %v2777 = vadd.f32 %v2631, %v2702
    %v2778 = vadd.f32 %v2632, %v2704
    %v2779 = vadd.f32 %v2633, %v2773
    %v2780 = vadd.f32 %v2634, %v2775
    %v2781 = vxor.u32 %v2627, 2147483648
    %v2782 = vmul.f32 %v2781, 1.442695
    %v2783 = vpow.pop %v2782
    %v2784 = vadd.f32 %v2783, 1.0
    %v2785 = vrcp.pop %v2784
    %v2786 = vmul.f32 1.0, %v2785
    %v2787 = vxor.u32 %v2628, 2147483648
    %v2788 = vmul.f32 %v2787, 1.442695
    %v2789 = vpow.pop %v2788
    %v2790 = vadd.f32 %v2789, 1.0
    %v2791 = vrcp.pop %v2790
    %v2792 = vmul.f32 1.0, %v2791
    %v2793 = vtanh.pop %v2629
    %v2794 = vxor.u32 %v2630, 2147483648
    %v2795 = vmul.f32 %v2794, 1.442695
    %v2796 = vpow.pop %v2795
    %v2797 = vadd.f32 %v2796, 1.0
    %v2798 = vrcp.pop %v2797
    %v2799 = vmul.f32 1.0, %v2798
    %v2800 = vmul.f32 %v2792, %v2478
    %v2801 = vmul.f32 %v2786, %v2793
    %v2802 = vadd.f32 %v2800, %v2801
    %v2803 = vtanh.pop %v2802
    %v2804 = vmul.f32 %v2799, %v2803
    %v2805 = vxor.u32 %v2777, 2147483648
    %v2806 = vmul.f32 %v2805, 1.442695
    %v2807 = vpow.pop %v2806
    %v2808 = vadd.f32 %v2807, 1.0
    %v2809 = vrcp.pop %v2808
    %v2810 = vmul.f32 1.0, %v2809
    %v2811 = vxor.u32 %v2778, 2147483648
    %v2812 = vmul.f32 %v2811, 1.442695
    %v2813 = vpow.pop %v2812
    %v2814 = vadd.f32 %v2813, 1.0
    %v2815 = vrcp.pop %v2814
    %v2816 = vmul.f32 1.0, %v2815
    %v2817 = vtanh.pop %v2779
    %v2818 = vxor.u32 %v2780, 2147483648
    %v2819 = vmul.f32 %v2818, 1.442695
    %v2820 = vpow.pop %v2819
    %v2821 = vadd.f32 %v2820, 1.0
    %v2822 = vrcp.pop %v2821
    %v2823 = vmul.f32 1.0, %v2822
    %v2824 = vmul.f32 %v2816, %v2480
    %v2825 = vmul.f32 %v2810, %v2817
    %v2826 = vadd.f32 %v2824, %v2825
    %v2827 = vtanh.pop %v2826
    %v2828 = vmul.f32 %v2823, %v2827
    %v2829 = vsel %vm2471, %v2804, 0.0
    %2830 = vst [vmem:[%s2475] sm:$0xff] %v2829
    %v2831 = vsel %vm2461, %v2828, 0.0
    %2832 = vst [vmem:[%s2465 + $0x8] sm:$0xff] %v2831
    %v2833 = vsel %vm2471, %v2804, %v2477
    %v2834 = vsel %vm2471, %v2802, %v2478
    %v2835 = vsel %vm2461, %v2828, %v2479
    %v2836 = vsel %vm2461, %v2826, %v2480
    %v2837 = vld [vmem:[%s1876] sm:$0xff]
    %v2838 = vld [vmem:[%s1876 + $0x8] sm:$0xff]
    %v2839 = vld [vmem:[%s1876 + $0x10] sm:$0xff]
    %v2840 = vld [vmem:[%s1876 + $0x18] sm:$0xff]
    %2841 = vmatprep.subr.mxu0 %v835
    %2842 = vmatpush1.msra.mxu0 %v834
    %2843 = vmatprep.subr.mxu0 %v839
    %2844 = vmatpush1.msra.mxu0 %v838
    %2845 = vmatprep.subr.mxu0 %v843
    %2846 = vmatpush1.msra.mxu0 %v842
    %2847 = vmatprep.subr.mxu0 %v847
    %2848 = vmatpush1.msra.mxu0 %v846
    %2849 = vmatprep.subr.mxu0 %v851
    %2850 = vmatpush1.msra.mxu0 %v850
    %2851 = vmatprep.subr.mxu0 %v855
    %2852 = vmatpush1.msra.mxu0 %v854
    %2853 = vmatprep.subr.mxu0 %v859
    %2854 = vmatpush1.msra.mxu0 %v858
    %2855 = vmatprep.subr.mxu0 %v863
    %2856 = vmatpush1.msra.mxu0 %v862
    %2857 = vmatprep.subr.mxu0 %v867
    %2858 = vmatpush1.msra.mxu0 %v866
    %2859 = vmatprep.subr.mxu0 %v871
    %2860 = vmatpush1.msra.mxu0 %v870
    %2861 = vmatprep.subr.mxu0 %v875
    %2862 = vmatpush1.msra.mxu0 %v874
    %2863 = vmatprep.subr.mxu0 %v879
    %2864 = vmatpush1.msra.mxu0 %v878
    %2865 = vmatprep.subr.mxu0 %v883
    %2866 = vmatpush1.msra.mxu0 %v882
    %2867 = vmatprep.subr.mxu0 %v887
    %2868 = vmatpush1.msra.mxu0 %v886
    %2869 = vmatprep.subr.mxu0 %v891
    %2870 = vmatpush1.msra.mxu0 %v890
    %2871 = vmatprep.subr.mxu0 %v895
    %2872 = vmatpush1.msra.mxu0 %v894
    %2873 = vmatprep.subr.mxu0 0.0
    %2874 = vmatpush1.msra.mxu0 0.0
    %2875 = vmatprep.subr.mxu0 0.0
    %2876 = vmatpush1.msra.mxu0 0.0
    %2877 = vmatprep.subr.mxu0 0.0
    %2878 = vmatpush1.msra.mxu0 0.0
    %2879 = vmatprep.subr.mxu0 0.0
    %2880 = vmatpush1.msra.mxu0 0.0
    %2881 = vmatprep.subr.mxu0 0.0
    %2882 = vmatpush1.msra.mxu0 0.0
    %2883 = vmatprep.subr.mxu0 0.0
    %2884 = vmatpush1.msra.mxu0 0.0
    %2885 = vmatprep.subr.mxu0 0.0
    %2886 = vmatpush1.msra.mxu0 0.0
    %2887 = vmatprep.subr.mxu0 0.0
    %2888 = vmatpush1.msra.mxu0 0.0
    %2889 = vmatprep.subr.mxu0 0.0
    %2890 = vmatpush1.msra.mxu0 0.0
    %2891 = vmatprep.subr.mxu0 0.0
    %2892 = vmatpush1.msra.mxu0 0.0
    %2893 = vmatprep.subr.mxu0 0.0
    %2894 = vmatpush1.msra.mxu0 0.0
    %2895 = vmatprep.subr.mxu0 0.0
    %2896 = vmatpush1.msra.mxu0 0.0
    %2897 = vmatprep.subr.mxu0 0.0
    %2898 = vmatpush1.msra.mxu0 0.0
    %2899 = vmatprep.subr.mxu0 0.0
    %2900 = vmatpush1.msra.mxu0 0.0
    %2901 = vmatprep.subr.mxu0 0.0
    %2902 = vmatpush1.msra.mxu0 0.0
    %2903 = vmatprep.subr.mxu0 0.0
    %2904 = vmatpush1.msra.mxu0 0.0
    %2905 = vmatprep.mubr.f32.mxu0 0.0
    %2906 = vmatmul.mubr.f32.gmra.mrb[0].mxu0 %v2833
    %v2907 = vpop.f32.mrb[0].mxu0
    %v2908 = vadd.f32 0.0, %v2907
    %v2909 = vpop.f32.mrb[0].mxu0
    %v2910 = vadd.f32 0.0, %v2909
    %2911 = vdwg.mxu0
    %2912 = vmatprep.subr.mxu0 %v837
    %2913 = vmatpush1.msra.mxu0 %v836
    %2914 = vmatprep.subr.mxu0 %v841
    %2915 = vmatpush1.msra.mxu0 %v840
    %2916 = vmatprep.subr.mxu0 %v845
    %2917 = vmatpush1.msra.mxu0 %v844
    %2918 = vmatprep.subr.mxu0 %v849
    %2919 = vmatpush1.msra.mxu0 %v848
    %2920 = vmatprep.subr.mxu0 %v853
    %2921 = vmatpush1.msra.mxu0 %v852
    %2922 = vmatprep.subr.mxu0 %v857
    %2923 = vmatpush1.msra.mxu0 %v856
    %2924 = vmatprep.subr.mxu0 %v861
    %2925 = vmatpush1.msra.mxu0 %v860
    %2926 = vmatprep.subr.mxu0 %v865
    %2927 = vmatpush1.msra.mxu0 %v864
    %2928 = vmatprep.subr.mxu0 %v869
    %2929 = vmatpush1.msra.mxu0 %v868
    %2930 = vmatprep.subr.mxu0 %v873
    %2931 = vmatpush1.msra.mxu0 %v872
    %2932 = vmatprep.subr.mxu0 %v877
    %2933 = vmatpush1.msra.mxu0 %v876
    %2934 = vmatprep.subr.mxu0 %v881
    %2935 = vmatpush1.msra.mxu0 %v880
    %2936 = vmatprep.subr.mxu0 %v885
    %2937 = vmatpush1.msra.mxu0 %v884
    %2938 = vmatprep.subr.mxu0 %v889
    %2939 = vmatpush1.msra.mxu0 %v888
    %2940 = vmatprep.subr.mxu0 %v893
    %2941 = vmatpush1.msra.mxu0 %v892
    %2942 = vmatprep.subr.mxu0 %v897
    %2943 = vmatpush1.msra.mxu0 %v896
    %2944 = vmatprep.subr.mxu0 0.0
    %2945 = vmatpush1.msra.mxu0 0.0
    %2946 = vmatprep.subr.mxu0 0.0
    %2947 = vmatpush1.msra.mxu0 0.0
    %2948 = vmatprep.subr.mxu0 0.0
    %2949 = vmatpush1.msra.mxu0 0.0
    %2950 = vmatprep.subr.mxu0 0.0
    %2951 = vmatpush1.msra.mxu0 0.0
    %2952 = vmatprep.subr.mxu0 0.0
    %2953 = vmatpush1.msra.mxu0 0.0
    %2954 = vmatprep.subr.mxu0 0.0
    %2955 = vmatpush1.msra.mxu0 0.0
    %2956 = vmatprep.subr.mxu0 0.0
    %2957 = vmatpush1.msra.mxu0 0.0
    %2958 = vmatprep.subr.mxu0 0.0
    %2959 = vmatpush1.msra.mxu0 0.0
    %2960 = vmatprep.subr.mxu0 0.0
    %2961 = vmatpush1.msra.mxu0 0.0
    %2962 = vmatprep.subr.mxu0 0.0
    %2963 = vmatpush1.msra.mxu0 0.0
    %2964 = vmatprep.subr.mxu0 0.0
    %2965 = vmatpush1.msra.mxu0 0.0
    %2966 = vmatprep.subr.mxu0 0.0
    %2967 = vmatpush1.msra.mxu0 0.0
    %2968 = vmatprep.subr.mxu0 0.0
    %2969 = vmatpush1.msra.mxu0 0.0
    %2970 = vmatprep.subr.mxu0 0.0
    %2971 = vmatpush1.msra.mxu0 0.0
    %2972 = vmatprep.subr.mxu0 0.0
    %2973 = vmatpush1.msra.mxu0 0.0
    %2974 = vmatprep.subr.mxu0 0.0
    %2975 = vmatpush1.msra.mxu0 0.0
    %2976 = vmatprep.mubr.f32.mxu0 0.0
    %2977 = vmatmul.mubr.f32.gmra.mrb[0].mxu0 %v2833
    %v2978 = vpop.f32.mrb[0].mxu0
    %v2979 = vadd.f32 0.0, %v2978
    %v2980 = vpop.f32.mrb[0].mxu0
    %v2981 = vadd.f32 0.0, %v2980
    %2982 = vdwg.mxu0
    %v2983 = vadd.f32 %v2837, %v2908
    %v2984 = vadd.f32 %v2838, %v2910
    %v2985 = vadd.f32 %v2839, %v2979
    %v2986 = vadd.f32 %v2840, %v2981
    %v2987 = vld [vmem:[%s1723 + $0x20] sm:$0xff]
    %v2988 = vld [vmem:[%s1723 + $0x28] sm:$0xff]
    %v2989 = vld [vmem:[%s1723 + $0x30] sm:$0xff]
    %v2990 = vld [vmem:[%s1723 + $0x38] sm:$0xff]
    %2991 = vmatprep.subr.mxu0 %v899
    %2992 = vmatpush1.msra.mxu0 %v898
    %2993 = vmatprep.subr.mxu0 %v903
    %2994 = vmatpush1.msra.mxu0 %v902
    %2995 = vmatprep.subr.mxu0 %v907
    %2996 = vmatpush1.msra.mxu0 %v906
    %2997 = vmatprep.subr.mxu0 %v911
    %2998 = vmatpush1.msra.mxu0 %v910
    %2999 = vmatprep.subr.mxu0 %v915
    %3000 = vmatpush1.msra.mxu0 %v914
    %3001 = vmatprep.subr.mxu0 %v919
    %3002 = vmatpush1.msra.mxu0 %v918
    %3003 = vmatprep.subr.mxu0 %v923
    %3004 = vmatpush1.msra.mxu0 %v922
    %3005 = vmatprep.subr.mxu0 %v927
    %3006 = vmatpush1.msra.mxu0 %v926
    %3007 = vmatprep.subr.mxu0 %v931
    %3008 = vmatpush1.msra.mxu0 %v930
    %3009 = vmatprep.subr.mxu0 %v935
    %3010 = vmatpush1.msra.mxu0 %v934
    %3011 = vmatprep.subr.mxu0 %v939
    %3012 = vmatpush1.msra.mxu0 %v938
    %3013 = vmatprep.subr.mxu0 %v943
    %3014 = vmatpush1.msra.mxu0 %v942
    %3015 = vmatprep.subr.mxu0 %v947
    %3016 = vmatpush1.msra.mxu0 %v946
    %3017 = vmatprep.subr.mxu0 %v951
    %3018 = vmatpush1.msra.mxu0 %v950
    %3019 = vmatprep.subr.mxu0 %v955
    %3020 = vmatpush1.msra.mxu0 %v954
    %3021 = vmatprep.subr.mxu0 %v959
    %3022 = vmatpush1.msra.mxu0 %v958
    %3023 = vmatprep.subr.mxu0 0.0
    %3024 = vmatpush1.msra.mxu0 0.0
    %3025 = vmatprep.subr.mxu0 0.0
    %3026 = vmatpush1.msra.mxu0 0.0
    %3027 = vmatprep.subr.mxu0 0.0
    %3028 = vmatpush1.msra.mxu0 0.0
    %3029 = vmatprep.subr.mxu0 0.0
    %3030 = vmatpush1.msra.mxu0 0.0
    %3031 = vmatprep.subr.mxu0 0.0
    %3032 = vmatpush1.msra.mxu0 0.0
    %3033 = vmatprep.subr.mxu0 0.0
    %3034 = vmatpush1.msra.mxu0 0.0
    %3035 = vmatprep.subr.mxu0 0.0
    %3036 = vmatpush1.msra.mxu0 0.0
    %3037 = vmatprep.subr.mxu0 0.0
    %3038 = vmatpush1.msra.mxu0 0.0
    %3039 = vmatprep.subr.mxu0 0.0
    %3040 = vmatpush1.msra.mxu0 0.0
    %3041 = vmatprep.subr.mxu0 0.0
    %3042 = vmatpush1.msra.mxu0 0.0
    %3043 = vmatprep.subr.mxu0 0.0
    %3044 = vmatpush1.msra.mxu0 0.0
    %3045 = vmatprep.subr.mxu0 0.0
    %3046 = vmatpush1.msra.mxu0 0.0
    %3047 = vmatprep.subr.mxu0 0.0
    %3048 = vmatpush1.msra.mxu0 0.0
    %3049 = vmatprep.subr.mxu0 0.0
    %3050 = vmatpush1.msra.mxu0 0.0
    %3051 = vmatprep.subr.mxu0 0.0
    %3052 = vmatpush1.msra.mxu0 0.0
    %3053 = vmatprep.subr.mxu0 0.0
    %3054 = vmatpush1.msra.mxu0 0.0
    %3055 = vmatprep.mubr.f32.mxu0 0.0
    %3056 = vmatmul.mubr.f32.gmra.mrb[0].mxu0 %v2835
    %v3057 = vpop.f32.mrb[0].mxu0
    %v3058 = vadd.f32 0.0, %v3057
    %v3059 = vpop.f32.mrb[0].mxu0
    %v3060 = vadd.f32 0.0, %v3059
    %3061 = vdwg.mxu0
    %3062 = vmatprep.subr.mxu0 %v901
    %3063 = vmatpush1.msra.mxu0 %v900
    %3064 = vmatprep.subr.mxu0 %v905
    %3065 = vmatpush1.msra.mxu0 %v904
    %3066 = vmatprep.subr.mxu0 %v909
    %3067 = vmatpush1.msra.mxu0 %v908
    %3068 = vmatprep.subr.mxu0 %v913
    %3069 = vmatpush1.msra.mxu0 %v912
    %3070 = vmatprep.subr.mxu0 %v917
    %3071 = vmatpush1.msra.mxu0 %v916
    %3072 = vmatprep.subr.mxu0 %v921
    %3073 = vmatpush1.msra.mxu0 %v920
    %3074 = vmatprep.subr.mxu0 %v925
    %3075 = vmatpush1.msra.mxu0 %v924
    %3076 = vmatprep.subr.mxu0 %v929
    %3077 = vmatpush1.msra.mxu0 %v928
    %3078 = vmatprep.subr.mxu0 %v933
    %3079 = vmatpush1.msra.mxu0 %v932
    %3080 = vmatprep.subr.mxu0 %v937
    %3081 = vmatpush1.msra.mxu0 %v936
    %3082 = vmatprep.subr.mxu0 %v941
    %3083 = vmatpush1.msra.mxu0 %v940
    %3084 = vmatprep.subr.mxu0 %v945
    %3085 = vmatpush1.msra.mxu0 %v944
    %3086 = vmatprep.subr.mxu0 %v949
    %3087 = vmatpush1.msra.mxu0 %v948
    %3088 = vmatprep.subr.mxu0 %v953
    %3089 = vmatpush1.msra.mxu0 %v952
    %3090 = vmatprep.subr.mxu0 %v957
    %3091 = vmatpush1.msra.mxu0 %v956
    %3092 = vmatprep.subr.mxu0 %v961
    %3093 = vmatpush1.msra.mxu0 %v960
    %3094 = vmatprep.subr.mxu0 0.0
    %3095 = vmatpush1.msra.mxu0 0.0
    %3096 = vmatprep.subr.mxu0 0.0
    %3097 = vmatpush1.msra.mxu0 0.0
    %3098 = vmatprep.subr.mxu0 0.0
    %3099 = vmatpush1.msra.mxu0 0.0
    %3100 = vmatprep.subr.mxu0 0.0
    %3101 = vmatpush1.msra.mxu0 0.0
    %3102 = vmatprep.subr.mxu0 0.0
    %3103 = vmatpush1.msra.mxu0 0.0
    %3104 = vmatprep.subr.mxu0 0.0
    %3105 = vmatpush1.msra.mxu0 0.0
    %3106 = vmatprep.subr.mxu0 0.0
    %3107 = vmatpush1.msra.mxu0 0.0
    %3108 = vmatprep.subr.mxu0 0.0
    %3109 = vmatpush1.msra.mxu0 0.0
    %3110 = vmatprep.subr.mxu0 0.0
    %3111 = vmatpush1.msra.mxu0 0.0
    %3112 = vmatprep.subr.mxu0 0.0
    %3113 = vmatpush1.msra.mxu0 0.0
    %3114 = vmatprep.subr.mxu0 0.0
    %3115 = vmatpush1.msra.mxu0 0.0
    %3116 = vmatprep.subr.mxu0 0.0
    %3117 = vmatpush1.msra.mxu0 0.0
    %3118 = vmatprep.subr.mxu0 0.0
    %3119 = vmatpush1.msra.mxu0 0.0
    %3120 = vmatprep.subr.mxu0 0.0
    %3121 = vmatpush1.msra.mxu0 0.0
    %3122 = vmatprep.subr.mxu0 0.0
    %3123 = vmatpush1.msra.mxu0 0.0
    %3124 = vmatprep.subr.mxu0 0.0
    %3125 = vmatpush1.msra.mxu0 0.0
    %3126 = vmatprep.mubr.f32.mxu0 0.0
    %3127 = vmatmul.mubr.f32.gmra.mrb[0].mxu0 %v2835
    %v3128 = vpop.f32.mrb[0].mxu0
    %v3129 = vadd.f32 0.0, %v3128
    %v3130 = vpop.f32.mrb[0].mxu0
    %v3131 = vadd.f32 0.0, %v3130
    %3132 = vdwg.mxu0
    %v3133 = vadd.f32 %v2987, %v3058
    %v3134 = vadd.f32 %v2988, %v3060
    %v3135 = vadd.f32 %v2989, %v3129
    %v3136 = vadd.f32 %v2990, %v3131
    %v3137 = vxor.u32 %v2983, 2147483648
    %v3138 = vmul.f32 %v3137, 1.442695
    %v3139 = vpow.pop %v3138
    %v3140 = vadd.f32 %v3139, 1.0
    %v3141 = vrcp.pop %v3140
    %v3142 = vmul.f32 1.0, %v3141
    %v3143 = vxor.u32 %v2984, 2147483648
    %v3144 = vmul.f32 %v3143, 1.442695
    %v3145 = vpow.pop %v3144
    %v3146 = vadd.f32 %v3145, 1.0
    %v3147 = vrcp.pop %v3146
    %v3148 = vmul.f32 1.0, %v3147
    %v3149 = vtanh.pop %v2985
    %v3150 = vxor.u32 %v2986, 2147483648
    %v3151 = vmul.f32 %v3150, 1.442695
    %v3152 = vpow.pop %v3151
    %v3153 = vadd.f32 %v3152, 1.0
    %v3154 = vrcp.pop %v3153
    %v3155 = vmul.f32 1.0, %v3154
    %v3156 = vmul.f32 %v3148, %v2834
    %v3157 = vmul.f32 %v3142, %v3149
    %v3158 = vadd.f32 %v3156, %v3157
    %v3159 = vtanh.pop %v3158
    %v3160 = vmul.f32 %v3155, %v3159
    %v3161 = vxor.u32 %v3133, 2147483648
    %v3162 = vmul.f32 %v3161, 1.442695
    %v3163 = vpow.pop %v3162
    %v3164 = vadd.f32 %v3163, 1.0
    %v3165 = vrcp.pop %v3164
    %v3166 = vmul.f32 1.0, %v3165
    %v3167 = vxor.u32 %v3134, 2147483648
    %v3168 = vmul.f32 %v3167, 1.442695
    %v3169 = vpow.pop %v3168
    %v3170 = vadd.f32 %v3169, 1.0
    %v3171 = vrcp.pop %v3170
    %v3172 = vmul.f32 1.0, %v3171
    %v3173 = vtanh.pop %v3135
    %v3174 = vxor.u32 %v3136, 2147483648
    %v3175 = vmul.f32 %v3174, 1.442695
    %v3176 = vpow.pop %v3175
    %v3177 = vadd.f32 %v3176, 1.0
    %v3178 = vrcp.pop %v3177
    %v3179 = vmul.f32 1.0, %v3178
    %v3180 = vmul.f32 %v3172, %v2836
    %v3181 = vmul.f32 %v3166, %v3173
    %v3182 = vadd.f32 %v3180, %v3181
    %v3183 = vtanh.pop %v3182
    %v3184 = vmul.f32 %v3179, %v3183
    %v3185 = vsel %vm2091, %v3160, 0.0
    %3186 = vst [vmem:[%s2095] sm:$0xff] %v3185
    %v3187 = vsel %vm2081, %v3184, 0.0
    %3188 = vst [vmem:[%s2085 + $0x8] sm:$0xff] %v3187
    %v3189 = vsel %vm2091, %v3160, %v2833
    %v3190 = vsel %vm2091, %v3158, %v2834
    %v3191 = vsel %vm2081, %v3184, %v2835
    %v3192 = vsel %vm2081, %v3182, %v2836
    %v3193 = vld [vmem:[%s1496] sm:$0xff]
    %v3194 = vld [vmem:[%s1496 + $0x8] sm:$0xff]
    %v3195 = vld [vmem:[%s1496 + $0x10] sm:$0xff]
    %v3196 = vld [vmem:[%s1496 + $0x18] sm:$0xff]
    %3197 = vmatprep.subr.mxu0 %v835
    %3198 = vmatpush1.msra.mxu0 %v834
    %3199 = vmatprep.subr.mxu0 %v839
    %3200 = vmatpush1.msra.mxu0 %v838
    %3201 = vmatprep.subr.mxu0 %v843
    %3202 = vmatpush1.msra.mxu0 %v842
    %3203 = vmatprep.subr.mxu0 %v847
    %3204 = vmatpush1.msra.mxu0 %v846
    %3205 = vmatprep.subr.mxu0 %v851
    %3206 = vmatpush1.msra.mxu0 %v850
    %3207 = vmatprep.subr.mxu0 %v855
    %3208 = vmatpush1.msra.mxu0 %v854
    %3209 = vmatprep.subr.mxu0 %v859
    %3210 = vmatpush1.msra.mxu0 %v858
    %3211 = vmatprep.subr.mxu0 %v863
    %3212 = vmatpush1.msra.mxu0 %v862
    %3213 = vmatprep.subr.mxu0 %v867
    %3214 = vmatpush1.msra.mxu0 %v866
    %3215 = vmatprep.subr.mxu0 %v871
    %3216 = vmatpush1.msra.mxu0 %v870
    %3217 = vmatprep.subr.mxu0 %v875
    %3218 = vmatpush1.msra.mxu0 %v874
    %3219 = vmatprep.subr.mxu0 %v879
    %3220 = vmatpush1.msra.mxu0 %v878
    %3221 = vmatprep.subr.mxu0 %v883
    %3222 = vmatpush1.msra.mxu0 %v882
    %3223 = vmatprep.subr.mxu0 %v887
    %3224 = vmatpush1.msra.mxu0 %v886
    %3225 = vmatprep.subr.mxu0 %v891
    %3226 = vmatpush1.msra.mxu0 %v890
    %3227 = vmatprep.subr.mxu0 %v895
    %3228 = vmatpush1.msra.mxu0 %v894
    %3229 = vmatprep.subr.mxu0 0.0
    %3230 = vmatpush1.msra.mxu0 0.0
    %3231 = vmatprep.subr.mxu0 0.0
    %3232 = vmatpush1.msra.mxu0 0.0
    %3233 = vmatprep.subr.mxu0 0.0
    %3234 = vmatpush1.msra.mxu0 0.0
    %3235 = vmatprep.subr.mxu0 0.0
    %3236 = vmatpush1.msra.mxu0 0.0
    %3237 = vmatprep.subr.mxu0 0.0
    %3238 = vmatpush1.msra.mxu0 0.0
    %3239 = vmatprep.subr.mxu0 0.0
    %3240 = vmatpush1.msra.mxu0 0.0
    %3241 = vmatprep.subr.mxu0 0.0
    %3242 = vmatpush1.msra.mxu0 0.0
    %3243 = vmatprep.subr.mxu0 0.0
    %3244 = vmatpush1.msra.mxu0 0.0
    %3245 = vmatprep.subr.mxu0 0.0
    %3246 = vmatpush1.msra.mxu0 0.0
    %3247 = vmatprep.subr.mxu0 0.0
    %3248 = vmatpush1.msra.mxu0 0.0
    %3249 = vmatprep.subr.mxu0 0.0
    %3250 = vmatpush1.msra.mxu0 0.0
    %3251 = vmatprep.subr.mxu0 0.0
    %3252 = vmatpush1.msra.mxu0 0.0
    %3253 = vmatprep.subr.mxu0 0.0
    %3254 = vmatpush1.msra.mxu0 0.0
    %3255 = vmatprep.subr.mxu0 0.0
    %3256 = vmatpush1.msra.mxu0 0.0
    %3257 = vmatprep.subr.mxu0 0.0
    %3258 = vmatpush1.msra.mxu0 0.0
    %3259 = vmatprep.subr.mxu0 0.0
    %3260 = vmatpush1.msra.mxu0 0.0
    %3261 = vmatprep.mubr.f32.mxu0 0.0
    %3262 = vmatmul.mubr.f32.gmra.mrb[0].mxu0 %v3189
    %v3263 = vpop.f32.mrb[0].mxu0
    %v3264 = vadd.f32 0.0, %v3263
    %v3265 = vpop.f32.mrb[0].mxu0
    %v3266 = vadd.f32 0.0, %v3265
    %3267 = vdwg.mxu0
    %3268 = vmatprep.subr.mxu0 %v837
    %3269 = vmatpush1.msra.mxu0 %v836
    %3270 = vmatprep.subr.mxu0 %v841
    %3271 = vmatpush1.msra.mxu0 %v840
    %3272 = vmatprep.subr.mxu0 %v845
    %3273 = vmatpush1.msra.mxu0 %v844
    %3274 = vmatprep.subr.mxu0 %v849
    %3275 = vmatpush1.msra.mxu0 %v848
    %3276 = vmatprep.subr.mxu0 %v853
    %3277 = vmatpush1.msra.mxu0 %v852
    %3278 = vmatprep.subr.mxu0 %v857
    %3279 = vmatpush1.msra.mxu0 %v856
    %3280 = vmatprep.subr.mxu0 %v861
    %3281 = vmatpush1.msra.mxu0 %v860
    %3282 = vmatprep.subr.mxu0 %v865
    %3283 = vmatpush1.msra.mxu0 %v864
    %3284 = vmatprep.subr.mxu0 %v869
    %3285 = vmatpush1.msra.mxu0 %v868
    %3286 = vmatprep.subr.mxu0 %v873
    %3287 = vmatpush1.msra.mxu0 %v872
    %3288 = vmatprep.subr.mxu0 %v877
    %3289 = vmatpush1.msra.mxu0 %v876
    %3290 = vmatprep.subr.mxu0 %v881
    %3291 = vmatpush1.msra.mxu0 %v880
    %3292 = vmatprep.subr.mxu0 %v885
    %3293 = vmatpush1.msra.mxu0 %v884
    %3294 = vmatprep.subr.mxu0 %v889
    %3295 = vmatpush1.msra.mxu0 %v888
    %3296 = vmatprep.subr.mxu0 %v893
    %3297 = vmatpush1.msra.mxu0 %v892
    %3298 = vmatprep.subr.mxu0 %v897
    %3299 = vmatpush1.msra.mxu0 %v896
    %3300 = vmatprep.subr.mxu0 0.0
    %3301 = vmatpush1.msra.mxu0 0.0
    %3302 = vmatprep.subr.mxu0 0.0
    %3303 = vmatpush1.msra.mxu0 0.0
    %3304 = vmatprep.subr.mxu0 0.0
    %3305 = vmatpush1.msra.mxu0 0.0
    %3306 = vmatprep.subr.mxu0 0.0
    %3307 = vmatpush1.msra.mxu0 0.0
    %3308 = vmatprep.subr.mxu0 0.0
    %3309 = vmatpush1.msra.mxu0 0.0
    %3310 = vmatprep.subr.mxu0 0.0
    %3311 = vmatpush1.msra.mxu0 0.0
    %3312 = vmatprep.subr.mxu0 0.0
    %3313 = vmatpush1.msra.mxu0 0.0
    %3314 = vmatprep.subr.mxu0 0.0
    %3315 = vmatpush1.msra.mxu0 0.0
    %3316 = vmatprep.subr.mxu0 0.0
    %3317 = vmatpush1.msra.mxu0 0.0
    %3318 = vmatprep.subr.mxu0 0.0
    %3319 = vmatpush1.msra.mxu0 0.0
    %3320 = vmatprep.subr.mxu0 0.0
    %3321 = vmatpush1.msra.mxu0 0.0
    %3322 = vmatprep.subr.mxu0 0.0
    %3323 = vmatpush1.msra.mxu0 0.0
    %3324 = vmatprep.subr.mxu0 0.0
    %3325 = vmatpush1.msra.mxu0 0.0
    %3326 = vmatprep.subr.mxu0 0.0
    %3327 = vmatpush1.msra.mxu0 0.0
    %3328 = vmatprep.subr.mxu0 0.0
    %3329 = vmatpush1.msra.mxu0 0.0
    %3330 = vmatprep.subr.mxu0 0.0
    %3331 = vmatpush1.msra.mxu0 0.0
    %3332 = vmatprep.mubr.f32.mxu0 0.0
    %3333 = vmatmul.mubr.f32.gmra.mrb[0].mxu0 %v3189
    %v3334 = vpop.f32.mrb[0].mxu0
    %v3335 = vadd.f32 0.0, %v3334
    %v3336 = vpop.f32.mrb[0].mxu0
    %v3337 = vadd.f32 0.0, %v3336
    %3338 = vdwg.mxu0
    %v3339 = vadd.f32 %v3193, %v3264
    %v3340 = vadd.f32 %v3194, %v3266
    %v3341 = vadd.f32 %v3195, %v3335
    %v3342 = vadd.f32 %v3196, %v3337
    %v3343 = vld [vmem:[%s1343 + $0x20] sm:$0xff]
    %v3344 = vld [vmem:[%s1343 + $0x28] sm:$0xff]
    %v3345 = vld [vmem:[%s1343 + $0x30] sm:$0xff]
    %v3346 = vld [vmem:[%s1343 + $0x38] sm:$0xff]
    %3347 = vmatprep.subr.mxu0 %v899
    %3348 = vmatpush1.msra.mxu0 %v898
    %3349 = vmatprep.subr.mxu0 %v903
    %3350 = vmatpush1.msra.mxu0 %v902
    %3351 = vmatprep.subr.mxu0 %v907
    %3352 = vmatpush1.msra.mxu0 %v906
    %3353 = vmatprep.subr.mxu0 %v911
    %3354 = vmatpush1.msra.mxu0 %v910
    %3355 = vmatprep.subr.mxu0 %v915
    %3356 = vmatpush1.msra.mxu0 %v914
    %3357 = vmatprep.subr.mxu0 %v919
    %3358 = vmatpush1.msra.mxu0 %v918
    %3359 = vmatprep.subr.mxu0 %v923
    %3360 = vmatpush1.msra.mxu0 %v922
    %3361 = vmatprep.subr.mxu0 %v927
    %3362 = vmatpush1.msra.mxu0 %v926
    %3363 = vmatprep.subr.mxu0 %v931
    %3364 = vmatpush1.msra.mxu0 %v930
    %3365 = vmatprep.subr.mxu0 %v935
    %3366 = vmatpush1.msra.mxu0 %v934
    %3367 = vmatprep.subr.mxu0 %v939
    %3368 = vmatpush1.msra.mxu0 %v938
    %3369 = vmatprep.subr.mxu0 %v943
    %3370 = vmatpush1.msra.mxu0 %v942
    %3371 = vmatprep.subr.mxu0 %v947
    %3372 = vmatpush1.msra.mxu0 %v946
    %3373 = vmatprep.subr.mxu0 %v951
    %3374 = vmatpush1.msra.mxu0 %v950
    %3375 = vmatprep.subr.mxu0 %v955
    %3376 = vmatpush1.msra.mxu0 %v954
    %3377 = vmatprep.subr.mxu0 %v959
    %3378 = vmatpush1.msra.mxu0 %v958
    %3379 = vmatprep.subr.mxu0 0.0
    %3380 = vmatpush1.msra.mxu0 0.0
    %3381 = vmatprep.subr.mxu0 0.0
    %3382 = vmatpush1.msra.mxu0 0.0
    %3383 = vmatprep.subr.mxu0 0.0
    %3384 = vmatpush1.msra.mxu0 0.0
    %3385 = vmatprep.subr.mxu0 0.0
    %3386 = vmatpush1.msra.mxu0 0.0
    %3387 = vmatprep.subr.mxu0 0.0
    %3388 = vmatpush1.msra.mxu0 0.0
    %3389 = vmatprep.subr.mxu0 0.0
    %3390 = vmatpush1.msra.mxu0 0.0
    %3391 = vmatprep.subr.mxu0 0.0
    %3392 = vmatpush1.msra.mxu0 0.0
    %3393 = vmatprep.subr.mxu0 0.0
    %3394 = vmatpush1.msra.mxu0 0.0
    %3395 = vmatprep.subr.mxu0 0.0
    %3396 = vmatpush1.msra.mxu0 0.0
    %3397 = vmatprep.subr.mxu0 0.0
    %3398 = vmatpush1.msra.mxu0 0.0
    %3399 = vmatprep.subr.mxu0 0.0
    %3400 = vmatpush1.msra.mxu0 0.0
    %3401 = vmatprep.subr.mxu0 0.0
    %3402 = vmatpush1.msra.mxu0 0.0
    %3403 = vmatprep.subr.mxu0 0.0
    %3404 = vmatpush1.msra.mxu0 0.0
    %3405 = vmatprep.subr.mxu0 0.0
    %3406 = vmatpush1.msra.mxu0 0.0
    %3407 = vmatprep.subr.mxu0 0.0
    %3408 = vmatpush1.msra.mxu0 0.0
    %3409 = vmatprep.subr.mxu0 0.0
    %3410 = vmatpush1.msra.mxu0 0.0
    %3411 = vmatprep.mubr.f32.mxu0 0.0
    %3412 = vmatmul.mubr.f32.gmra.mrb[0].mxu0 %v3191
    %v3413 = vpop.f32.mrb[0].mxu0
    %v3414 = vadd.f32 0.0, %v3413
    %v3415 = vpop.f32.mrb[0].mxu0
    %v3416 = vadd.f32 0.0, %v3415
    %3417 = vdwg.mxu0
    %3418 = vmatprep.subr.mxu0 %v901
    %3419 = vmatpush1.msra.mxu0 %v900
    %3420 = vmatprep.subr.mxu0 %v905
    %3421 = vmatpush1.msra.mxu0 %v904
    %3422 = vmatprep.subr.mxu0 %v909
    %3423 = vmatpush1.msra.mxu0 %v908
    %3424 = vmatprep.subr.mxu0 %v913
    %3425 = vmatpush1.msra.mxu0 %v912
    %3426 = vmatprep.subr.mxu0 %v917
    %3427 = vmatpush1.msra.mxu0 %v916
    %3428 = vmatprep.subr.mxu0 %v921
    %3429 = vmatpush1.msra.mxu0 %v920
    %3430 = vmatprep.subr.mxu0 %v925
    %3431 = vmatpush1.msra.mxu0 %v924
    %3432 = vmatprep.subr.mxu0 %v929
    %3433 = vmatpush1.msra.mxu0 %v928
    %3434 = vmatprep.subr.mxu0 %v933
    %3435 = vmatpush1.msra.mxu0 %v932
    %3436 = vmatprep.subr.mxu0 %v937
    %3437 = vmatpush1.msra.mxu0 %v936
    %3438 = vmatprep.subr.mxu0 %v941
    %3439 = vmatpush1.msra.mxu0 %v940
    %3440 = vmatprep.subr.mxu0 %v945
    %3441 = vmatpush1.msra.mxu0 %v944
    %3442 = vmatprep.subr.mxu0 %v949
    %3443 = vmatpush1.msra.mxu0 %v948
    %3444 = vmatprep.subr.mxu0 %v953
    %3445 = vmatpush1.msra.mxu0 %v952
    %3446 = vmatprep.subr.mxu0 %v957
    %3447 = vmatpush1.msra.mxu0 %v956
    %3448 = vmatprep.subr.mxu0 %v961
    %3449 = vmatpush1.msra.mxu0 %v960
    %3450 = vmatprep.subr.mxu0 0.0
    %3451 = vmatpush1.msra.mxu0 0.0
    %3452 = vmatprep.subr.mxu0 0.0
    %3453 = vmatpush1.msra.mxu0 0.0
    %3454 = vmatprep.subr.mxu0 0.0
    %3455 = vmatpush1.msra.mxu0 0.0
    %3456 = vmatprep.subr.mxu0 0.0
    %3457 = vmatpush1.msra.mxu0 0.0
    %3458 = vmatprep.subr.mxu0 0.0
    %3459 = vmatpush1.msra.mxu0 0.0
    %3460 = vmatprep.subr.mxu0 0.0
    %3461 = vmatpush1.msra.mxu0 0.0
    %3462 = vmatprep.subr.mxu0 0.0
    %3463 = vmatpush1.msra.mxu0 0.0
    %3464 = vmatprep.subr.mxu0 0.0
    %3465 = vmatpush1.msra.mxu0 0.0
    %3466 = vmatprep.subr.mxu0 0.0
    %3467 = vmatpush1.msra.mxu0 0.0
    %3468 = vmatprep.subr.mxu0 0.0
    %3469 = vmatpush1.msra.mxu0 0.0
    %3470 = vmatprep.subr.mxu0 0.0
    %3471 = vmatpush1.msra.mxu0 0.0
    %3472 = vmatprep.subr.mxu0 0.0
    %3473 = vmatpush1.msra.mxu0 0.0
    %3474 = vmatprep.subr.mxu0 0.0
    %3475 = vmatpush1.msra.mxu0 0.0
    %3476 = vmatprep.subr.mxu0 0.0
    %3477 = vmatpush1.msra.mxu0 0.0
    %3478 = vmatprep.subr.mxu0 0.0
    %3479 = vmatpush1.msra.mxu0 0.0
    %3480 = vmatprep.subr.mxu0 0.0
    %3481 = vmatpush1.msra.mxu0 0.0
    %3482 = vmatprep.mubr.f32.mxu0 0.0
    %3483 = vmatmul.mubr.f32.gmra.mrb[0].mxu0 %v3191
    %v3484 = vpop.f32.mrb[0].mxu0
    %v3485 = vadd.f32 0.0, %v3484
    %v3486 = vpop.f32.mrb[0].mxu0
    %v3487 = vadd.f32 0.0, %v3486
    %3488 = vdwg.mxu0
    %v3489 = vadd.f32 %v3343, %v3414
    %v3490 = vadd.f32 %v3344, %v3416
    %v3491 = vadd.f32 %v3345, %v3485
    %v3492 = vadd.f32 %v3346, %v3487
    %v3493 = vxor.u32 %v3339, 2147483648
    %v3494 = vmul.f32 %v3493, 1.442695
    %v3495 = vpow.pop %v3494
    %v3496 = vadd.f32 %v3495, 1.0
    %v3497 = vrcp.pop %v3496
    %v3498 = vmul.f32 1.0, %v3497
    %v3499 = vxor.u32 %v3340, 2147483648
    %v3500 = vmul.f32 %v3499, 1.442695
    %v3501 = vpow.pop %v3500
    %v3502 = vadd.f32 %v3501, 1.0
    %v3503 = vrcp.pop %v3502
    %v3504 = vmul.f32 1.0, %v3503
    %v3505 = vtanh.pop %v3341
    %v3506 = vxor.u32 %v3342, 2147483648
    %v3507 = vmul.f32 %v3506, 1.442695
    %v3508 = vpow.pop %v3507
    %v3509 = vadd.f32 %v3508, 1.0
    %v3510 = vrcp.pop %v3509
    %v3511 = vmul.f32 1.0, %v3510
    %v3512 = vmul.f32 %v3504, %v3190
    %v3513 = vmul.f32 %v3498, %v3505
    %v3514 = vadd.f32 %v3512, %v3513
    %v3515 = vtanh.pop %v3514
    %v3516 = vmul.f32 %v3511, %v3515
    %v3517 = vxor.u32 %v3489, 2147483648
    %v3518 = vmul.f32 %v3517, 1.442695
    %v3519 = vpow.pop %v3518
    %v3520 = vadd.f32 %v3519, 1.0
    %v3521 = vrcp.pop %v3520
    %v3522 = vmul.f32 1.0, %v3521
    %v3523 = vxor.u32 %v3490, 2147483648
    %v3524 = vmul.f32 %v3523, 1.442695
    %v3525 = vpow.pop %v3524
    %v3526 = vadd.f32 %v3525, 1.0
    %v3527 = vrcp.pop %v3526
    %v3528 = vmul.f32 1.0, %v3527
    %v3529 = vtanh.pop %v3491
    %v3530 = vxor.u32 %v3492, 2147483648
    %v3531 = vmul.f32 %v3530, 1.442695
    %v3532 = vpow.pop %v3531
    %v3533 = vadd.f32 %v3532, 1.0
    %v3534 = vrcp.pop %v3533
    %v3535 = vmul.f32 1.0, %v3534
    %v3536 = vmul.f32 %v3528, %v3192
    %v3537 = vmul.f32 %v3522, %v3529
    %v3538 = vadd.f32 %v3536, %v3537
    %v3539 = vtanh.pop %v3538
    %v3540 = vmul.f32 %v3535, %v3539
    %v3541 = vsel %vm1711, %v3516, 0.0
    %3542 = vst [vmem:[%s1715] sm:$0xff] %v3541
    %v3543 = vsel %vm1701, %v3540, 0.0
    %3544 = vst [vmem:[%s1705 + $0x8] sm:$0xff] %v3543
    %v3545 = vsel %vm1711, %v3516, %v3189
    %v3546 = vsel %vm1711, %v3514, %v3190
    %v3547 = vsel %vm1701, %v3540, %v3191
    %v3548 = vsel %vm1701, %v3538, %v3192
    %v3549 = vld [vmem:[%s1118] sm:$0xff]
    %v3550 = vld [vmem:[%s1118 + $0x8] sm:$0xff]
    %v3551 = vld [vmem:[%s1118 + $0x10] sm:$0xff]
    %v3552 = vld [vmem:[%s1118 + $0x18] sm:$0xff]
    %3553 = vmatprep.subr.mxu0 %v835
    %3554 = vmatpush1.msra.mxu0 %v834
    %3555 = vmatprep.subr.mxu0 %v839
    %3556 = vmatpush1.msra.mxu0 %v838
    %3557 = vmatprep.subr.mxu0 %v843
    %3558 = vmatpush1.msra.mxu0 %v842
    %3559 = vmatprep.subr.mxu0 %v847
    %3560 = vmatpush1.msra.mxu0 %v846
    %3561 = vmatprep.subr.mxu0 %v851
    %3562 = vmatpush1.msra.mxu0 %v850
    %3563 = vmatprep.subr.mxu0 %v855
    %3564 = vmatpush1.msra.mxu0 %v854
    %3565 = vmatprep.subr.mxu0 %v859
    %3566 = vmatpush1.msra.mxu0 %v858
    %3567 = vmatprep.subr.mxu0 %v863
    %3568 = vmatpush1.msra.mxu0 %v862
    %3569 = vmatprep.subr.mxu0 %v867
    %3570 = vmatpush1.msra.mxu0 %v866
    %3571 = vmatprep.subr.mxu0 %v871
    %3572 = vmatpush1.msra.mxu0 %v870
    %3573 = vmatprep.subr.mxu0 %v875
    %3574 = vmatpush1.msra.mxu0 %v874
    %3575 = vmatprep.subr.mxu0 %v879
    %3576 = vmatpush1.msra.mxu0 %v878
    %3577 = vmatprep.subr.mxu0 %v883
    %3578 = vmatpush1.msra.mxu0 %v882
    %3579 = vmatprep.subr.mxu0 %v887
    %3580 = vmatpush1.msra.mxu0 %v886
    %3581 = vmatprep.subr.mxu0 %v891
    %3582 = vmatpush1.msra.mxu0 %v890
    %3583 = vmatprep.subr.mxu0 %v895
    %3584 = vmatpush1.msra.mxu0 %v894
    %3585 = vmatprep.subr.mxu0 0.0
    %3586 = vmatpush1.msra.mxu0 0.0
    %3587 = vmatprep.subr.mxu0 0.0
    %3588 = vmatpush1.msra.mxu0 0.0
    %3589 = vmatprep.subr.mxu0 0.0
    %3590 = vmatpush1.msra.mxu0 0.0
    %3591 = vmatprep.subr.mxu0 0.0
    %3592 = vmatpush1.msra.mxu0 0.0
    %3593 = vmatprep.subr.mxu0 0.0
    %3594 = vmatpush1.msra.mxu0 0.0
    %3595 = vmatprep.subr.mxu0 0.0
    %3596 = vmatpush1.msra.mxu0 0.0
    %3597 = vmatprep.subr.mxu0 0.0
    %3598 = vmatpush1.msra.mxu0 0.0
    %3599 = vmatprep.subr.mxu0 0.0
    %3600 = vmatpush1.msra.mxu0 0.0
    %3601 = vmatprep.subr.mxu0 0.0
    %3602 = vmatpush1.msra.mxu0 0.0
    %3603 = vmatprep.subr.mxu0 0.0
    %3604 = vmatpush1.msra.mxu0 0.0
    %3605 = vmatprep.subr.mxu0 0.0
    %3606 = vmatpush1.msra.mxu0 0.0
    %3607 = vmatprep.subr.mxu0 0.0
    %3608 = vmatpush1.msra.mxu0 0.0
    %3609 = vmatprep.subr.mxu0 0.0
    %3610 = vmatpush1.msra.mxu0 0.0
    %3611 = vmatprep.subr.mxu0 0.0
    %3612 = vmatpush1.msra.mxu0 0.0
    %3613 = vmatprep.subr.mxu0 0.0
    %3614 = vmatpush1.msra.mxu0 0.0
    %3615 = vmatprep.subr.mxu0 0.0
    %3616 = vmatpush1.msra.mxu0 0.0
    %3617 = vmatprep.mubr.f32.mxu0 0.0
    %3618 = vmatmul.mubr.f32.gmra.mrb[0].mxu0 %v3545
    %v3619 = vpop.f32.mrb[0].mxu0
    %v3620 = vadd.f32 0.0, %v3619
    %v3621 = vpop.f32.mrb[0].mxu0
    %v3622 = vadd.f32 0.0, %v3621
    %3623 = vdwg.mxu0
    %3624 = vmatprep.subr.mxu0 %v837
    %3625 = vmatpush1.msra.mxu0 %v836
    %3626 = vmatprep.subr.mxu0 %v841
    %3627 = vmatpush1.msra.mxu0 %v840
    %3628 = vmatprep.subr.mxu0 %v845
    %3629 = vmatpush1.msra.mxu0 %v844
    %3630 = vmatprep.subr.mxu0 %v849
    %3631 = vmatpush1.msra.mxu0 %v848
    %3632 = vmatprep.subr.mxu0 %v853
    %3633 = vmatpush1.msra.mxu0 %v852
    %3634 = vmatprep.subr.mxu0 %v857
    %3635 = vmatpush1.msra.mxu0 %v856
    %3636 = vmatprep.subr.mxu0 %v861
    %3637 = vmatpush1.msra.mxu0 %v860
    %3638 = vmatprep.subr.mxu0 %v865
    %3639 = vmatpush1.msra.mxu0 %v864
    %3640 = vmatprep.subr.mxu0 %v869
    %3641 = vmatpush1.msra.mxu0 %v868
    %3642 = vmatprep.subr.mxu0 %v873
    %3643 = vmatpush1.msra.mxu0 %v872
    %3644 = vmatprep.subr.mxu0 %v877
    %3645 = vmatpush1.msra.mxu0 %v876
    %3646 = vmatprep.subr.mxu0 %v881
    %3647 = vmatpush1.msra.mxu0 %v880
    %3648 = vmatprep.subr.mxu0 %v885
    %3649 = vmatpush1.msra.mxu0 %v884
    %3650 = vmatprep.subr.mxu0 %v889
    %3651 = vmatpush1.msra.mxu0 %v888
    %3652 = vmatprep.subr.mxu0 %v893
    %3653 = vmatpush1.msra.mxu0 %v892
    %3654 = vmatprep.subr.mxu0 %v897
    %3655 = vmatpush1.msra.mxu0 %v896
    %3656 = vmatprep.subr.mxu0 0.0
    %3657 = vmatpush1.msra.mxu0 0.0
    %3658 = vmatprep.subr.mxu0 0.0
    %3659 = vmatpush1.msra.mxu0 0.0
    %3660 = vmatprep.subr.mxu0 0.0
    %3661 = vmatpush1.msra.mxu0 0.0
    %3662 = vmatprep.subr.mxu0 0.0
    %3663 = vmatpush1.msra.mxu0 0.0
    %3664 = vmatprep.subr.mxu0 0.0
    %3665 = vmatpush1.msra.mxu0 0.0
    %3666 = vmatprep.subr.mxu0 0.0
    %3667 = vmatpush1.msra.mxu0 0.0
    %3668 = vmatprep.subr.mxu0 0.0
    %3669 = vmatpush1.msra.mxu0 0.0
    %3670 = vmatprep.subr.mxu0 0.0
    %3671 = vmatpush1.msra.mxu0 0.0
    %3672 = vmatprep.subr.mxu0 0.0
    %3673 = vmatpush1.msra.mxu0 0.0
    %3674 = vmatprep.subr.mxu0 0.0
    %3675 = vmatpush1.msra.mxu0 0.0
    %3676 = vmatprep.subr.mxu0 0.0
    %3677 = vmatpush1.msra.mxu0 0.0
    %3678 = vmatprep.subr.mxu0 0.0
    %3679 = vmatpush1.msra.mxu0 0.0
    %3680 = vmatprep.subr.mxu0 0.0
    %3681 = vmatpush1.msra.mxu0 0.0
    %3682 = vmatprep.subr.mxu0 0.0
    %3683 = vmatpush1.msra.mxu0 0.0
    %3684 = vmatprep.subr.mxu0 0.0
    %3685 = vmatpush1.msra.mxu0 0.0
    %3686 = vmatprep.subr.mxu0 0.0
    %3687 = vmatpush1.msra.mxu0 0.0
    %3688 = vmatprep.mubr.f32.mxu0 0.0
    %3689 = vmatmul.mubr.f32.gmra.mrb[0].mxu0 %v3545
    %v3690 = vpop.f32.mrb[0].mxu0
    %v3691 = vadd.f32 0.0, %v3690
    %v3692 = vpop.f32.mrb[0].mxu0
    %v3693 = vadd.f32 0.0, %v3692
    %3694 = vdwg.mxu0
    %v3695 = vadd.f32 %v3549, %v3620
    %v3696 = vadd.f32 %v3550, %v3622
    %v3697 = vadd.f32 %v3551, %v3691
    %v3698 = vadd.f32 %v3552, %v3693
    %v3699 = vld [vmem:[%s965 + $0x20] sm:$0xff]
    %v3700 = vld [vmem:[%s965 + $0x28] sm:$0xff]
    %v3701 = vld [vmem:[%s965 + $0x30] sm:$0xff]
    %v3702 = vld [vmem:[%s965 + $0x38] sm:$0xff]
    %3703 = vmatprep.subr.mxu0 %v899
    %3704 = vmatpush1.msra.mxu0 %v898
    %3705 = vmatprep.subr.mxu0 %v903
    %3706 = vmatpush1.msra.mxu0 %v902
    %3707 = vmatprep.subr.mxu0 %v907
    %3708 = vmatpush1.msra.mxu0 %v906
    %3709 = vmatprep.subr.mxu0 %v911
    %3710 = vmatpush1.msra.mxu0 %v910
    %3711 = vmatprep.subr.mxu0 %v915
    %3712 = vmatpush1.msra.mxu0 %v914
    %3713 = vmatprep.subr.mxu0 %v919
    %3714 = vmatpush1.msra.mxu0 %v918
    %3715 = vmatprep.subr.mxu0 %v923
    %3716 = vmatpush1.msra.mxu0 %v922
    %3717 = vmatprep.subr.mxu0 %v927
    %3718 = vmatpush1.msra.mxu0 %v926
    %3719 = vmatprep.subr.mxu0 %v931
    %3720 = vmatpush1.msra.mxu0 %v930
    %3721 = vmatprep.subr.mxu0 %v935
    %3722 = vmatpush1.msra.mxu0 %v934
    %3723 = vmatprep.subr.mxu0 %v939
    %3724 = vmatpush1.msra.mxu0 %v938
    %3725 = vmatprep.subr.mxu0 %v943
    %3726 = vmatpush1.msra.mxu0 %v942
    %3727 = vmatprep.subr.mxu0 %v947
    %3728 = vmatpush1.msra.mxu0 %v946
    %3729 = vmatprep.subr.mxu0 %v951
    %3730 = vmatpush1.msra.mxu0 %v950
    %3731 = vmatprep.subr.mxu0 %v955
    %3732 = vmatpush1.msra.mxu0 %v954
    %3733 = vmatprep.subr.mxu0 %v959
    %3734 = vmatpush1.msra.mxu0 %v958
    %3735 = vmatprep.subr.mxu0 0.0
    %3736 = vmatpush1.msra.mxu0 0.0
    %3737 = vmatprep.subr.mxu0 0.0
    %3738 = vmatpush1.msra.mxu0 0.0
    %3739 = vmatprep.subr.mxu0 0.0
    %3740 = vmatpush1.msra.mxu0 0.0
    %3741 = vmatprep.subr.mxu0 0.0
    %3742 = vmatpush1.msra.mxu0 0.0
    %3743 = vmatprep.subr.mxu0 0.0
    %3744 = vmatpush1.msra.mxu0 0.0
    %3745 = vmatprep.subr.mxu0 0.0
    %3746 = vmatpush1.msra.mxu0 0.0
    %3747 = vmatprep.subr.mxu0 0.0
    %3748 = vmatpush1.msra.mxu0 0.0
    %3749 = vmatprep.subr.mxu0 0.0
    %3750 = vmatpush1.msra.mxu0 0.0
    %3751 = vmatprep.subr.mxu0 0.0
    %3752 = vmatpush1.msra.mxu0 0.0
    %3753 = vmatprep.subr.mxu0 0.0
    %3754 = vmatpush1.msra.mxu0 0.0
    %3755 = vmatprep.subr.mxu0 0.0
    %3756 = vmatpush1.msra.mxu0 0.0
    %3757 = vmatprep.subr.mxu0 0.0
    %3758 = vmatpush1.msra.mxu0 0.0
    %3759 = vmatprep.subr.mxu0 0.0
    %3760 = vmatpush1.msra.mxu0 0.0
    %3761 = vmatprep.subr.mxu0 0.0
    %3762 = vmatpush1.msra.mxu0 0.0
    %3763 = vmatprep.subr.mxu0 0.0
    %3764 = vmatpush1.msra.mxu0 0.0
    %3765 = vmatprep.subr.mxu0 0.0
    %3766 = vmatpush1.msra.mxu0 0.0
    %3767 = vmatprep.mubr.f32.mxu0 0.0
    %3768 = vmatmul.mubr.f32.gmra.mrb[0].mxu0 %v3547
    %v3769 = vpop.f32.mrb[0].mxu0
    %v3770 = vadd.f32 0.0, %v3769
    %v3771 = vpop.f32.mrb[0].mxu0
    %v3772 = vadd.f32 0.0, %v3771
    %3773 = vdwg.mxu0
    %3774 = vmatprep.subr.mxu0 %v901
    %3775 = vmatpush1.msra.mxu0 %v900
    %3776 = vmatprep.subr.mxu0 %v905
    %3777 = vmatpush1.msra.mxu0 %v904
    %3778 = vmatprep.subr.mxu0 %v909
    %3779 = vmatpush1.msra.mxu0 %v908
    %3780 = vmatprep.subr.mxu0 %v913
    %3781 = vmatpush1.msra.mxu0 %v912
    %3782 = vmatprep.subr.mxu0 %v917
    %3783 = vmatpush1.msra.mxu0 %v916
    %3784 = vmatprep.subr.mxu0 %v921
    %3785 = vmatpush1.msra.mxu0 %v920
    %3786 = vmatprep.subr.mxu0 %v925
    %3787 = vmatpush1.msra.mxu0 %v924
    %3788 = vmatprep.subr.mxu0 %v929
    %3789 = vmatpush1.msra.mxu0 %v928
    %3790 = vmatprep.subr.mxu0 %v933
    %3791 = vmatpush1.msra.mxu0 %v932
    %3792 = vmatprep.subr.mxu0 %v937
    %3793 = vmatpush1.msra.mxu0 %v936
    %3794 = vmatprep.subr.mxu0 %v941
    %3795 = vmatpush1.msra.mxu0 %v940
    %3796 = vmatprep.subr.mxu0 %v945
    %3797 = vmatpush1.msra.mxu0 %v944
    %3798 = vmatprep.subr.mxu0 %v949
    %3799 = vmatpush1.msra.mxu0 %v948
    %3800 = vmatprep.subr.mxu0 %v953
    %3801 = vmatpush1.msra.mxu0 %v952
    %3802 = vmatprep.subr.mxu0 %v957
    %3803 = vmatpush1.msra.mxu0 %v956
    %3804 = vmatprep.subr.mxu0 %v961
    %3805 = vmatpush1.msra.mxu0 %v960
    %3806 = vmatprep.subr.mxu0 0.0
    %3807 = vmatpush1.msra.mxu0 0.0
    %3808 = vmatprep.subr.mxu0 0.0
    %3809 = vmatpush1.msra.mxu0 0.0
    %3810 = vmatprep.subr.mxu0 0.0
    %3811 = vmatpush1.msra.mxu0 0.0
    %3812 = vmatprep.subr.mxu0 0.0
    %3813 = vmatpush1.msra.mxu0 0.0
    %3814 = vmatprep.subr.mxu0 0.0
    %3815 = vmatpush1.msra.mxu0 0.0
    %3816 = vmatprep.subr.mxu0 0.0
    %3817 = vmatpush1.msra.mxu0 0.0
    %3818 = vmatprep.subr.mxu0 0.0
    %3819 = vmatpush1.msra.mxu0 0.0
    %3820 = vmatprep.subr.mxu0 0.0
    %3821 = vmatpush1.msra.mxu0 0.0
    %3822 = vmatprep.subr.mxu0 0.0
    %3823 = vmatpush1.msra.mxu0 0.0
    %3824 = vmatprep.subr.mxu0 0.0
    %3825 = vmatpush1.msra.mxu0 0.0
    %3826 = vmatprep.subr.mxu0 0.0
    %3827 = vmatpush1.msra.mxu0 0.0
    %3828 = vmatprep.subr.mxu0 0.0
    %3829 = vmatpush1.msra.mxu0 0.0
    %3830 = vmatprep.subr.mxu0 0.0
    %3831 = vmatpush1.msra.mxu0 0.0
    %3832 = vmatprep.subr.mxu0 0.0
    %3833 = vmatpush1.msra.mxu0 0.0
    %3834 = vmatprep.subr.mxu0 0.0
    %3835 = vmatpush1.msra.mxu0 0.0
    %3836 = vmatprep.subr.mxu0 0.0
    %3837 = vmatpush1.msra.mxu0 0.0
    %3838 = vmatprep.mubr.f32.mxu0 0.0
    %3839 = vmatmul.mubr.f32.gmra.mrb[0].mxu0 %v3547
    %v3840 = vpop.f32.mrb[0].mxu0
    %v3841 = vadd.f32 0.0, %v3840
    %v3842 = vpop.f32.mrb[0].mxu0
    %v3843 = vadd.f32 0.0, %v3842
    %3844 = vdwg.mxu0
    %v3845 = vadd.f32 %v3699, %v3770
    %v3846 = vadd.f32 %v3700, %v3772
    %v3847 = vadd.f32 %v3701, %v3841
    %v3848 = vadd.f32 %v3702, %v3843
    %v3849 = vxor.u32 %v3695, 2147483648
    %v3850 = vmul.f32 %v3849, 1.442695
    %v3851 = vpow.pop %v3850
    %v3852 = vadd.f32 %v3851, 1.0
    %v3853 = vrcp.pop %v3852
    %v3854 = vmul.f32 1.0, %v3853
    %v3855 = vxor.u32 %v3696, 2147483648
    %v3856 = vmul.f32 %v3855, 1.442695
    %v3857 = vpow.pop %v3856
    %v3858 = vadd.f32 %v3857, 1.0
    %v3859 = vrcp.pop %v3858
    %v3860 = vmul.f32 1.0, %v3859
    %v3861 = vtanh.pop %v3697
    %v3862 = vxor.u32 %v3698, 2147483648
    %v3863 = vmul.f32 %v3862, 1.442695
    %v3864 = vpow.pop %v3863
    %v3865 = vadd.f32 %v3864, 1.0
    %v3866 = vrcp.pop %v3865
    %v3867 = vmul.f32 1.0, %v3866
    %v3868 = vmul.f32 %v3860, %v3546
    %v3869 = vmul.f32 %v3854, %v3861
    %v3870 = vadd.f32 %v3868, %v3869
    %v3871 = vtanh.pop %v3870
    %v3872 = vmul.f32 %v3867, %v3871
    %v3873 = vxor.u32 %v3845, 2147483648
    %v3874 = vmul.f32 %v3873, 1.442695
    %v3875 = vpow.pop %v3874
    %v3876 = vadd.f32 %v3875, 1.0
    %v3877 = vrcp.pop %v3876
    %v3878 = vmul.f32 1.0, %v3877
    %v3879 = vxor.u32 %v3846, 2147483648
    %v3880 = vmul.f32 %v3879, 1.442695
    %v3881 = vpow.pop %v3880
    %v3882 = vadd.f32 %v3881, 1.0
    %v3883 = vrcp.pop %v3882
    %v3884 = vmul.f32 1.0, %v3883
    %v3885 = vtanh.pop %v3847
    %v3886 = vxor.u32 %v3848, 2147483648
    %v3887 = vmul.f32 %v3886, 1.442695
    %v3888 = vpow.pop %v3887
    %v3889 = vadd.f32 %v3888, 1.0
    %v3890 = vrcp.pop %v3889
    %v3891 = vmul.f32 1.0, %v3890
    %v3892 = vmul.f32 %v3884, %v3548
    %v3893 = vmul.f32 %v3878, %v3885
    %v3894 = vadd.f32 %v3892, %v3893
    %v3895 = vtanh.pop %v3894
    %v3896 = vmul.f32 %v3891, %v3895
    %v3897 = vsel %vm1333, %v3872, 0.0
    %3898 = vst [vmem:[%s1337] sm:$0xff] %v3897
    %v3899 = vsel %vm1323, %v3896, 0.0
    %3900 = vst [vmem:[%s1327 + $0x8] sm:$0xff] %v3899
    %v3901 = vld [vmem:[#allocation3] sm:$0xff]
    %v3902 = vld [vmem:[#allocation3 + $0x8] sm:$0xff]
    %v3903 = vld [vmem:[#allocation3 + $0x10] sm:$0xff]
    %v3904 = vld [vmem:[#allocation3 + $0x18] sm:$0xff]
    %v3905 = vld [vmem:[#allocation3 + $0x20] sm:$0xff]
    %v3906 = vld [vmem:[#allocation3 + $0x28] sm:$0xff]
    %v3907 = vld [vmem:[#allocation3 + $0x30] sm:$0xff]
    %v3908 = vld [vmem:[#allocation3 + $0x38] sm:$0xff]
    %v3909 = vld [vmem:[#allocation3 + $0x40] sm:$0xff]
    %v3910 = vld [vmem:[#allocation3 + $0x48] sm:$0xff]
    %v3911 = vld [vmem:[#allocation3 + $0x50] sm:$0xff]
    %v3912 = vld [vmem:[#allocation3 + $0x58] sm:$0xff]
    %v3913 = vld [vmem:[#allocation3 + $0x60] sm:$0xff]
    %v3914 = vld [vmem:[#allocation3 + $0x68] sm:$0xff]
    %v3915 = vld [vmem:[#allocation3 + $0x70] sm:$0xff]
    %v3916 = vld [vmem:[#allocation3 + $0x78] sm:$0xff]
    %v3917 = vld [vmem:[#allocation6] sm:$0xff]
    %v3918 = vld [vmem:[#allocation6 + $0x8] sm:$0xff]
    %v3919 = vld [vmem:[#allocation6 + $0x10] sm:$0xff]
    %v3920 = vld [vmem:[#allocation6 + $0x18] sm:$0xff]
    %v3921 = vld [vmem:[#allocation6 + $0x20] sm:$0xff]
    %v3922 = vld [vmem:[#allocation6 + $0x28] sm:$0xff]
    %v3923 = vld [vmem:[#allocation6 + $0x30] sm:$0xff]
    %v3924 = vld [vmem:[#allocation6 + $0x38] sm:$0xff]
    %v3925 = vld [vmem:[#allocation6 + $0x40] sm:$0xff]
    %v3926 = vld [vmem:[#allocation6 + $0x48] sm:$0xff]
    %v3927 = vld [vmem:[#allocation6 + $0x50] sm:$0xff]
    %v3928 = vld [vmem:[#allocation6 + $0x58] sm:$0xff]
    %v3929 = vld [vmem:[#allocation6 + $0x60] sm:$0xff]
    %v3930 = vld [vmem:[#allocation6 + $0x68] sm:$0xff]
    %v3931 = vld [vmem:[#allocation6 + $0x70] sm:$0xff]
    %v3932 = vld [vmem:[#allocation6 + $0x78] sm:$0xff]
    %v3933 = vld [vmem:[#allocation6 + $0x80] sm:$0xff]
    %v3934 = vld [vmem:[#allocation6 + $0x88] sm:$0xff]
    %v3935 = vld [vmem:[#allocation6 + $0x90] sm:$0xff]
    %v3936 = vld [vmem:[#allocation6 + $0x98] sm:$0xff]
    %v3937 = vld [vmem:[#allocation6 + $0xa0] sm:$0xff]
    %v3938 = vld [vmem:[#allocation6 + $0xa8] sm:$0xff]
    %v3939 = vld [vmem:[#allocation6 + $0xb0] sm:$0xff]
    %v3940 = vld [vmem:[#allocation6 + $0xb8] sm:$0xff]
    %v3941 = vld [vmem:[#allocation6 + $0xc0] sm:$0xff]
    %v3942 = vld [vmem:[#allocation6 + $0xc8] sm:$0xff]
    %v3943 = vld [vmem:[#allocation6 + $0xd0] sm:$0xff]
    %v3944 = vld [vmem:[#allocation6 + $0xd8] sm:$0xff]
    %v3945 = vld [vmem:[#allocation6 + $0xe0] sm:$0xff]
    %v3946 = vld [vmem:[#allocation6 + $0xe8] sm:$0xff]
    %v3947 = vld [vmem:[#allocation6 + $0xf0] sm:$0xff]
    %v3948 = vld [vmem:[#allocation6 + $0xf8] sm:$0xff]
    %v3949 = vld [vmem:[%s9] sm:$0x1]
    %v3951 = vlaneseq
    %v3952 = vshrl.u32 %v3951, 7
    %v3953 = vsub.s32 0, %v3952
    %v3954 = vrot.slane %v3949, %v3953
    %3956 = vmatprep.subr.mxu0 0.0
    %3957 = vmatpush1.msra.mxu0 %v3917
    %3958 = vmatprep.subr.mxu0 0.0
    %3959 = vmatpush1.msra.mxu0 %v3918
    %3960 = vmatprep.subr.mxu0 0.0
    %3961 = vmatpush1.msra.mxu0 %v3919
    %3962 = vmatprep.subr.mxu0 0.0
    %3963 = vmatpush1.msra.mxu0 %v3920
    %3964 = vmatprep.subr.mxu0 0.0
    %3965 = vmatpush1.msra.mxu0 %v3921
    %3966 = vmatprep.subr.mxu0 0.0
    %3967 = vmatpush1.msra.mxu0 %v3922
    %3968 = vmatprep.subr.mxu0 0.0
    %3969 = vmatpush1.msra.mxu0 %v3923
    %3970 = vmatprep.subr.mxu0 0.0
    %3971 = vmatpush1.msra.mxu0 %v3924
    %3972 = vmatprep.subr.mxu0 0.0
    %3973 = vmatpush1.msra.mxu0 %v3925
    %3974 = vmatprep.subr.mxu0 0.0
    %3975 = vmatpush1.msra.mxu0 %v3926
    %3976 = vmatprep.subr.mxu0 0.0
    %3977 = vmatpush1.msra.mxu0 %v3927
    %3978 = vmatprep.subr.mxu0 0.0
    %3979 = vmatpush1.msra.mxu0 %v3928
    %3980 = vmatprep.subr.mxu0 0.0
    %3981 = vmatpush1.msra.mxu0 %v3929
    %3982 = vmatprep.subr.mxu0 0.0
    %3983 = vmatpush1.msra.mxu0 %v3930
    %3984 = vmatprep.subr.mxu0 0.0
    %3985 = vmatpush1.msra.mxu0 %v3931
    %3986 = vmatprep.subr.mxu0 0.0
    %3987 = vmatpush1.msra.mxu0 %v3932
    %3988 = vmatprep.subr.mxu0 0.0
    %3989 = vmatpush1.msra.mxu0 %v3933
    %3990 = vmatprep.subr.mxu0 0.0
    %3991 = vmatpush1.msra.mxu0 %v3934
    %3992 = vmatprep.subr.mxu0 0.0
    %3993 = vmatpush1.msra.mxu0 %v3935
    %3994 = vmatprep.subr.mxu0 0.0
    %3995 = vmatpush1.msra.mxu0 %v3936
    %3996 = vmatprep.subr.mxu0 0.0
    %3997 = vmatpush1.msra.mxu0 %v3937
    %3998 = vmatprep.subr.mxu0 0.0
    %3999 = vmatpush1.msra.mxu0 %v3938
    %4000 = vmatprep.subr.mxu0 0.0
    %4001 = vmatpush1.msra.mxu0 %v3939
    %4002 = vmatprep.subr.mxu0 0.0
    %4003 = vmatpush1.msra.mxu0 %v3940
    %4004 = vmatprep.subr.mxu0 0.0
    %4005 = vmatpush1.msra.mxu0 %v3941
    %4006 = vmatprep.subr.mxu0 0.0
    %4007 = vmatpush1.msra.mxu0 %v3942
    %4008 = vmatprep.subr.mxu0 0.0
    %4009 = vmatpush1.msra.mxu0 %v3943
    %4010 = vmatprep.subr.mxu0 0.0
    %4011 = vmatpush1.msra.mxu0 %v3944
    %4012 = vmatprep.subr.mxu0 0.0
    %4013 = vmatpush1.msra.mxu0 %v3945
    %4014 = vmatprep.subr.mxu0 0.0
    %4015 = vmatpush1.msra.mxu0 %v3946
    %4016 = vmatprep.subr.mxu0 0.0
    %4017 = vmatpush1.msra.mxu0 %v3947
    %4018 = vmatprep.subr.mxu0 0.0
    %4019 = vmatpush1.msra.mxu0 %v3948
    %4020 = vmatprep.mubr.f32.mxu0 %v3902
    %4021 = vmatmul.mubr.f32.gmra.mrb[0].mxu0 %v3901
    %v4022 = vpop.f32.mrb[0].mxu0
    %v4023 = vadd.f32 %v3954, %v4022
    %v4024 = vpop.f32.mrb[0].mxu0
    %4025 = vmatprep.mubr.f32.mxu0 %v3904
    %4026 = vmatmul.mubr.f32.gmra.mrb[0].mxu0 %v3903
    %v4027 = vpop.f32.mrb[0].mxu0
    %v4028 = vadd.f32 %v3954, %v4027
    %v4029 = vpop.f32.mrb[0].mxu0
    %4030 = vmatprep.mubr.f32.mxu0 %v3906
    %4031 = vmatmul.mubr.f32.gmra.mrb[0].mxu0 %v3905
    %v4032 = vpop.f32.mrb[0].mxu0
    %v4033 = vadd.f32 %v3954, %v4032
    %v4034 = vpop.f32.mrb[0].mxu0
    %4035 = vmatprep.mubr.f32.mxu0 %v3908
    %4036 = vmatmul.mubr.f32.gmra.mrb[0].mxu0 %v3907
    %v4037 = vpop.f32.mrb[0].mxu0
    %v4038 = vadd.f32 %v3954, %v4037
    %v4039 = vpop.f32.mrb[0].mxu0
    %4040 = vmatprep.mubr.f32.mxu0 %v3910
    %4041 = vmatmul.mubr.f32.gmra.mrb[0].mxu0 %v3909
    %v4042 = vpop.f32.mrb[0].mxu0
    %v4043 = vadd.f32 %v3954, %v4042
    %v4044 = vpop.f32.mrb[0].mxu0
    %4045 = vmatprep.mubr.f32.mxu0 %v3912
    %4046 = vmatmul.mubr.f32.gmra.mrb[0].mxu0 %v3911
    %v4047 = vpop.f32.mrb[0].mxu0
    %v4048 = vadd.f32 %v3954, %v4047
    %v4049 = vpop.f32.mrb[0].mxu0
    %4050 = vmatprep.mubr.f32.mxu0 %v3914
    %4051 = vmatmul.mubr.f32.gmra.mrb[0].mxu0 %v3913
    %v4052 = vpop.f32.mrb[0].mxu0
    %v4053 = vadd.f32 %v3954, %v4052
    %v4054 = vpop.f32.mrb[0].mxu0
    %4055 = vmatprep.mubr.f32.mxu0 %v3916
    %4056 = vmatmul.mubr.f32.gmra.mrb[0].mxu0 %v3915
    %v4057 = vpop.f32.mrb[0].mxu0
    %v4058 = vadd.f32 %v3954, %v4057
    %v4059 = vpop.f32.mrb[0].mxu0
    %4060 = vdwg.mxu0
    %4061 = vmax.xlane.f32.xlu0 %v4023
    %v4062 = vpop.xlane.xlu0 %4061
    %4063 = vmax.xlane.f32.xlu0 %v4028
    %v4064 = vpop.xlane.xlu0 %4063
    %4065 = vmax.xlane.f32.xlu0 %v4033
    %v4066 = vpop.xlane.xlu0 %4065
    %4067 = vmax.xlane.f32.xlu0 %v4038
    %v4068 = vpop.xlane.xlu0 %4067
    %4069 = vmax.xlane.f32.xlu0 %v4043
    %v4070 = vpop.xlane.xlu0 %4069
    %4071 = vmax.xlane.f32.xlu0 %v4048
    %v4072 = vpop.xlane.xlu0 %4071
    %4073 = vmax.xlane.f32.xlu0 %v4053
    %v4074 = vpop.xlane.xlu0 %4073
    %4075 = vmax.xlane.f32.xlu0 %v4058
    %v4076 = vpop.xlane.xlu0 %4075
    %v4077 = vsub.f32 %v4023, %v4062
    %v4078 = vsub.f32 %v4028, %v4064
    %v4079 = vsub.f32 %v4033, %v4066
    %v4080 = vsub.f32 %v4038, %v4068
    %v4081 = vsub.f32 %v4043, %v4070
    %v4082 = vsub.f32 %v4048, %v4072
    %v4083 = vsub.f32 %v4053, %v4074
    %v4084 = vsub.f32 %v4058, %v4076
    %v4085 = vmul.f32 %v4077, 1.442695
    %v4086 = vpow.pop %v4085
    %v4087 = vmul.f32 %v4078, 1.442695
    %v4088 = vpow.pop %v4087
    %v4089 = vmul.f32 %v4079, 1.442695
    %v4090 = vpow.pop %v4089
    %v4091 = vmul.f32 %v4080, 1.442695
    %v4092 = vpow.pop %v4091
    %v4093 = vmul.f32 %v4081, 1.442695
    %v4094 = vpow.pop %v4093
    %v4095 = vmul.f32 %v4082, 1.442695
    %v4096 = vpow.pop %v4095
    %v4097 = vmul.f32 %v4083, 1.442695
    %v4098 = vpow.pop %v4097
    %v4099 = vmul.f32 %v4084, 1.442695
    %v4100 = vpow.pop %v4099
    %4101 = vadd.xlane.f32.xlu0 %v4086
    %v4102 = vpop.xlane.xlu0 %4101
    %4103 = vadd.xlane.f32.xlu0 %v4088
    %v4104 = vpop.xlane.xlu0 %4103
    %4105 = vadd.xlane.f32.xlu0 %v4090
    %v4106 = vpop.xlane.xlu0 %4105
    %4107 = vadd.xlane.f32.xlu0 %v4092
    %v4108 = vpop.xlane.xlu0 %4107
    %4109 = vadd.xlane.f32.xlu0 %v4094
    %v4110 = vpop.xlane.xlu0 %4109
    %4111 = vadd.xlane.f32.xlu0 %v4096
    %v4112 = vpop.xlane.xlu0 %4111
    %4113 = vadd.xlane.f32.xlu0 %v4098
    %v4114 = vpop.xlane.xlu0 %4113
    %4115 = vadd.xlane.f32.xlu0 %v4100
    %v4116 = vpop.xlane.xlu0 %4115
    %v4117 = vlog2.pop %v4102
    %v4118 = vmul.f32 %v4117, 0.6931472
    %v4119 = vlog2.pop %v4104
    %v4120 = vmul.f32 %v4119, 0.6931472
    %v4121 = vlog2.pop %v4106
    %v4122 = vmul.f32 %v4121, 0.6931472
    %v4123 = vlog2.pop %v4108
    %v4124 = vmul.f32 %v4123, 0.6931472
    %v4125 = vlog2.pop %v4110
    %v4126 = vmul.f32 %v4125, 0.6931472
    %v4127 = vlog2.pop %v4112
    %v4128 = vmul.f32 %v4127, 0.6931472
    %v4129 = vlog2.pop %v4114
    %v4130 = vmul.f32 %v4129, 0.6931472
    %v4131 = vlog2.pop %v4116
    %v4132 = vmul.f32 %v4131, 0.6931472
    %v4133 = vsub.f32 %v4077, %v4118
    %v4134 = vsub.f32 %v4078, %v4120
    %v4135 = vsub.f32 %v4079, %v4122
    %v4136 = vsub.f32 %v4080, %v4124
    %v4137 = vsub.f32 %v4081, %v4126
    %v4138 = vsub.f32 %v4082, %v4128
    %v4139 = vsub.f32 %v4083, %v4130
    %v4140 = vsub.f32 %v4084, %v4132
    %4141 = vst [vmem:[%s10] sm:$0xff] %v4133
    %4142 = vst [vmem:[%s10 + $0x8] sm:$0xff] %v4134
    %4143 = vst [vmem:[%s10 + $0x10] sm:$0xff] %v4135
    %4144 = vst [vmem:[%s10 + $0x18] sm:$0xff] %v4136
    %4145 = vst [vmem:[%s10 + $0x20] sm:$0xff] %v4137
    %4146 = vst [vmem:[%s10 + $0x28] sm:$0xff] %v4138
    %4147 = vst [vmem:[%s10 + $0x30] sm:$0xff] %v4139
    %4148 = vst [vmem:[%s10 + $0x38] sm:$0xff] %v4140
    // Predicated region
    $region50: #{asr_forward.1} parent=1 // pred_check
      _
    $region51: #{asr_forward.1} parent=1 // pred_check_branch
      %4150 = sbr.rel (0) target = $region53
    $region52: #{asr_forward.1} parent=1 // pred_region
      _
    $region53: #{asr_forward.1} parent=1 // pred_fallthru
      _
    // Predicated region
    $region54: #{asr_forward.1} parent=1 // pred_check
      _
    $region55: #{asr_forward.1} parent=1 // pred_check_branch
      %4152 = sbr.rel (0) target = $region57
    $region56: #{asr_forward.1} parent=1 // pred_region
      _
    $region57: #{asr_forward.1} parent=1 // pred_fallthru
      _
    %4153 = vsyncpa [#allocation5], 1
    %4154 = vsyncpa [#allocation7], 1

</llo_original>
